<compile_context>
chip_gen: v7x
topology: tpu7x:2x2x1
jax: 0.10.0
libtpu: 0.0.40
codegen_flags: <defaults>
</compile_context>

<pallas_src>
import random

import jax
import jax.numpy as jnp
from jax.experimental import pallas as pl
from jax.experimental.pallas import tpu as pltpu

# ---- logical model sizes (match the PyTorch module) -------------------------
VOCAB = 32    # encoder input_dim == decoder output_dim
EMB = 16      # embedding_dim
HIDDEN = 32   # hidden_dim (encoder.hidden_dim == decoder.hidden_dim)
BATCH = 4
SRC_LEN = 6
TRG_LEN = 8

# ---- padded (lane/sublane-dense) layout dims --------------------------------
B_P = 16      # batch  -> one full (16,128) bf16 tile / two f32 vregs
E_P = 128     # emb    -> one lane group
H_P = 128     # packed GRU gates [r|z|n|pad] at lanes [0:32|32:64|64:96|96:128]
V_P = 128     # vocab  -> one lane group (lane-dense logit stores)

# W-slab indices (each entry is a 128x128 bf16 tile)
W_ENC_IH, W_ENC_HH = 0, 1
W_DEC_IH_INP, W_DEC_IH_CTX, W_DEC_HH = 2, 3, 4
W_DEC_FC_INP, W_DEC_FC_CTX, W_DEC_FC_H = 5, 6, 7
# bias-slab indices (each entry is (B_P,128) f32)
B_ENC_IH, B_ENC_HH, B_DEC_IH, B_DEC_HH, B_DEC_FC = 0, 1, 2, 3, 4


def _gru_packed(gi, gh, h):
    """PyTorch GRU cell with the three gates packed into one 128-lane group.

    gi / gh: (B_P, H_P) f32, lanes [0:32]=r, [32:64]=z, [64:96]=n (biases
             already included).  h: (B_P, H_P) f32, hidden in lanes [0:32].
    All ops are full-vreg; gate alignment uses XLU rolls, not masked slices.
    """
    sg = jax.nn.sigmoid(gi + gh)                            # r @0:32, z @32:64
    r_at_n = pltpu.roll(sg, shift=2 * HIDDEN, axis=1)       # r -> lanes 64:96
    tn = jnp.tanh(gi + r_at_n * gh)                         # n @64:96
    n0 = pltpu.roll(tn, shift=H_P - 2 * HIDDEN, axis=1)     # n -> lanes 0:32
    z0 = pltpu.roll(sg, shift=H_P - HIDDEN, axis=1)         # z -> lanes 0:32
    h_new = (1.0 - z0) * n0 + z0 * h
    keep = jax.lax.broadcasted_iota(jnp.int32, h_new.shape, 1) < HIDDEN
    return jnp.where(keep, h_new, 0.0)                      # zero padded lanes


def _seq2seq_kernel(tf_ref,       # SMEM (TRG_LEN,) int32 teacher-forcing mask
                    enc_x_ref,    # (SRC_LEN, B_P, E_P) bf16 encoder embeddings
                    trg_oh_ref,   # (TRG_LEN, B_P, V_P) bf16 one-hot targets
                    w_ref,        # (8, 128, 128) bf16 weight slab
                    b_ref,        # (5, B_P, 128) f32 bias slab
                    out_ref,      # (TRG_LEN, B_P, V_P) f32 logits
                    sel_ref):     # scratch (B_P, V_P) bf16: next decoder input
    src_len = enc_x_ref.shape[0]
    trg_len = out_ref.shape[0]

    def bf16(x):
        return x.astype(jnp.bfloat16)

    # ------------------------- encoder: context = final hidden --------------
    def enc_body(t, h):
        gi = jnp.dot(enc_x_ref[t], w_ref[W_ENC_IH],
                     preferred_element_type=jnp.float32) + b_ref[B_ENC_IH]
        gh = jnp.dot(bf16(h), w_ref[W_ENC_HH],
                     preferred_element_type=jnp.float32) + b_ref[B_ENC_HH]
        return _gru_packed(gi, gh, h)

    ctx = jax.lax.fori_loop(0, src_len, enc_body,
                            jnp.zeros((B_P, H_P), jnp.float32), unroll=True)

    # Context is frozen for the whole decode: precompute its gate / fc
    # contributions ONCE, with the decoder input/output biases folded in.
    ctx_b = bf16(ctx)
    gi_ctx = jnp.dot(ctx_b, w_ref[W_DEC_IH_CTX],
                     preferred_element_type=jnp.float32) + b_ref[B_DEC_IH]
    fc_ctx = jnp.dot(ctx_b, w_ref[W_DEC_FC_CTX],
                     preferred_element_type=jnp.float32) + b_ref[B_DEC_FC]

    # ------------------------- decoder: teacher-forced greedy decode --------
    out_ref[0] = jnp.zeros((B_P, V_P), jnp.float32)   # outputs[0] stays zero
    sel_ref[...] = trg_oh_ref[0]                      # first decoder input = trg[0]

    def dec_body(t, h):
        inp = sel_ref[...]                            # (B_P, V_P) bf16 one-hot
        # Embedding table is folded into W_DEC_IH_INP / W_DEC_FC_INP, so the
        # one-hot input feeds the gate and fc matmuls directly.
        gi = jnp.dot(inp, w_ref[W_DEC_IH_INP],
                     preferred_element_type=jnp.float32) + gi_ctx
        gh = jnp.dot(bf16(h), w_ref[W_DEC_HH],
                     preferred_element_type=jnp.float32) + b_ref[B_DEC_HH]
        h = _gru_packed(gi, gh, h)
        logits = (jnp.dot(inp, w_ref[W_DEC_FC_INP],
                          preferred_element_type=jnp.float32)
                  + jnp.dot(bf16(h), w_ref[W_DEC_FC_H],
                            preferred_element_type=jnp.float32)
                  + fc_ctx)
        out_ref[t] = logits                           # lane-dense f32 store

        tf = tf_ref[t]

        @pl.when(tf == 1)
        def _():                                      # teacher forcing: trg[t]
            sel_ref[...] = trg_oh_ref[t]

        @pl.when(tf == 0)
        def _():                                      # greedy top-1 (first max)
            lane = jax.lax.broadcasted_iota(
                jnp.int32, (B_P, V_P), 1).astype(jnp.float32)
            masked = jnp.where(lane < float(VOCAB), logits, jnp.float32(-1e30))
            m = jnp.max(masked, axis=1, keepdims=True)
            idx = jnp.min(jnp.where(masked == m, lane, jnp.float32(V_P)),
                          axis=1, keepdims=True)
            sel_ref[...] = (lane == idx).astype(jnp.bfloat16)

        return h

    jax.lax.fori_loop(1, trg_len, dec_body, ctx, unroll=True)


# ---------------------------------------------------------------------------
# jitted forward (one pallas_call; all host glue folded into the same jit)
# ---------------------------------------------------------------------------
@jax.jit
def seq2seq_forward(params, src, trg, tf_mask):
    src_len, batch = src.shape
    trg_len = trg.shape[0]

    # encoder embeddings: one small XLA gather, pad batch -> B_P sublanes
    enc_x = jnp.take(params["enc_emb"], src, axis=0)             # (S, B, E_P) bf16
    enc_x = jnp.zeros((src_len, B_P, E_P), jnp.bfloat16).at[:, :batch, :].set(enc_x)

    # target tokens as padded bf16 one-hots (they feed the folded-emb matmuls)
    trg_oh = jax.nn.one_hot(trg, V_P, dtype=jnp.bfloat16)        # (T, B, V_P)
    trg_oh = jnp.zeros((trg_len, B_P, V_P), jnp.bfloat16).at[:, :batch, :].set(trg_oh)

    vmem = pl.BlockSpec(memory_space=pltpu.MemorySpace.VMEM)
    smem = pl.BlockSpec(memory_space=pltpu.MemorySpace.SMEM)

    out_padded = pl.pallas_call(
        _seq2seq_kernel,
        out_shape=jax.ShapeDtypeStruct((trg_len, B_P, V_P), jnp.float32),
        in_specs=[smem, vmem, vmem, vmem, vmem],
        out_specs=vmem,
        scratch_shapes=[pltpu.VMEM((B_P, V_P), jnp.bfloat16)],
    )(tf_mask, enc_x, trg_oh, params["w"], params["b"])

    return out_padded[:, :batch, :VOCAB]                         # (T, B, VOCAB)


# ---------------------------------------------------------------------------
# Deterministic parameter init: logical PyTorch-shaped blocks, folded + packed
# into one bf16 weight slab and one f32 bias slab.
# ---------------------------------------------------------------------------
def init_params(key):
    ks = jax.random.split(key, 16)
    s = 0.1

    def w(k, shape):
        return (s * jax.random.normal(k, shape)).astype(jnp.float32)

    # --- logical (PyTorch-shaped) blocks, gate order [r|z|n] ---
    enc_emb_r = w(ks[0], (VOCAB, EMB))
    enc_wih_r = w(ks[1], (EMB, 3 * HIDDEN))
    enc_whh_r = w(ks[2], (HIDDEN, 3 * HIDDEN))
    enc_bih_r = w(ks[3], (1, 3 * HIDDEN))
    enc_bhh_r = w(ks[4], (1, 3 * HIDDEN))
    dec_emb_r = w(ks[5], (VOCAB, EMB))
    dec_wih_e = w(ks[6], (EMB, 3 * HIDDEN))       # GRU input weights, emb rows
    dec_wih_c = w(ks[7], (HIDDEN, 3 * HIDDEN))    # GRU input weights, ctx rows
    dec_whh_r = w(ks[8], (HIDDEN, 3 * HIDDEN))
    dec_bih_r = w(ks[9], (1, 3 * HIDDEN))
    dec_bhh_r = w(ks[10], (1, 3 * HIDDEN))
    dec_wfc_e = w(ks[11], (EMB, VOCAB))           # fc_out, emb rows
    dec_wfc_h = w(ks[12], (HIDDEN, VOCAB))        # fc_out, hidden rows
    dec_wfc_c = w(ks[13], (HIDDEN, VOCAB))        # fc_out, ctx rows
    dec_bfc_r = w(ks[14], (1, VOCAB))

    # Fold the decoder embedding table into the gate / fc input weights so the
    # in-kernel one-hot feeds those matmuls directly (no separate emb lookup).
    dec_wih_inp = dec_emb_r @ dec_wih_e           # (VOCAB, 3*HIDDEN)
    dec_wfc_inp = dec_emb_r @ dec_wfc_e           # (VOCAB, VOCAB)

    # Gate packing: 3*HIDDEN = 96 <= 128, so the natural compact layout already
    # puts all three gates in one 128-lane group; just zero-pad to (128,128).
    def pad_w(w_real):
        out = jnp.zeros((128, 128), jnp.float32)
        return out.at[:w_real.shape[0], :w_real.shape[1]].set(w_real)

    w_slab = jnp.stack([
        pad_w(enc_wih_r),      # W_ENC_IH
        pad_w(enc_whh_r),      # W_ENC_HH
        pad_w(dec_wih_inp),    # W_DEC_IH_INP (embedding folded)
        pad_w(dec_wih_c),      # W_DEC_IH_CTX
        pad_w(dec_whh_r),      # W_DEC_HH
        pad_w(dec_wfc_inp),    # W_DEC_FC_INP (embedding folded)
        pad_w(dec_wfc_c),      # W_DEC_FC_CTX
        pad_w(dec_wfc_h),      # W_DEC_FC_H
    ]).astype(jnp.bfloat16)    # (8, 128, 128) bf16

    def pad_b(b_real):
        out = jnp.zeros((1, 128), jnp.float32).at[:, :b_real.shape[1]].set(b_real)
        return jnp.tile(out, (B_P, 1))            # replicate across sublanes

    b_slab = jnp.stack([
        pad_b(enc_bih_r), pad_b(enc_bhh_r),
        pad_b(dec_bih_r), pad_b(dec_bhh_r), pad_b(dec_bfc_r),
    ])                          # (5, B_P, 128) f32

    enc_emb = jnp.zeros((VOCAB, E_P), jnp.float32).at[:, :EMB].set(enc_emb_r)

    return {"enc_emb": enc_emb.astype(jnp.bfloat16), "w": w_slab, "b": b_slab}


if __name__ == "__main__":
    random.seed(0)                               # deterministic teacher forcing
    key = jax.random.PRNGKey(0)
    pkey, skey, tkey = jax.random.split(key, 3)

    params = init_params(pkey)
    src = jax.random.randint(skey, (SRC_LEN, BATCH), 0, VOCAB, dtype=jnp.int32)
    trg = jax.random.randint(tkey, (TRG_LEN, BATCH), 0, VOCAB, dtype=jnp.int32)

    teacher_forcing_ratio = 0.5
    # per-step host-side decisions, same semantics as `random.random() < ratio`
    # inside the PyTorch loop; passed as data so jit never bakes them in.
    tf_mask = jnp.asarray(
        [0] + [int(random.random() < teacher_forcing_ratio)
               for _ in range(TRG_LEN - 1)],
        dtype=jnp.int32)

    outputs = seq2seq_forward(params, src, trg, tf_mask)
    outputs = jax.block_until_ready(outputs)

    assert outputs.shape == (TRG_LEN, BATCH, VOCAB)
    assert bool(jnp.all(jnp.isfinite(outputs)))
    print("KERNEL_OK")
</pallas_src>

<mosaic_0001>
module attributes {stable_mosaic.version = 11 : i64} {
  func.func @_seq2seq_kernel(%arg0: memref<8xi32, #tpu.memory_space<smem>>, %arg1: memref<6x16x128xbf16, #tpu.memory_space<vmem>>, %arg2: memref<8x16x128xbf16, #tpu.memory_space<vmem>>, %arg3: memref<8x128x128xbf16, #tpu.memory_space<vmem>>, %arg4: memref<5x16x128xf32, #tpu.memory_space<vmem>>, %arg5: memref<8x16x128xf32, #tpu.memory_space<vmem>>, %arg6: memref<16x128xbf16, #tpu.memory_space<vmem>>) attributes {dimension_semantics = [], scalar_prefetch = 0 : i64, scratch_operands = 1 : i64, tpu.core_type = #tpu.core_type<tc>} {
    %cst = arith.constant 0.000000e+00 : f32
    %0 = vector.broadcast %cst : f32 to vector<16x128xf32>
    %c0_i32 = arith.constant 0 : i32
    %1 = arith.index_cast %c0_i32 : i32 to index
    %c0 = arith.constant 0 : index
    %c0_0 = arith.constant 0 : index
    %2 = vector.load %arg1[%1, %c0, %c0_0] : memref<6x16x128xbf16, #tpu.memory_space<vmem>>, vector<1x16x128xbf16>
    %3 = vector.shape_cast %2 : vector<1x16x128xbf16> to vector<16x128xbf16>
    %c0_1 = arith.constant 0 : index
    %c0_2 = arith.constant 0 : index
    %c0_3 = arith.constant 0 : index
    %4 = vector.load %arg3[%c0_1, %c0_2, %c0_3] : memref<8x128x128xbf16, #tpu.memory_space<vmem>>, vector<1x128x128xbf16>
    %5 = vector.shape_cast %4 : vector<1x128x128xbf16> to vector<128x128xbf16>
    %cst_4 = arith.constant dense<0.000000e+00> : vector<16x128xf32>
    %6 = tpu.matmul %3, %5, %cst_4 {dimension_numbers = #tpu.dot_dimension_numbers<[1], [0], [0], [1], [0, 0, 1, 1], [], []>} : vector<16x128xbf16>, vector<128x128xbf16>, vector<16x128xf32> -> vector<16x128xf32>
    %c0_5 = arith.constant 0 : index
    %c0_6 = arith.constant 0 : index
    %c0_7 = arith.constant 0 : index
    %7 = vector.load %arg4[%c0_5, %c0_6, %c0_7] : memref<5x16x128xf32, #tpu.memory_space<vmem>>, vector<1x16x128xf32>
    %8 = vector.shape_cast %7 : vector<1x16x128xf32> to vector<16x128xf32>
    %9 = arith.addf %6, %8 : vector<16x128xf32>
    %10 = arith.truncf %0 : vector<16x128xf32> to vector<16x128xbf16>
    %c1 = arith.constant 1 : index
    %c0_8 = arith.constant 0 : index
    %c0_9 = arith.constant 0 : index
    %11 = vector.load %arg3[%c1, %c0_8, %c0_9] : memref<8x128x128xbf16, #tpu.memory_space<vmem>>, vector<1x128x128xbf16>
    %12 = vector.shape_cast %11 : vector<1x128x128xbf16> to vector<128x128xbf16>
    %cst_10 = arith.constant dense<0.000000e+00> : vector<16x128xf32>
    %13 = tpu.matmul %10, %12, %cst_10 {dimension_numbers = #tpu.dot_dimension_numbers<[1], [0], [0], [1], [0, 0, 1, 1], [], []>} : vector<16x128xbf16>, vector<128x128xbf16>, vector<16x128xf32> -> vector<16x128xf32>
    %c1_11 = arith.constant 1 : index
    %c0_12 = arith.constant 0 : index
    %c0_13 = arith.constant 0 : index
    %14 = vector.load %arg4[%c1_11, %c0_12, %c0_13] : memref<5x16x128xf32, #tpu.memory_space<vmem>>, vector<1x16x128xf32>
    %15 = vector.shape_cast %14 : vector<1x16x128xf32> to vector<16x128xf32>
    %16 = arith.addf %13, %15 : vector<16x128xf32>
    %17 = arith.addf %9, %16 : vector<16x128xf32>
    %18 = arith.negf %17 : vector<16x128xf32>
    %19 = math.exp %18 : vector<16x128xf32>
    %cst_14 = arith.constant 1.000000e+00 : f32
    %20 = vector.broadcast %cst_14 : f32 to vector<16x128xf32>
    %21 = arith.addf %20, %19 : vector<16x128xf32>
    %22 = arith.divf %20, %21 : vector<16x128xf32>
    %c64_i32 = arith.constant 64 : i32
    %23 = tpu.dynamic_rotate %22 by %c64_i32 dim 1 : vector<16x128xf32>, i32 -> vector<16x128xf32>
    %24 = arith.mulf %23, %16 : vector<16x128xf32>
    %25 = arith.addf %9, %24 : vector<16x128xf32>
    %26 = math.tanh %25 : vector<16x128xf32>
    %c64_i32_15 = arith.constant 64 : i32
    %27 = tpu.dynamic_rotate %26 by %c64_i32_15 dim 1 : vector<16x128xf32>, i32 -> vector<16x128xf32>
    %c96_i32 = arith.constant 96 : i32
    %28 = tpu.dynamic_rotate %22 by %c96_i32 dim 1 : vector<16x128xf32>, i32 -> vector<16x128xf32>
    %cst_16 = arith.constant 1.000000e+00 : f32
    %29 = vector.broadcast %cst_16 : f32 to vector<16x128xf32>
    %30 = arith.subf %29, %28 : vector<16x128xf32>
    %31 = arith.mulf %30, %27 : vector<16x128xf32>
    %32 = arith.mulf %28, %0 : vector<16x128xf32>
    %33 = arith.addf %31, %32 : vector<16x128xf32>
    %34 = tpu.iota {dimensions = array<i32: 1>} : vector<16x128xi32>
    %c32_i32 = arith.constant 32 : i32
    %35 = vector.broadcast %c32_i32 : i32 to vector<16x128xi32>
    %36 = arith.cmpi slt, %34, %35 : vector<16x128xi32>
    %cst_17 = arith.constant 0.000000e+00 : f32
    %37 = vector.broadcast %cst_17 : f32 to vector<16x128xf32>
    %38 = arith.select %36, %33, %37 : vector<16x128xi1>, vector<16x128xf32>
    %c1_i32 = arith.constant 1 : i32
    %39 = arith.index_cast %c1_i32 : i32 to index
    %c0_18 = arith.constant 0 : index
    %c0_19 = arith.constant 0 : index
    %40 = vector.load %arg1[%39, %c0_18, %c0_19] : memref<6x16x128xbf16, #tpu.memory_space<vmem>>, vector<1x16x128xbf16>
    %41 = vector.shape_cast %40 : vector<1x16x128xbf16> to vector<16x128xbf16>
    %c0_20 = arith.constant 0 : index
    %c0_21 = arith.constant 0 : index
    %c0_22 = arith.constant 0 : index
    %42 = vector.load %arg3[%c0_20, %c0_21, %c0_22] : memref<8x128x128xbf16, #tpu.memory_space<vmem>>, vector<1x128x128xbf16>
    %43 = vector.shape_cast %42 : vector<1x128x128xbf16> to vector<128x128xbf16>
    %cst_23 = arith.constant dense<0.000000e+00> : vector<16x128xf32>
    %44 = tpu.matmul %41, %43, %cst_23 {dimension_numbers = #tpu.dot_dimension_numbers<[1], [0], [0], [1], [0, 0, 1, 1], [], []>} : vector<16x128xbf16>, vector<128x128xbf16>, vector<16x128xf32> -> vector<16x128xf32>
    %c0_24 = arith.constant 0 : index
    %c0_25 = arith.constant 0 : index
    %c0_26 = arith.constant 0 : index
    %45 = vector.load %arg4[%c0_24, %c0_25, %c0_26] : memref<5x16x128xf32, #tpu.memory_space<vmem>>, vector<1x16x128xf32>
    %46 = vector.shape_cast %45 : vector<1x16x128xf32> to vector<16x128xf32>
    %47 = arith.addf %44, %46 : vector<16x128xf32>
    %48 = arith.truncf %38 : vector<16x128xf32> to vector<16x128xbf16>
    %c1_27 = arith.constant 1 : index
    %c0_28 = arith.constant 0 : index
    %c0_29 = arith.constant 0 : index
    %49 = vector.load %arg3[%c1_27, %c0_28, %c0_29] : memref<8x128x128xbf16, #tpu.memory_space<vmem>>, vector<1x128x128xbf16>
    %50 = vector.shape_cast %49 : vector<1x128x128xbf16> to vector<128x128xbf16>
    %cst_30 = arith.constant dense<0.000000e+00> : vector<16x128xf32>
    %51 = tpu.matmul %48, %50, %cst_30 {dimension_numbers = #tpu.dot_dimension_numbers<[1], [0], [0], [1], [0, 0, 1, 1], [], []>} : vector<16x128xbf16>, vector<128x128xbf16>, vector<16x128xf32> -> vector<16x128xf32>
    %c1_31 = arith.constant 1 : index
    %c0_32 = arith.constant 0 : index
    %c0_33 = arith.constant 0 : index
    %52 = vector.load %arg4[%c1_31, %c0_32, %c0_33] : memref<5x16x128xf32, #tpu.memory_space<vmem>>, vector<1x16x128xf32>
    %53 = vector.shape_cast %52 : vector<1x16x128xf32> to vector<16x128xf32>
    %54 = arith.addf %51, %53 : vector<16x128xf32>
    %55 = arith.addf %47, %54 : vector<16x128xf32>
    %56 = arith.negf %55 : vector<16x128xf32>
    %57 = math.exp %56 : vector<16x128xf32>
    %cst_34 = arith.constant 1.000000e+00 : f32
    %58 = vector.broadcast %cst_34 : f32 to vector<16x128xf32>
    %59 = arith.addf %58, %57 : vector<16x128xf32>
    %60 = arith.divf %58, %59 : vector<16x128xf32>
    %c64_i32_35 = arith.constant 64 : i32
    %61 = tpu.dynamic_rotate %60 by %c64_i32_35 dim 1 : vector<16x128xf32>, i32 -> vector<16x128xf32>
    %62 = arith.mulf %61, %54 : vector<16x128xf32>
    %63 = arith.addf %47, %62 : vector<16x128xf32>
    %64 = math.tanh %63 : vector<16x128xf32>
    %c64_i32_36 = arith.constant 64 : i32
    %65 = tpu.dynamic_rotate %64 by %c64_i32_36 dim 1 : vector<16x128xf32>, i32 -> vector<16x128xf32>
    %c96_i32_37 = arith.constant 96 : i32
    %66 = tpu.dynamic_rotate %60 by %c96_i32_37 dim 1 : vector<16x128xf32>, i32 -> vector<16x128xf32>
    %cst_38 = arith.constant 1.000000e+00 : f32
    %67 = vector.broadcast %cst_38 : f32 to vector<16x128xf32>
    %68 = arith.subf %67, %66 : vector<16x128xf32>
    %69 = arith.mulf %68, %65 : vector<16x128xf32>
    %70 = arith.mulf %66, %38 : vector<16x128xf32>
    %71 = arith.addf %69, %70 : vector<16x128xf32>
    %72 = tpu.iota {dimensions = array<i32: 1>} : vector<16x128xi32>
    %c32_i32_39 = arith.constant 32 : i32
    %73 = vector.broadcast %c32_i32_39 : i32 to vector<16x128xi32>
    %74 = arith.cmpi slt, %72, %73 : vector<16x128xi32>
    %cst_40 = arith.constant 0.000000e+00 : f32
    %75 = vector.broadcast %cst_40 : f32 to vector<16x128xf32>
    %76 = arith.select %74, %71, %75 : vector<16x128xi1>, vector<16x128xf32>
    %c2_i32 = arith.constant 2 : i32
    %77 = arith.index_cast %c2_i32 : i32 to index
    %c0_41 = arith.constant 0 : index
    %c0_42 = arith.constant 0 : index
    %78 = vector.load %arg1[%77, %c0_41, %c0_42] : memref<6x16x128xbf16, #tpu.memory_space<vmem>>, vector<1x16x128xbf16>
    %79 = vector.shape_cast %78 : vector<1x16x128xbf16> to vector<16x128xbf16>
    %c0_43 = arith.constant 0 : index
    %c0_44 = arith.constant 0 : index
    %c0_45 = arith.constant 0 : index
    %80 = vector.load %arg3[%c0_43, %c0_44, %c0_45] : memref<8x128x128xbf16, #tpu.memory_space<vmem>>, vector<1x128x128xbf16>
    %81 = vector.shape_cast %80 : vector<1x128x128xbf16> to vector<128x128xbf16>
    %cst_46 = arith.constant dense<0.000000e+00> : vector<16x128xf32>
    %82 = tpu.matmul %79, %81, %cst_46 {dimension_numbers = #tpu.dot_dimension_numbers<[1], [0], [0], [1], [0, 0, 1, 1], [], []>} : vector<16x128xbf16>, vector<128x128xbf16>, vector<16x128xf32> -> vector<16x128xf32>
    %c0_47 = arith.constant 0 : index
    %c0_48 = arith.constant 0 : index
    %c0_49 = arith.constant 0 : index
    %83 = vector.load %arg4[%c0_47, %c0_48, %c0_49] : memref<5x16x128xf32, #tpu.memory_space<vmem>>, vector<1x16x128xf32>
    %84 = vector.shape_cast %83 : vector<1x16x128xf32> to vector<16x128xf32>
    %85 = arith.addf %82, %84 : vector<16x128xf32>
    %86 = arith.truncf %76 : vector<16x128xf32> to vector<16x128xbf16>
    %c1_50 = arith.constant 1 : index
    %c0_51 = arith.constant 0 : index
    %c0_52 = arith.constant 0 : index
    %87 = vector.load %arg3[%c1_50, %c0_51, %c0_52] : memref<8x128x128xbf16, #tpu.memory_space<vmem>>, vector<1x128x128xbf16>
    %88 = vector.shape_cast %87 : vector<1x128x128xbf16> to vector<128x128xbf16>
    %cst_53 = arith.constant dense<0.000000e+00> : vector<16x128xf32>
    %89 = tpu.matmul %86, %88, %cst_53 {dimension_numbers = #tpu.dot_dimension_numbers<[1], [0], [0], [1], [0, 0, 1, 1], [], []>} : vector<16x128xbf16>, vector<128x128xbf16>, vector<16x128xf32> -> vector<16x128xf32>
    %c1_54 = arith.constant 1 : index
    %c0_55 = arith.constant 0 : index
    %c0_56 = arith.constant 0 : index
    %90 = vector.load %arg4[%c1_54, %c0_55, %c0_56] : memref<5x16x128xf32, #tpu.memory_space<vmem>>, vector<1x16x128xf32>
    %91 = vector.shape_cast %90 : vector<1x16x128xf32> to vector<16x128xf32>
    %92 = arith.addf %89, %91 : vector<16x128xf32>
    %93 = arith.addf %85, %92 : vector<16x128xf32>
    %94 = arith.negf %93 : vector<16x128xf32>
    %95 = math.exp %94 : vector<16x128xf32>
    %cst_57 = arith.constant 1.000000e+00 : f32
    %96 = vector.broadcast %cst_57 : f32 to vector<16x128xf32>
    %97 = arith.addf %96, %95 : vector<16x128xf32>
    %98 = arith.divf %96, %97 : vector<16x128xf32>
    %c64_i32_58 = arith.constant 64 : i32
    %99 = tpu.dynamic_rotate %98 by %c64_i32_58 dim 1 : vector<16x128xf32>, i32 -> vector<16x128xf32>
    %100 = arith.mulf %99, %92 : vector<16x128xf32>
    %101 = arith.addf %85, %100 : vector<16x128xf32>
    %102 = math.tanh %101 : vector<16x128xf32>
    %c64_i32_59 = arith.constant 64 : i32
    %103 = tpu.dynamic_rotate %102 by %c64_i32_59 dim 1 : vector<16x128xf32>, i32 -> vector<16x128xf32>
    %c96_i32_60 = arith.constant 96 : i32
    %104 = tpu.dynamic_rotate %98 by %c96_i32_60 dim 1 : vector<16x128xf32>, i32 -> vector<16x128xf32>
    %cst_61 = arith.constant 1.000000e+00 : f32
    %105 = vector.broadcast %cst_61 : f32 to vector<16x128xf32>
    %106 = arith.subf %105, %104 : vector<16x128xf32>
    %107 = arith.mulf %106, %103 : vector<16x128xf32>
    %108 = arith.mulf %104, %76 : vector<16x128xf32>
    %109 = arith.addf %107, %108 : vector<16x128xf32>
    %110 = tpu.iota {dimensions = array<i32: 1>} : vector<16x128xi32>
    %c32_i32_62 = arith.constant 32 : i32
    %111 = vector.broadcast %c32_i32_62 : i32 to vector<16x128xi32>
    %112 = arith.cmpi slt, %110, %111 : vector<16x128xi32>
    %cst_63 = arith.constant 0.000000e+00 : f32
    %113 = vector.broadcast %cst_63 : f32 to vector<16x128xf32>
    %114 = arith.select %112, %109, %113 : vector<16x128xi1>, vector<16x128xf32>
    %c3_i32 = arith.constant 3 : i32
    %115 = arith.index_cast %c3_i32 : i32 to index
    %c0_64 = arith.constant 0 : index
    %c0_65 = arith.constant 0 : index
    %116 = vector.load %arg1[%115, %c0_64, %c0_65] : memref<6x16x128xbf16, #tpu.memory_space<vmem>>, vector<1x16x128xbf16>
    %117 = vector.shape_cast %116 : vector<1x16x128xbf16> to vector<16x128xbf16>
    %c0_66 = arith.constant 0 : index
    %c0_67 = arith.constant 0 : index
    %c0_68 = arith.constant 0 : index
    %118 = vector.load %arg3[%c0_66, %c0_67, %c0_68] : memref<8x128x128xbf16, #tpu.memory_space<vmem>>, vector<1x128x128xbf16>
    %119 = vector.shape_cast %118 : vector<1x128x128xbf16> to vector<128x128xbf16>
    %cst_69 = arith.constant dense<0.000000e+00> : vector<16x128xf32>
    %120 = tpu.matmul %117, %119, %cst_69 {dimension_numbers = #tpu.dot_dimension_numbers<[1], [0], [0], [1], [0, 0, 1, 1], [], []>} : vector<16x128xbf16>, vector<128x128xbf16>, vector<16x128xf32> -> vector<16x128xf32>
    %c0_70 = arith.constant 0 : index
    %c0_71 = arith.constant 0 : index
    %c0_72 = arith.constant 0 : index
    %121 = vector.load %arg4[%c0_70, %c0_71, %c0_72] : memref<5x16x128xf32, #tpu.memory_space<vmem>>, vector<1x16x128xf32>
    %122 = vector.shape_cast %121 : vector<1x16x128xf32> to vector<16x128xf32>
    %123 = arith.addf %120, %122 : vector<16x128xf32>
    %124 = arith.truncf %114 : vector<16x128xf32> to vector<16x128xbf16>
    %c1_73 = arith.constant 1 : index
    %c0_74 = arith.constant 0 : index
    %c0_75 = arith.constant 0 : index
    %125 = vector.load %arg3[%c1_73, %c0_74, %c0_75] : memref<8x128x128xbf16, #tpu.memory_space<vmem>>, vector<1x128x128xbf16>
    %126 = vector.shape_cast %125 : vector<1x128x128xbf16> to vector<128x128xbf16>
    %cst_76 = arith.constant dense<0.000000e+00> : vector<16x128xf32>
    %127 = tpu.matmul %124, %126, %cst_76 {dimension_numbers = #tpu.dot_dimension_numbers<[1], [0], [0], [1], [0, 0, 1, 1], [], []>} : vector<16x128xbf16>, vector<128x128xbf16>, vector<16x128xf32> -> vector<16x128xf32>
    %c1_77 = arith.constant 1 : index
    %c0_78 = arith.constant 0 : index
    %c0_79 = arith.constant 0 : index
    %128 = vector.load %arg4[%c1_77, %c0_78, %c0_79] : memref<5x16x128xf32, #tpu.memory_space<vmem>>, vector<1x16x128xf32>
    %129 = vector.shape_cast %128 : vector<1x16x128xf32> to vector<16x128xf32>
    %130 = arith.addf %127, %129 : vector<16x128xf32>
    %131 = arith.addf %123, %130 : vector<16x128xf32>
    %132 = arith.negf %131 : vector<16x128xf32>
    %133 = math.exp %132 : vector<16x128xf32>
    %cst_80 = arith.constant 1.000000e+00 : f32
    %134 = vector.broadcast %cst_80 : f32 to vector<16x128xf32>
    %135 = arith.addf %134, %133 : vector<16x128xf32>
    %136 = arith.divf %134, %135 : vector<16x128xf32>
    %c64_i32_81 = arith.constant 64 : i32
    %137 = tpu.dynamic_rotate %136 by %c64_i32_81 dim 1 : vector<16x128xf32>, i32 -> vector<16x128xf32>
    %138 = arith.mulf %137, %130 : vector<16x128xf32>
    %139 = arith.addf %123, %138 : vector<16x128xf32>
    %140 = math.tanh %139 : vector<16x128xf32>
    %c64_i32_82 = arith.constant 64 : i32
    %141 = tpu.dynamic_rotate %140 by %c64_i32_82 dim 1 : vector<16x128xf32>, i32 -> vector<16x128xf32>
    %c96_i32_83 = arith.constant 96 : i32
    %142 = tpu.dynamic_rotate %136 by %c96_i32_83 dim 1 : vector<16x128xf32>, i32 -> vector<16x128xf32>
    %cst_84 = arith.constant 1.000000e+00 : f32
    %143 = vector.broadcast %cst_84 : f32 to vector<16x128xf32>
    %144 = arith.subf %143, %142 : vector<16x128xf32>
    %145 = arith.mulf %144, %141 : vector<16x128xf32>
    %146 = arith.mulf %142, %114 : vector<16x128xf32>
    %147 = arith.addf %145, %146 : vector<16x128xf32>
    %148 = tpu.iota {dimensions = array<i32: 1>} : vector<16x128xi32>
    %c32_i32_85 = arith.constant 32 : i32
    %149 = vector.broadcast %c32_i32_85 : i32 to vector<16x128xi32>
    %150 = arith.cmpi slt, %148, %149 : vector<16x128xi32>
    %cst_86 = arith.constant 0.000000e+00 : f32
    %151 = vector.broadcast %cst_86 : f32 to vector<16x128xf32>
    %152 = arith.select %150, %147, %151 : vector<16x128xi1>, vector<16x128xf32>
    %c4_i32 = arith.constant 4 : i32
    %153 = arith.index_cast %c4_i32 : i32 to index
    %c0_87 = arith.constant 0 : index
    %c0_88 = arith.constant 0 : index
    %154 = vector.load %arg1[%153, %c0_87, %c0_88] : memref<6x16x128xbf16, #tpu.memory_space<vmem>>, vector<1x16x128xbf16>
    %155 = vector.shape_cast %154 : vector<1x16x128xbf16> to vector<16x128xbf16>
    %c0_89 = arith.constant 0 : index
    %c0_90 = arith.constant 0 : index
    %c0_91 = arith.constant 0 : index
    %156 = vector.load %arg3[%c0_89, %c0_90, %c0_91] : memref<8x128x128xbf16, #tpu.memory_space<vmem>>, vector<1x128x128xbf16>
    %157 = vector.shape_cast %156 : vector<1x128x128xbf16> to vector<128x128xbf16>
    %cst_92 = arith.constant dense<0.000000e+00> : vector<16x128xf32>
    %158 = tpu.matmul %155, %157, %cst_92 {dimension_numbers = #tpu.dot_dimension_numbers<[1], [0], [0], [1], [0, 0, 1, 1], [], []>} : vector<16x128xbf16>, vector<128x128xbf16>, vector<16x128xf32> -> vector<16x128xf32>
    %c0_93 = arith.constant 0 : index
    %c0_94 = arith.constant 0 : index
    %c0_95 = arith.constant 0 : index
    %159 = vector.load %arg4[%c0_93, %c0_94, %c0_95] : memref<5x16x128xf32, #tpu.memory_space<vmem>>, vector<1x16x128xf32>
    %160 = vector.shape_cast %159 : vector<1x16x128xf32> to vector<16x128xf32>
    %161 = arith.addf %158, %160 : vector<16x128xf32>
    %162 = arith.truncf %152 : vector<16x128xf32> to vector<16x128xbf16>
    %c1_96 = arith.constant 1 : index
    %c0_97 = arith.constant 0 : index
    %c0_98 = arith.constant 0 : index
    %163 = vector.load %arg3[%c1_96, %c0_97, %c0_98] : memref<8x128x128xbf16, #tpu.memory_space<vmem>>, vector<1x128x128xbf16>
    %164 = vector.shape_cast %163 : vector<1x128x128xbf16> to vector<128x128xbf16>
    %cst_99 = arith.constant dense<0.000000e+00> : vector<16x128xf32>
    %165 = tpu.matmul %162, %164, %cst_99 {dimension_numbers = #tpu.dot_dimension_numbers<[1], [0], [0], [1], [0, 0, 1, 1], [], []>} : vector<16x128xbf16>, vector<128x128xbf16>, vector<16x128xf32> -> vector<16x128xf32>
    %c1_100 = arith.constant 1 : index
    %c0_101 = arith.constant 0 : index
    %c0_102 = arith.constant 0 : index
    %166 = vector.load %arg4[%c1_100, %c0_101, %c0_102] : memref<5x16x128xf32, #tpu.memory_space<vmem>>, vector<1x16x128xf32>
    %167 = vector.shape_cast %166 : vector<1x16x128xf32> to vector<16x128xf32>
    %168 = arith.addf %165, %167 : vector<16x128xf32>
    %169 = arith.addf %161, %168 : vector<16x128xf32>
    %170 = arith.negf %169 : vector<16x128xf32>
    %171 = math.exp %170 : vector<16x128xf32>
    %cst_103 = arith.constant 1.000000e+00 : f32
    %172 = vector.broadcast %cst_103 : f32 to vector<16x128xf32>
    %173 = arith.addf %172, %171 : vector<16x128xf32>
    %174 = arith.divf %172, %173 : vector<16x128xf32>
    %c64_i32_104 = arith.constant 64 : i32
    %175 = tpu.dynamic_rotate %174 by %c64_i32_104 dim 1 : vector<16x128xf32>, i32 -> vector<16x128xf32>
    %176 = arith.mulf %175, %168 : vector<16x128xf32>
    %177 = arith.addf %161, %176 : vector<16x128xf32>
    %178 = math.tanh %177 : vector<16x128xf32>
    %c64_i32_105 = arith.constant 64 : i32
    %179 = tpu.dynamic_rotate %178 by %c64_i32_105 dim 1 : vector<16x128xf32>, i32 -> vector<16x128xf32>
    %c96_i32_106 = arith.constant 96 : i32
    %180 = tpu.dynamic_rotate %174 by %c96_i32_106 dim 1 : vector<16x128xf32>, i32 -> vector<16x128xf32>
    %cst_107 = arith.constant 1.000000e+00 : f32
    %181 = vector.broadcast %cst_107 : f32 to vector<16x128xf32>
    %182 = arith.subf %181, %180 : vector<16x128xf32>
    %183 = arith.mulf %182, %179 : vector<16x128xf32>
    %184 = arith.mulf %180, %152 : vector<16x128xf32>
    %185 = arith.addf %183, %184 : vector<16x128xf32>
    %186 = tpu.iota {dimensions = array<i32: 1>} : vector<16x128xi32>
    %c32_i32_108 = arith.constant 32 : i32
    %187 = vector.broadcast %c32_i32_108 : i32 to vector<16x128xi32>
    %188 = arith.cmpi slt, %186, %187 : vector<16x128xi32>
    %cst_109 = arith.constant 0.000000e+00 : f32
    %189 = vector.broadcast %cst_109 : f32 to vector<16x128xf32>
    %190 = arith.select %188, %185, %189 : vector<16x128xi1>, vector<16x128xf32>
    %c5_i32 = arith.constant 5 : i32
    %191 = arith.index_cast %c5_i32 : i32 to index
    %c0_110 = arith.constant 0 : index
    %c0_111 = arith.constant 0 : index
    %192 = vector.load %arg1[%191, %c0_110, %c0_111] : memref<6x16x128xbf16, #tpu.memory_space<vmem>>, vector<1x16x128xbf16>
    %193 = vector.shape_cast %192 : vector<1x16x128xbf16> to vector<16x128xbf16>
    %c0_112 = arith.constant 0 : index
    %c0_113 = arith.constant 0 : index
    %c0_114 = arith.constant 0 : index
    %194 = vector.load %arg3[%c0_112, %c0_113, %c0_114] : memref<8x128x128xbf16, #tpu.memory_space<vmem>>, vector<1x128x128xbf16>
    %195 = vector.shape_cast %194 : vector<1x128x128xbf16> to vector<128x128xbf16>
    %cst_115 = arith.constant dense<0.000000e+00> : vector<16x128xf32>
    %196 = tpu.matmul %193, %195, %cst_115 {dimension_numbers = #tpu.dot_dimension_numbers<[1], [0], [0], [1], [0, 0, 1, 1], [], []>} : vector<16x128xbf16>, vector<128x128xbf16>, vector<16x128xf32> -> vector<16x128xf32>
    %c0_116 = arith.constant 0 : index
    %c0_117 = arith.constant 0 : index
    %c0_118 = arith.constant 0 : index
    %197 = vector.load %arg4[%c0_116, %c0_117, %c0_118] : memref<5x16x128xf32, #tpu.memory_space<vmem>>, vector<1x16x128xf32>
    %198 = vector.shape_cast %197 : vector<1x16x128xf32> to vector<16x128xf32>
    %199 = arith.addf %196, %198 : vector<16x128xf32>
    %200 = arith.truncf %190 : vector<16x128xf32> to vector<16x128xbf16>
    %c1_119 = arith.constant 1 : index
    %c0_120 = arith.constant 0 : index
    %c0_121 = arith.constant 0 : index
    %201 = vector.load %arg3[%c1_119, %c0_120, %c0_121] : memref<8x128x128xbf16, #tpu.memory_space<vmem>>, vector<1x128x128xbf16>
    %202 = vector.shape_cast %201 : vector<1x128x128xbf16> to vector<128x128xbf16>
    %cst_122 = arith.constant dense<0.000000e+00> : vector<16x128xf32>
    %203 = tpu.matmul %200, %202, %cst_122 {dimension_numbers = #tpu.dot_dimension_numbers<[1], [0], [0], [1], [0, 0, 1, 1], [], []>} : vector<16x128xbf16>, vector<128x128xbf16>, vector<16x128xf32> -> vector<16x128xf32>
    %c1_123 = arith.constant 1 : index
    %c0_124 = arith.constant 0 : index
    %c0_125 = arith.constant 0 : index
    %204 = vector.load %arg4[%c1_123, %c0_124, %c0_125] : memref<5x16x128xf32, #tpu.memory_space<vmem>>, vector<1x16x128xf32>
    %205 = vector.shape_cast %204 : vector<1x16x128xf32> to vector<16x128xf32>
    %206 = arith.addf %203, %205 : vector<16x128xf32>
    %207 = arith.addf %199, %206 : vector<16x128xf32>
    %208 = arith.negf %207 : vector<16x128xf32>
    %209 = math.exp %208 : vector<16x128xf32>
    %cst_126 = arith.constant 1.000000e+00 : f32
    %210 = vector.broadcast %cst_126 : f32 to vector<16x128xf32>
    %211 = arith.addf %210, %209 : vector<16x128xf32>
    %212 = arith.divf %210, %211 : vector<16x128xf32>
    %c64_i32_127 = arith.constant 64 : i32
    %213 = tpu.dynamic_rotate %212 by %c64_i32_127 dim 1 : vector<16x128xf32>, i32 -> vector<16x128xf32>
    %214 = arith.mulf %213, %206 : vector<16x128xf32>
    %215 = arith.addf %199, %214 : vector<16x128xf32>
    %216 = math.tanh %215 : vector<16x128xf32>
    %c64_i32_128 = arith.constant 64 : i32
    %217 = tpu.dynamic_rotate %216 by %c64_i32_128 dim 1 : vector<16x128xf32>, i32 -> vector<16x128xf32>
    %c96_i32_129 = arith.constant 96 : i32
    %218 = tpu.dynamic_rotate %212 by %c96_i32_129 dim 1 : vector<16x128xf32>, i32 -> vector<16x128xf32>
    %cst_130 = arith.constant 1.000000e+00 : f32
    %219 = vector.broadcast %cst_130 : f32 to vector<16x128xf32>
    %220 = arith.subf %219, %218 : vector<16x128xf32>
    %221 = arith.mulf %220, %217 : vector<16x128xf32>
    %222 = arith.mulf %218, %190 : vector<16x128xf32>
    %223 = arith.addf %221, %222 : vector<16x128xf32>
    %224 = tpu.iota {dimensions = array<i32: 1>} : vector<16x128xi32>
    %c32_i32_131 = arith.constant 32 : i32
    %225 = vector.broadcast %c32_i32_131 : i32 to vector<16x128xi32>
    %226 = arith.cmpi slt, %224, %225 : vector<16x128xi32>
    %cst_132 = arith.constant 0.000000e+00 : f32
    %227 = vector.broadcast %cst_132 : f32 to vector<16x128xf32>
    %228 = arith.select %226, %223, %227 : vector<16x128xi1>, vector<16x128xf32>
    %c6_i32 = arith.constant 6 : i32
    %229 = arith.truncf %228 : vector<16x128xf32> to vector<16x128xbf16>
    %c3 = arith.constant 3 : index
    %c0_133 = arith.constant 0 : index
    %c0_134 = arith.constant 0 : index
    %230 = vector.load %arg3[%c3, %c0_133, %c0_134] : memref<8x128x128xbf16, #tpu.memory_space<vmem>>, vector<1x128x128xbf16>
    %231 = vector.shape_cast %230 : vector<1x128x128xbf16> to vector<128x128xbf16>
    %cst_135 = arith.constant dense<0.000000e+00> : vector<16x128xf32>
    %232 = tpu.matmul %229, %231, %cst_135 {dimension_numbers = #tpu.dot_dimension_numbers<[1], [0], [0], [1], [0, 0, 1, 1], [], []>} : vector<16x128xbf16>, vector<128x128xbf16>, vector<16x128xf32> -> vector<16x128xf32>
    %c2 = arith.constant 2 : index
    %c0_136 = arith.constant 0 : index
    %c0_137 = arith.constant 0 : index
    %233 = vector.load %arg4[%c2, %c0_136, %c0_137] : memref<5x16x128xf32, #tpu.memory_space<vmem>>, vector<1x16x128xf32>
    %234 = vector.shape_cast %233 : vector<1x16x128xf32> to vector<16x128xf32>
    %235 = arith.addf %232, %234 : vector<16x128xf32>
    %c6 = arith.constant 6 : index
    %c0_138 = arith.constant 0 : index
    %c0_139 = arith.constant 0 : index
    %236 = vector.load %arg3[%c6, %c0_138, %c0_139] : memref<8x128x128xbf16, #tpu.memory_space<vmem>>, vector<1x128x128xbf16>
    %237 = vector.shape_cast %236 : vector<1x128x128xbf16> to vector<128x128xbf16>
    %cst_140 = arith.constant dense<0.000000e+00> : vector<16x128xf32>
    %238 = tpu.matmul %229, %237, %cst_140 {dimension_numbers = #tpu.dot_dimension_numbers<[1], [0], [0], [1], [0, 0, 1, 1], [], []>} : vector<16x128xbf16>, vector<128x128xbf16>, vector<16x128xf32> -> vector<16x128xf32>
    %c4 = arith.constant 4 : index
    %c0_141 = arith.constant 0 : index
    %c0_142 = arith.constant 0 : index
    %239 = vector.load %arg4[%c4, %c0_141, %c0_142] : memref<5x16x128xf32, #tpu.memory_space<vmem>>, vector<1x16x128xf32>
    %240 = vector.shape_cast %239 : vector<1x16x128xf32> to vector<16x128xf32>
    %241 = arith.addf %238, %240 : vector<16x128xf32>
    %cst_143 = arith.constant 0.000000e+00 : f32
    %242 = vector.broadcast %cst_143 : f32 to vector<16x128xf32>
    %c0_144 = arith.constant 0 : index
    %c0_145 = arith.constant 0 : index
    %c0_146 = arith.constant 0 : index
    %243 = vector.load %arg5[%c0_144, %c0_145, %c0_146] : memref<8x16x128xf32, #tpu.memory_space<vmem>>, vector<1x16x128xf32>
    %244 = vector.shape_cast %243 : vector<1x16x128xf32> to vector<16x128xf32>
    %245 = vector.shape_cast %242 : vector<16x128xf32> to vector<1x16x128xf32>
    tpu.vector_store %arg5[%c0_144, %c0_145, %c0_146], %245 {strides = array<i32>} : memref<8x16x128xf32, #tpu.memory_space<vmem>>, vector<1x16x128xf32>,
    %c0_147 = arith.constant 0 : index
    %c0_148 = arith.constant 0 : index
    %c0_149 = arith.constant 0 : index
    %246 = vector.load %arg2[%c0_147, %c0_148, %c0_149] : memref<8x16x128xbf16, #tpu.memory_space<vmem>>, vector<1x16x128xbf16>
    %247 = vector.shape_cast %246 : vector<1x16x128xbf16> to vector<16x128xbf16>
    %c0_150 = arith.constant 0 : index
    %c0_151 = arith.constant 0 : index
    %248 = vector.load %arg6[%c0_150, %c0_151] : memref<16x128xbf16, #tpu.memory_space<vmem>>, vector<16x128xbf16>
    tpu.vector_store %arg6[%c0_150, %c0_151], %247 {strides = array<i32>} : memref<16x128xbf16, #tpu.memory_space<vmem>>, vector<16x128xbf16>,
    %c1_i32_152 = arith.constant 1 : i32
    %c0_153 = arith.constant 0 : index
    %c0_154 = arith.constant 0 : index
    %249 = vector.load %arg6[%c0_153, %c0_154] : memref<16x128xbf16, #tpu.memory_space<vmem>>, vector<16x128xbf16>
    %c2_155 = arith.constant 2 : index
    %c0_156 = arith.constant 0 : index
    %c0_157 = arith.constant 0 : index
    %250 = vector.load %arg3[%c2_155, %c0_156, %c0_157] : memref<8x128x128xbf16, #tpu.memory_space<vmem>>, vector<1x128x128xbf16>
    %251 = vector.shape_cast %250 : vector<1x128x128xbf16> to vector<128x128xbf16>
    %cst_158 = arith.constant dense<0.000000e+00> : vector<16x128xf32>
    %252 = tpu.matmul %249, %251, %cst_158 {dimension_numbers = #tpu.dot_dimension_numbers<[1], [0], [0], [1], [0, 0, 1, 1], [], []>} : vector<16x128xbf16>, vector<128x128xbf16>, vector<16x128xf32> -> vector<16x128xf32>
    %253 = arith.addf %252, %235 : vector<16x128xf32>
    %254 = arith.truncf %228 : vector<16x128xf32> to vector<16x128xbf16>
    %c4_159 = arith.constant 4 : index
    %c0_160 = arith.constant 0 : index
    %c0_161 = arith.constant 0 : index
    %255 = vector.load %arg3[%c4_159, %c0_160, %c0_161] : memref<8x128x128xbf16, #tpu.memory_space<vmem>>, vector<1x128x128xbf16>
    %256 = vector.shape_cast %255 : vector<1x128x128xbf16> to vector<128x128xbf16>
    %cst_162 = arith.constant dense<0.000000e+00> : vector<16x128xf32>
    %257 = tpu.matmul %254, %256, %cst_162 {dimension_numbers = #tpu.dot_dimension_numbers<[1], [0], [0], [1], [0, 0, 1, 1], [], []>} : vector<16x128xbf16>, vector<128x128xbf16>, vector<16x128xf32> -> vector<16x128xf32>
    %c3_163 = arith.constant 3 : index
    %c0_164 = arith.constant 0 : index
    %c0_165 = arith.constant 0 : index
    %258 = vector.load %arg4[%c3_163, %c0_164, %c0_165] : memref<5x16x128xf32, #tpu.memory_space<vmem>>, vector<1x16x128xf32>
    %259 = vector.shape_cast %258 : vector<1x16x128xf32> to vector<16x128xf32>
    %260 = arith.addf %257, %259 : vector<16x128xf32>
    %261 = arith.addf %253, %260 : vector<16x128xf32>
    %262 = arith.negf %261 : vector<16x128xf32>
    %263 = math.exp %262 : vector<16x128xf32>
    %cst_166 = arith.constant 1.000000e+00 : f32
    %264 = vector.broadcast %cst_166 : f32 to vector<16x128xf32>
    %265 = arith.addf %264, %263 : vector<16x128xf32>
    %266 = arith.divf %264, %265 : vector<16x128xf32>
    %c64_i32_167 = arith.constant 64 : i32
    %267 = tpu.dynamic_rotate %266 by %c64_i32_167 dim 1 : vector<16x128xf32>, i32 -> vector<16x128xf32>
    %268 = arith.mulf %267, %260 : vector<16x128xf32>
    %269 = arith.addf %253, %268 : vector<16x128xf32>
    %270 = math.tanh %269 : vector<16x128xf32>
    %c64_i32_168 = arith.constant 64 : i32
    %271 = tpu.dynamic_rotate %270 by %c64_i32_168 dim 1 : vector<16x128xf32>, i32 -> vector<16x128xf32>
    %c96_i32_169 = arith.constant 96 : i32
    %272 = tpu.dynamic_rotate %266 by %c96_i32_169 dim 1 : vector<16x128xf32>, i32 -> vector<16x128xf32>
    %cst_170 = arith.constant 1.000000e+00 : f32
    %273 = vector.broadcast %cst_170 : f32 to vector<16x128xf32>
    %274 = arith.subf %273, %272 : vector<16x128xf32>
    %275 = arith.mulf %274, %271 : vector<16x128xf32>
    %276 = arith.mulf %272, %228 : vector<16x128xf32>
    %277 = arith.addf %275, %276 : vector<16x128xf32>
    %278 = tpu.iota {dimensions = array<i32: 1>} : vector<16x128xi32>
    %c32_i32_171 = arith.constant 32 : i32
    %279 = vector.broadcast %c32_i32_171 : i32 to vector<16x128xi32>
    %280 = arith.cmpi slt, %278, %279 : vector<16x128xi32>
    %cst_172 = arith.constant 0.000000e+00 : f32
    %281 = vector.broadcast %cst_172 : f32 to vector<16x128xf32>
    %282 = arith.select %280, %277, %281 : vector<16x128xi1>, vector<16x128xf32>
    %c5 = arith.constant 5 : index
    %c0_173 = arith.constant 0 : index
    %c0_174 = arith.constant 0 : index
    %283 = vector.load %arg3[%c5, %c0_173, %c0_174] : memref<8x128x128xbf16, #tpu.memory_space<vmem>>, vector<1x128x128xbf16>
    %284 = vector.shape_cast %283 : vector<1x128x128xbf16> to vector<128x128xbf16>
    %cst_175 = arith.constant dense<0.000000e+00> : vector<16x128xf32>
    %285 = tpu.matmul %249, %284, %cst_175 {dimension_numbers = #tpu.dot_dimension_numbers<[1], [0], [0], [1], [0, 0, 1, 1], [], []>} : vector<16x128xbf16>, vector<128x128xbf16>, vector<16x128xf32> -> vector<16x128xf32>
    %286 = arith.truncf %282 : vector<16x128xf32> to vector<16x128xbf16>
    %c7 = arith.constant 7 : index
    %c0_176 = arith.constant 0 : index
    %c0_177 = arith.constant 0 : index
    %287 = vector.load %arg3[%c7, %c0_176, %c0_177] : memref<8x128x128xbf16, #tpu.memory_space<vmem>>, vector<1x128x128xbf16>
    %288 = vector.shape_cast %287 : vector<1x128x128xbf16> to vector<128x128xbf16>
    %cst_178 = arith.constant dense<0.000000e+00> : vector<16x128xf32>
    %289 = tpu.matmul %286, %288, %cst_178 {dimension_numbers = #tpu.dot_dimension_numbers<[1], [0], [0], [1], [0, 0, 1, 1], [], []>} : vector<16x128xbf16>, vector<128x128xbf16>, vector<16x128xf32> -> vector<16x128xf32>
    %290 = arith.addf %285, %289 : vector<16x128xf32>
    %291 = arith.addf %290, %241 : vector<16x128xf32>
    %292 = arith.index_cast %c1_i32_152 : i32 to index
    %c0_179 = arith.constant 0 : index
    %c0_180 = arith.constant 0 : index
    %293 = vector.load %arg5[%292, %c0_179, %c0_180] : memref<8x16x128xf32, #tpu.memory_space<vmem>>, vector<1x16x128xf32>
    %294 = vector.shape_cast %293 : vector<1x16x128xf32> to vector<16x128xf32>
    %295 = vector.shape_cast %291 : vector<16x128xf32> to vector<1x16x128xf32>
    tpu.vector_store %arg5[%292, %c0_179, %c0_180], %295 {strides = array<i32>} : memref<8x16x128xf32, #tpu.memory_space<vmem>>, vector<1x16x128xf32>,
    %296 = arith.index_cast %c1_i32_152 : i32 to index
    %297 = memref.load %arg0[%296] : memref<8xi32, #tpu.memory_space<smem>>
    %c1_i32_181 = arith.constant 1 : i32
    %298 = arith.cmpi eq, %297, %c1_i32_181 : i32
    %299 = arith.extui %298 : i1 to i32
    %c0_i32_182 = arith.constant 0 : i32
    %300 = arith.cmpi ne, %299, %c0_i32_182 : i32
    scf.if %300 {
      %634 = arith.index_cast %c1_i32_152 : i32 to index
      %c0_395 = arith.constant 0 : index
      %c0_396 = arith.constant 0 : index
      %635 = vector.load %arg2[%634, %c0_395, %c0_396] : memref<8x16x128xbf16, #tpu.memory_space<vmem>>, vector<1x16x128xbf16>
      %636 = vector.shape_cast %635 : vector<1x16x128xbf16> to vector<16x128xbf16>
      %c0_397 = arith.constant 0 : index
      %c0_398 = arith.constant 0 : index
      %637 = vector.load %arg6[%c0_397, %c0_398] : memref<16x128xbf16, #tpu.memory_space<vmem>>, vector<16x128xbf16>
      tpu.vector_store %arg6[%c0_397, %c0_398], %636 {strides = array<i32>} : memref<16x128xbf16, #tpu.memory_space<vmem>>, vector<16x128xbf16>,
    } else {
    }
    %c0_i32_183 = arith.constant 0 : i32
    %301 = arith.cmpi eq, %297, %c0_i32_183 : i32
    %302 = arith.extui %301 : i1 to i32
    %c0_i32_184 = arith.constant 0 : i32
    %303 = arith.cmpi ne, %302, %c0_i32_184 : i32
    scf.if %303 {
      %634 = tpu.iota {dimensions = array<i32: 1>} : vector<16x128xi32>
      %635 = arith.sitofp %634 : vector<16x128xi32> to vector<16x128xf32>
      %cst_395 = arith.constant 3.200000e+01 : f32
      %636 = vector.broadcast %cst_395 : f32 to vector<16x128xf32>
      %637 = arith.cmpf olt, %635, %636 : vector<16x128xf32>
      %cst_396 = arith.constant -1.000000e+30 : f32
      %638 = vector.broadcast %cst_396 : f32 to vector<16x128xf32>
      %639 = arith.select %637, %291, %638 : vector<16x128xi1>, vector<16x128xf32>
      %cst_397 = arith.constant dense<0xFF800000> : vector<16xf32>
      %640 = vector.multi_reduction <maximumf>, %639, %cst_397 [1] : vector<16x128xf32> to vector<16xf32>
      %641 = vector.shape_cast %640 : vector<16xf32> to vector<16x1xf32>
      %642 = vector.broadcast %641 : vector<16x1xf32> to vector<16x128xf32>
      %643 = arith.cmpf oeq, %639, %642 : vector<16x128xf32>
      %cst_398 = arith.constant 1.280000e+02 : f32
      %644 = vector.broadcast %cst_398 : f32 to vector<16x128xf32>
      %645 = arith.select %643, %635, %644 : vector<16x128xi1>, vector<16x128xf32>
      %cst_399 = arith.constant dense<0x7F800000> : vector<16xf32>
      %646 = vector.multi_reduction <minimumf>, %645, %cst_399 [1] : vector<16x128xf32> to vector<16xf32>
      %647 = vector.shape_cast %646 : vector<16xf32> to vector<16x1xf32>
      %648 = vector.broadcast %647 : vector<16x1xf32> to vector<16x128xf32>
      %649 = arith.cmpf oeq, %635, %648 : vector<16x128xf32>
      %650 = arith.extui %649 : vector<16x128xi1> to vector<16x128xi32>
      %651 = arith.sitofp %650 : vector<16x128xi32> to vector<16x128xf32>
      %652 = arith.truncf %651 : vector<16x128xf32> to vector<16x128xbf16>
      %c0_400 = arith.constant 0 : index
      %c0_401 = arith.constant 0 : index
      %653 = vector.load %arg6[%c0_400, %c0_401] : memref<16x128xbf16, #tpu.memory_space<vmem>>, vector<16x128xbf16>
      tpu.vector_store %arg6[%c0_400, %c0_401], %652 {strides = array<i32>} : memref<16x128xbf16, #tpu.memory_space<vmem>>, vector<16x128xbf16>,
    } else {
    }
    %c2_i32_185 = arith.constant 2 : i32
    %c0_186 = arith.constant 0 : index
    %c0_187 = arith.constant 0 : index
    %304 = vector.load %arg6[%c0_186, %c0_187] : memref<16x128xbf16, #tpu.memory_space<vmem>>, vector<16x128xbf16>
    %c2_188 = arith.constant 2 : index
    %c0_189 = arith.constant 0 : index
    %c0_190 = arith.constant 0 : index
    %305 = vector.load %arg3[%c2_188, %c0_189, %c0_190] : memref<8x128x128xbf16, #tpu.memory_space<vmem>>, vector<1x128x128xbf16>
    %306 = vector.shape_cast %305 : vector<1x128x128xbf16> to vector<128x128xbf16>
    %cst_191 = arith.constant dense<0.000000e+00> : vector<16x128xf32>
    %307 = tpu.matmul %304, %306, %cst_191 {dimension_numbers = #tpu.dot_dimension_numbers<[1], [0], [0], [1], [0, 0, 1, 1], [], []>} : vector<16x128xbf16>, vector<128x128xbf16>, vector<16x128xf32> -> vector<16x128xf32>
    %308 = arith.addf %307, %235 : vector<16x128xf32>
    %309 = arith.truncf %282 : vector<16x128xf32> to vector<16x128xbf16>
    %c4_192 = arith.constant 4 : index
    %c0_193 = arith.constant 0 : index
    %c0_194 = arith.constant 0 : index
    %310 = vector.load %arg3[%c4_192, %c0_193, %c0_194] : memref<8x128x128xbf16, #tpu.memory_space<vmem>>, vector<1x128x128xbf16>
    %311 = vector.shape_cast %310 : vector<1x128x128xbf16> to vector<128x128xbf16>
    %cst_195 = arith.constant dense<0.000000e+00> : vector<16x128xf32>
    %312 = tpu.matmul %309, %311, %cst_195 {dimension_numbers = #tpu.dot_dimension_numbers<[1], [0], [0], [1], [0, 0, 1, 1], [], []>} : vector<16x128xbf16>, vector<128x128xbf16>, vector<16x128xf32> -> vector<16x128xf32>
    %c3_196 = arith.constant 3 : index
    %c0_197 = arith.constant 0 : index
    %c0_198 = arith.constant 0 : index
    %313 = vector.load %arg4[%c3_196, %c0_197, %c0_198] : memref<5x16x128xf32, #tpu.memory_space<vmem>>, vector<1x16x128xf32>
    %314 = vector.shape_cast %313 : vector<1x16x128xf32> to vector<16x128xf32>
    %315 = arith.addf %312, %314 : vector<16x128xf32>
    %316 = arith.addf %308, %315 : vector<16x128xf32>
    %317 = arith.negf %316 : vector<16x128xf32>
    %318 = math.exp %317 : vector<16x128xf32>
    %cst_199 = arith.constant 1.000000e+00 : f32
    %319 = vector.broadcast %cst_199 : f32 to vector<16x128xf32>
    %320 = arith.addf %319, %318 : vector<16x128xf32>
    %321 = arith.divf %319, %320 : vector<16x128xf32>
    %c64_i32_200 = arith.constant 64 : i32
    %322 = tpu.dynamic_rotate %321 by %c64_i32_200 dim 1 : vector<16x128xf32>, i32 -> vector<16x128xf32>
    %323 = arith.mulf %322, %315 : vector<16x128xf32>
    %324 = arith.addf %308, %323 : vector<16x128xf32>
    %325 = math.tanh %324 : vector<16x128xf32>
    %c64_i32_201 = arith.constant 64 : i32
    %326 = tpu.dynamic_rotate %325 by %c64_i32_201 dim 1 : vector<16x128xf32>, i32 -> vector<16x128xf32>
    %c96_i32_202 = arith.constant 96 : i32
    %327 = tpu.dynamic_rotate %321 by %c96_i32_202 dim 1 : vector<16x128xf32>, i32 -> vector<16x128xf32>
    %cst_203 = arith.constant 1.000000e+00 : f32
    %328 = vector.broadcast %cst_203 : f32 to vector<16x128xf32>
    %329 = arith.subf %328, %327 : vector<16x128xf32>
    %330 = arith.mulf %329, %326 : vector<16x128xf32>
    %331 = arith.mulf %327, %282 : vector<16x128xf32>
    %332 = arith.addf %330, %331 : vector<16x128xf32>
    %333 = tpu.iota {dimensions = array<i32: 1>} : vector<16x128xi32>
    %c32_i32_204 = arith.constant 32 : i32
    %334 = vector.broadcast %c32_i32_204 : i32 to vector<16x128xi32>
    %335 = arith.cmpi slt, %333, %334 : vector<16x128xi32>
    %cst_205 = arith.constant 0.000000e+00 : f32
    %336 = vector.broadcast %cst_205 : f32 to vector<16x128xf32>
    %337 = arith.select %335, %332, %336 : vector<16x128xi1>, vector<16x128xf32>
    %c5_206 = arith.constant 5 : index
    %c0_207 = arith.constant 0 : index
    %c0_208 = arith.constant 0 : index
    %338 = vector.load %arg3[%c5_206, %c0_207, %c0_208] : memref<8x128x128xbf16, #tpu.memory_space<vmem>>, vector<1x128x128xbf16>
    %339 = vector.shape_cast %338 : vector<1x128x128xbf16> to vector<128x128xbf16>
    %cst_209 = arith.constant dense<0.000000e+00> : vector<16x128xf32>
    %340 = tpu.matmul %304, %339, %cst_209 {dimension_numbers = #tpu.dot_dimension_numbers<[1], [0], [0], [1], [0, 0, 1, 1], [], []>} : vector<16x128xbf16>, vector<128x128xbf16>, vector<16x128xf32> -> vector<16x128xf32>
    %341 = arith.truncf %337 : vector<16x128xf32> to vector<16x128xbf16>
    %c7_210 = arith.constant 7 : index
    %c0_211 = arith.constant 0 : index
    %c0_212 = arith.constant 0 : index
    %342 = vector.load %arg3[%c7_210, %c0_211, %c0_212] : memref<8x128x128xbf16, #tpu.memory_space<vmem>>, vector<1x128x128xbf16>
    %343 = vector.shape_cast %342 : vector<1x128x128xbf16> to vector<128x128xbf16>
    %cst_213 = arith.constant dense<0.000000e+00> : vector<16x128xf32>
    %344 = tpu.matmul %341, %343, %cst_213 {dimension_numbers = #tpu.dot_dimension_numbers<[1], [0], [0], [1], [0, 0, 1, 1], [], []>} : vector<16x128xbf16>, vector<128x128xbf16>, vector<16x128xf32> -> vector<16x128xf32>
    %345 = arith.addf %340, %344 : vector<16x128xf32>
    %346 = arith.addf %345, %241 : vector<16x128xf32>
    %347 = arith.index_cast %c2_i32_185 : i32 to index
    %c0_214 = arith.constant 0 : index
    %c0_215 = arith.constant 0 : index
    %348 = vector.load %arg5[%347, %c0_214, %c0_215] : memref<8x16x128xf32, #tpu.memory_space<vmem>>, vector<1x16x128xf32>
    %349 = vector.shape_cast %348 : vector<1x16x128xf32> to vector<16x128xf32>
    %350 = vector.shape_cast %346 : vector<16x128xf32> to vector<1x16x128xf32>
    tpu.vector_store %arg5[%347, %c0_214, %c0_215], %350 {strides = array<i32>} : memref<8x16x128xf32, #tpu.memory_space<vmem>>, vector<1x16x128xf32>,
    %351 = arith.index_cast %c2_i32_185 : i32 to index
    %352 = memref.load %arg0[%351] : memref<8xi32, #tpu.memory_space<smem>>
    %c1_i32_216 = arith.constant 1 : i32
    %353 = arith.cmpi eq, %352, %c1_i32_216 : i32
    %354 = arith.extui %353 : i1 to i32
    %c0_i32_217 = arith.constant 0 : i32
    %355 = arith.cmpi ne, %354, %c0_i32_217 : i32
    scf.if %355 {
      %634 = arith.index_cast %c2_i32_185 : i32 to index
      %c0_395 = arith.constant 0 : index
      %c0_396 = arith.constant 0 : index
      %635 = vector.load %arg2[%634, %c0_395, %c0_396] : memref<8x16x128xbf16, #tpu.memory_space<vmem>>, vector<1x16x128xbf16>
      %636 = vector.shape_cast %635 : vector<1x16x128xbf16> to vector<16x128xbf16>
      %c0_397 = arith.constant 0 : index
      %c0_398 = arith.constant 0 : index
      %637 = vector.load %arg6[%c0_397, %c0_398] : memref<16x128xbf16, #tpu.memory_space<vmem>>, vector<16x128xbf16>
      tpu.vector_store %arg6[%c0_397, %c0_398], %636 {strides = array<i32>} : memref<16x128xbf16, #tpu.memory_space<vmem>>, vector<16x128xbf16>,
    } else {
    }
    %c0_i32_218 = arith.constant 0 : i32
    %356 = arith.cmpi eq, %352, %c0_i32_218 : i32
    %357 = arith.extui %356 : i1 to i32
    %c0_i32_219 = arith.constant 0 : i32
    %358 = arith.cmpi ne, %357, %c0_i32_219 : i32
    scf.if %358 {
      %634 = tpu.iota {dimensions = array<i32: 1>} : vector<16x128xi32>
      %635 = arith.sitofp %634 : vector<16x128xi32> to vector<16x128xf32>
      %cst_395 = arith.constant 3.200000e+01 : f32
      %636 = vector.broadcast %cst_395 : f32 to vector<16x128xf32>
      %637 = arith.cmpf olt, %635, %636 : vector<16x128xf32>
      %cst_396 = arith.constant -1.000000e+30 : f32
      %638 = vector.broadcast %cst_396 : f32 to vector<16x128xf32>
      %639 = arith.select %637, %346, %638 : vector<16x128xi1>, vector<16x128xf32>
      %cst_397 = arith.constant dense<0xFF800000> : vector<16xf32>
      %640 = vector.multi_reduction <maximumf>, %639, %cst_397 [1] : vector<16x128xf32> to vector<16xf32>
      %641 = vector.shape_cast %640 : vector<16xf32> to vector<16x1xf32>
      %642 = vector.broadcast %641 : vector<16x1xf32> to vector<16x128xf32>
      %643 = arith.cmpf oeq, %639, %642 : vector<16x128xf32>
      %cst_398 = arith.constant 1.280000e+02 : f32
      %644 = vector.broadcast %cst_398 : f32 to vector<16x128xf32>
      %645 = arith.select %643, %635, %644 : vector<16x128xi1>, vector<16x128xf32>
      %cst_399 = arith.constant dense<0x7F800000> : vector<16xf32>
      %646 = vector.multi_reduction <minimumf>, %645, %cst_399 [1] : vector<16x128xf32> to vector<16xf32>
      %647 = vector.shape_cast %646 : vector<16xf32> to vector<16x1xf32>
      %648 = vector.broadcast %647 : vector<16x1xf32> to vector<16x128xf32>
      %649 = arith.cmpf oeq, %635, %648 : vector<16x128xf32>
      %650 = arith.extui %649 : vector<16x128xi1> to vector<16x128xi32>
      %651 = arith.sitofp %650 : vector<16x128xi32> to vector<16x128xf32>
      %652 = arith.truncf %651 : vector<16x128xf32> to vector<16x128xbf16>
      %c0_400 = arith.constant 0 : index
      %c0_401 = arith.constant 0 : index
      %653 = vector.load %arg6[%c0_400, %c0_401] : memref<16x128xbf16, #tpu.memory_space<vmem>>, vector<16x128xbf16>
      tpu.vector_store %arg6[%c0_400, %c0_401], %652 {strides = array<i32>} : memref<16x128xbf16, #tpu.memory_space<vmem>>, vector<16x128xbf16>,
    } else {
    }
    %c3_i32_220 = arith.constant 3 : i32
    %c0_221 = arith.constant 0 : index
    %c0_222 = arith.constant 0 : index
    %359 = vector.load %arg6[%c0_221, %c0_222] : memref<16x128xbf16, #tpu.memory_space<vmem>>, vector<16x128xbf16>
    %c2_223 = arith.constant 2 : index
    %c0_224 = arith.constant 0 : index
    %c0_225 = arith.constant 0 : index
    %360 = vector.load %arg3[%c2_223, %c0_224, %c0_225] : memref<8x128x128xbf16, #tpu.memory_space<vmem>>, vector<1x128x128xbf16>
    %361 = vector.shape_cast %360 : vector<1x128x128xbf16> to vector<128x128xbf16>
    %cst_226 = arith.constant dense<0.000000e+00> : vector<16x128xf32>
    %362 = tpu.matmul %359, %361, %cst_226 {dimension_numbers = #tpu.dot_dimension_numbers<[1], [0], [0], [1], [0, 0, 1, 1], [], []>} : vector<16x128xbf16>, vector<128x128xbf16>, vector<16x128xf32> -> vector<16x128xf32>
    %363 = arith.addf %362, %235 : vector<16x128xf32>
    %364 = arith.truncf %337 : vector<16x128xf32> to vector<16x128xbf16>
    %c4_227 = arith.constant 4 : index
    %c0_228 = arith.constant 0 : index
    %c0_229 = arith.constant 0 : index
    %365 = vector.load %arg3[%c4_227, %c0_228, %c0_229] : memref<8x128x128xbf16, #tpu.memory_space<vmem>>, vector<1x128x128xbf16>
    %366 = vector.shape_cast %365 : vector<1x128x128xbf16> to vector<128x128xbf16>
    %cst_230 = arith.constant dense<0.000000e+00> : vector<16x128xf32>
    %367 = tpu.matmul %364, %366, %cst_230 {dimension_numbers = #tpu.dot_dimension_numbers<[1], [0], [0], [1], [0, 0, 1, 1], [], []>} : vector<16x128xbf16>, vector<128x128xbf16>, vector<16x128xf32> -> vector<16x128xf32>
    %c3_231 = arith.constant 3 : index
    %c0_232 = arith.constant 0 : index
    %c0_233 = arith.constant 0 : index
    %368 = vector.load %arg4[%c3_231, %c0_232, %c0_233] : memref<5x16x128xf32, #tpu.memory_space<vmem>>, vector<1x16x128xf32>
    %369 = vector.shape_cast %368 : vector<1x16x128xf32> to vector<16x128xf32>
    %370 = arith.addf %367, %369 : vector<16x128xf32>
    %371 = arith.addf %363, %370 : vector<16x128xf32>
    %372 = arith.negf %371 : vector<16x128xf32>
    %373 = math.exp %372 : vector<16x128xf32>
    %cst_234 = arith.constant 1.000000e+00 : f32
    %374 = vector.broadcast %cst_234 : f32 to vector<16x128xf32>
    %375 = arith.addf %374, %373 : vector<16x128xf32>
    %376 = arith.divf %374, %375 : vector<16x128xf32>
    %c64_i32_235 = arith.constant 64 : i32
    %377 = tpu.dynamic_rotate %376 by %c64_i32_235 dim 1 : vector<16x128xf32>, i32 -> vector<16x128xf32>
    %378 = arith.mulf %377, %370 : vector<16x128xf32>
    %379 = arith.addf %363, %378 : vector<16x128xf32>
    %380 = math.tanh %379 : vector<16x128xf32>
    %c64_i32_236 = arith.constant 64 : i32
    %381 = tpu.dynamic_rotate %380 by %c64_i32_236 dim 1 : vector<16x128xf32>, i32 -> vector<16x128xf32>
    %c96_i32_237 = arith.constant 96 : i32
    %382 = tpu.dynamic_rotate %376 by %c96_i32_237 dim 1 : vector<16x128xf32>, i32 -> vector<16x128xf32>
    %cst_238 = arith.constant 1.000000e+00 : f32
    %383 = vector.broadcast %cst_238 : f32 to vector<16x128xf32>
    %384 = arith.subf %383, %382 : vector<16x128xf32>
    %385 = arith.mulf %384, %381 : vector<16x128xf32>
    %386 = arith.mulf %382, %337 : vector<16x128xf32>
    %387 = arith.addf %385, %386 : vector<16x128xf32>
    %388 = tpu.iota {dimensions = array<i32: 1>} : vector<16x128xi32>
    %c32_i32_239 = arith.constant 32 : i32
    %389 = vector.broadcast %c32_i32_239 : i32 to vector<16x128xi32>
    %390 = arith.cmpi slt, %388, %389 : vector<16x128xi32>
    %cst_240 = arith.constant 0.000000e+00 : f32
    %391 = vector.broadcast %cst_240 : f32 to vector<16x128xf32>
    %392 = arith.select %390, %387, %391 : vector<16x128xi1>, vector<16x128xf32>
    %c5_241 = arith.constant 5 : index
    %c0_242 = arith.constant 0 : index
    %c0_243 = arith.constant 0 : index
    %393 = vector.load %arg3[%c5_241, %c0_242, %c0_243] : memref<8x128x128xbf16, #tpu.memory_space<vmem>>, vector<1x128x128xbf16>
    %394 = vector.shape_cast %393 : vector<1x128x128xbf16> to vector<128x128xbf16>
    %cst_244 = arith.constant dense<0.000000e+00> : vector<16x128xf32>
    %395 = tpu.matmul %359, %394, %cst_244 {dimension_numbers = #tpu.dot_dimension_numbers<[1], [0], [0], [1], [0, 0, 1, 1], [], []>} : vector<16x128xbf16>, vector<128x128xbf16>, vector<16x128xf32> -> vector<16x128xf32>
    %396 = arith.truncf %392 : vector<16x128xf32> to vector<16x128xbf16>
    %c7_245 = arith.constant 7 : index
    %c0_246 = arith.constant 0 : index
    %c0_247 = arith.constant 0 : index
    %397 = vector.load %arg3[%c7_245, %c0_246, %c0_247] : memref<8x128x128xbf16, #tpu.memory_space<vmem>>, vector<1x128x128xbf16>
    %398 = vector.shape_cast %397 : vector<1x128x128xbf16> to vector<128x128xbf16>
    %cst_248 = arith.constant dense<0.000000e+00> : vector<16x128xf32>
    %399 = tpu.matmul %396, %398, %cst_248 {dimension_numbers = #tpu.dot_dimension_numbers<[1], [0], [0], [1], [0, 0, 1, 1], [], []>} : vector<16x128xbf16>, vector<128x128xbf16>, vector<16x128xf32> -> vector<16x128xf32>
    %400 = arith.addf %395, %399 : vector<16x128xf32>
    %401 = arith.addf %400, %241 : vector<16x128xf32>
    %402 = arith.index_cast %c3_i32_220 : i32 to index
    %c0_249 = arith.constant 0 : index
    %c0_250 = arith.constant 0 : index
    %403 = vector.load %arg5[%402, %c0_249, %c0_250] : memref<8x16x128xf32, #tpu.memory_space<vmem>>, vector<1x16x128xf32>
    %404 = vector.shape_cast %403 : vector<1x16x128xf32> to vector<16x128xf32>
    %405 = vector.shape_cast %401 : vector<16x128xf32> to vector<1x16x128xf32>
    tpu.vector_store %arg5[%402, %c0_249, %c0_250], %405 {strides = array<i32>} : memref<8x16x128xf32, #tpu.memory_space<vmem>>, vector<1x16x128xf32>,
    %406 = arith.index_cast %c3_i32_220 : i32 to index
    %407 = memref.load %arg0[%406] : memref<8xi32, #tpu.memory_space<smem>>
    %c1_i32_251 = arith.constant 1 : i32
    %408 = arith.cmpi eq, %407, %c1_i32_251 : i32
    %409 = arith.extui %408 : i1 to i32
    %c0_i32_252 = arith.constant 0 : i32
    %410 = arith.cmpi ne, %409, %c0_i32_252 : i32
    scf.if %410 {
      %634 = arith.index_cast %c3_i32_220 : i32 to index
      %c0_395 = arith.constant 0 : index
      %c0_396 = arith.constant 0 : index
      %635 = vector.load %arg2[%634, %c0_395, %c0_396] : memref<8x16x128xbf16, #tpu.memory_space<vmem>>, vector<1x16x128xbf16>
      %636 = vector.shape_cast %635 : vector<1x16x128xbf16> to vector<16x128xbf16>
      %c0_397 = arith.constant 0 : index
      %c0_398 = arith.constant 0 : index
      %637 = vector.load %arg6[%c0_397, %c0_398] : memref<16x128xbf16, #tpu.memory_space<vmem>>, vector<16x128xbf16>
      tpu.vector_store %arg6[%c0_397, %c0_398], %636 {strides = array<i32>} : memref<16x128xbf16, #tpu.memory_space<vmem>>, vector<16x128xbf16>,
    } else {
    }
    %c0_i32_253 = arith.constant 0 : i32
    %411 = arith.cmpi eq, %407, %c0_i32_253 : i32
    %412 = arith.extui %411 : i1 to i32
    %c0_i32_254 = arith.constant 0 : i32
    %413 = arith.cmpi ne, %412, %c0_i32_254 : i32
    scf.if %413 {
      %634 = tpu.iota {dimensions = array<i32: 1>} : vector<16x128xi32>
      %635 = arith.sitofp %634 : vector<16x128xi32> to vector<16x128xf32>
      %cst_395 = arith.constant 3.200000e+01 : f32
      %636 = vector.broadcast %cst_395 : f32 to vector<16x128xf32>
      %637 = arith.cmpf olt, %635, %636 : vector<16x128xf32>
      %cst_396 = arith.constant -1.000000e+30 : f32
      %638 = vector.broadcast %cst_396 : f32 to vector<16x128xf32>
      %639 = arith.select %637, %401, %638 : vector<16x128xi1>, vector<16x128xf32>
      %cst_397 = arith.constant dense<0xFF800000> : vector<16xf32>
      %640 = vector.multi_reduction <maximumf>, %639, %cst_397 [1] : vector<16x128xf32> to vector<16xf32>
      %641 = vector.shape_cast %640 : vector<16xf32> to vector<16x1xf32>
      %642 = vector.broadcast %641 : vector<16x1xf32> to vector<16x128xf32>
      %643 = arith.cmpf oeq, %639, %642 : vector<16x128xf32>
      %cst_398 = arith.constant 1.280000e+02 : f32
      %644 = vector.broadcast %cst_398 : f32 to vector<16x128xf32>
      %645 = arith.select %643, %635, %644 : vector<16x128xi1>, vector<16x128xf32>
      %cst_399 = arith.constant dense<0x7F800000> : vector<16xf32>
      %646 = vector.multi_reduction <minimumf>, %645, %cst_399 [1] : vector<16x128xf32> to vector<16xf32>
      %647 = vector.shape_cast %646 : vector<16xf32> to vector<16x1xf32>
      %648 = vector.broadcast %647 : vector<16x1xf32> to vector<16x128xf32>
      %649 = arith.cmpf oeq, %635, %648 : vector<16x128xf32>
      %650 = arith.extui %649 : vector<16x128xi1> to vector<16x128xi32>
      %651 = arith.sitofp %650 : vector<16x128xi32> to vector<16x128xf32>
      %652 = arith.truncf %651 : vector<16x128xf32> to vector<16x128xbf16>
      %c0_400 = arith.constant 0 : index
      %c0_401 = arith.constant 0 : index
      %653 = vector.load %arg6[%c0_400, %c0_401] : memref<16x128xbf16, #tpu.memory_space<vmem>>, vector<16x128xbf16>
      tpu.vector_store %arg6[%c0_400, %c0_401], %652 {strides = array<i32>} : memref<16x128xbf16, #tpu.memory_space<vmem>>, vector<16x128xbf16>,
    } else {
    }
    %c4_i32_255 = arith.constant 4 : i32
    %c0_256 = arith.constant 0 : index
    %c0_257 = arith.constant 0 : index
    %414 = vector.load %arg6[%c0_256, %c0_257] : memref<16x128xbf16, #tpu.memory_space<vmem>>, vector<16x128xbf16>
    %c2_258 = arith.constant 2 : index
    %c0_259 = arith.constant 0 : index
    %c0_260 = arith.constant 0 : index
    %415 = vector.load %arg3[%c2_258, %c0_259, %c0_260] : memref<8x128x128xbf16, #tpu.memory_space<vmem>>, vector<1x128x128xbf16>
    %416 = vector.shape_cast %415 : vector<1x128x128xbf16> to vector<128x128xbf16>
    %cst_261 = arith.constant dense<0.000000e+00> : vector<16x128xf32>
    %417 = tpu.matmul %414, %416, %cst_261 {dimension_numbers = #tpu.dot_dimension_numbers<[1], [0], [0], [1], [0, 0, 1, 1], [], []>} : vector<16x128xbf16>, vector<128x128xbf16>, vector<16x128xf32> -> vector<16x128xf32>
    %418 = arith.addf %417, %235 : vector<16x128xf32>
    %419 = arith.truncf %392 : vector<16x128xf32> to vector<16x128xbf16>
    %c4_262 = arith.constant 4 : index
    %c0_263 = arith.constant 0 : index
    %c0_264 = arith.constant 0 : index
    %420 = vector.load %arg3[%c4_262, %c0_263, %c0_264] : memref<8x128x128xbf16, #tpu.memory_space<vmem>>, vector<1x128x128xbf16>
    %421 = vector.shape_cast %420 : vector<1x128x128xbf16> to vector<128x128xbf16>
    %cst_265 = arith.constant dense<0.000000e+00> : vector<16x128xf32>
    %422 = tpu.matmul %419, %421, %cst_265 {dimension_numbers = #tpu.dot_dimension_numbers<[1], [0], [0], [1], [0, 0, 1, 1], [], []>} : vector<16x128xbf16>, vector<128x128xbf16>, vector<16x128xf32> -> vector<16x128xf32>
    %c3_266 = arith.constant 3 : index
    %c0_267 = arith.constant 0 : index
    %c0_268 = arith.constant 0 : index
    %423 = vector.load %arg4[%c3_266, %c0_267, %c0_268] : memref<5x16x128xf32, #tpu.memory_space<vmem>>, vector<1x16x128xf32>
    %424 = vector.shape_cast %423 : vector<1x16x128xf32> to vector<16x128xf32>
    %425 = arith.addf %422, %424 : vector<16x128xf32>
    %426 = arith.addf %418, %425 : vector<16x128xf32>
    %427 = arith.negf %426 : vector<16x128xf32>
    %428 = math.exp %427 : vector<16x128xf32>
    %cst_269 = arith.constant 1.000000e+00 : f32
    %429 = vector.broadcast %cst_269 : f32 to vector<16x128xf32>
    %430 = arith.addf %429, %428 : vector<16x128xf32>
    %431 = arith.divf %429, %430 : vector<16x128xf32>
    %c64_i32_270 = arith.constant 64 : i32
    %432 = tpu.dynamic_rotate %431 by %c64_i32_270 dim 1 : vector<16x128xf32>, i32 -> vector<16x128xf32>
    %433 = arith.mulf %432, %425 : vector<16x128xf32>
    %434 = arith.addf %418, %433 : vector<16x128xf32>
    %435 = math.tanh %434 : vector<16x128xf32>
    %c64_i32_271 = arith.constant 64 : i32
    %436 = tpu.dynamic_rotate %435 by %c64_i32_271 dim 1 : vector<16x128xf32>, i32 -> vector<16x128xf32>
    %c96_i32_272 = arith.constant 96 : i32
    %437 = tpu.dynamic_rotate %431 by %c96_i32_272 dim 1 : vector<16x128xf32>, i32 -> vector<16x128xf32>
    %cst_273 = arith.constant 1.000000e+00 : f32
    %438 = vector.broadcast %cst_273 : f32 to vector<16x128xf32>
    %439 = arith.subf %438, %437 : vector<16x128xf32>
    %440 = arith.mulf %439, %436 : vector<16x128xf32>
    %441 = arith.mulf %437, %392 : vector<16x128xf32>
    %442 = arith.addf %440, %441 : vector<16x128xf32>
    %443 = tpu.iota {dimensions = array<i32: 1>} : vector<16x128xi32>
    %c32_i32_274 = arith.constant 32 : i32
    %444 = vector.broadcast %c32_i32_274 : i32 to vector<16x128xi32>
    %445 = arith.cmpi slt, %443, %444 : vector<16x128xi32>
    %cst_275 = arith.constant 0.000000e+00 : f32
    %446 = vector.broadcast %cst_275 : f32 to vector<16x128xf32>
    %447 = arith.select %445, %442, %446 : vector<16x128xi1>, vector<16x128xf32>
    %c5_276 = arith.constant 5 : index
    %c0_277 = arith.constant 0 : index
    %c0_278 = arith.constant 0 : index
    %448 = vector.load %arg3[%c5_276, %c0_277, %c0_278] : memref<8x128x128xbf16, #tpu.memory_space<vmem>>, vector<1x128x128xbf16>
    %449 = vector.shape_cast %448 : vector<1x128x128xbf16> to vector<128x128xbf16>
    %cst_279 = arith.constant dense<0.000000e+00> : vector<16x128xf32>
    %450 = tpu.matmul %414, %449, %cst_279 {dimension_numbers = #tpu.dot_dimension_numbers<[1], [0], [0], [1], [0, 0, 1, 1], [], []>} : vector<16x128xbf16>, vector<128x128xbf16>, vector<16x128xf32> -> vector<16x128xf32>
    %451 = arith.truncf %447 : vector<16x128xf32> to vector<16x128xbf16>
    %c7_280 = arith.constant 7 : index
    %c0_281 = arith.constant 0 : index
    %c0_282 = arith.constant 0 : index
    %452 = vector.load %arg3[%c7_280, %c0_281, %c0_282] : memref<8x128x128xbf16, #tpu.memory_space<vmem>>, vector<1x128x128xbf16>
    %453 = vector.shape_cast %452 : vector<1x128x128xbf16> to vector<128x128xbf16>
    %cst_283 = arith.constant dense<0.000000e+00> : vector<16x128xf32>
    %454 = tpu.matmul %451, %453, %cst_283 {dimension_numbers = #tpu.dot_dimension_numbers<[1], [0], [0], [1], [0, 0, 1, 1], [], []>} : vector<16x128xbf16>, vector<128x128xbf16>, vector<16x128xf32> -> vector<16x128xf32>
    %455 = arith.addf %450, %454 : vector<16x128xf32>
    %456 = arith.addf %455, %241 : vector<16x128xf32>
    %457 = arith.index_cast %c4_i32_255 : i32 to index
    %c0_284 = arith.constant 0 : index
    %c0_285 = arith.constant 0 : index
    %458 = vector.load %arg5[%457, %c0_284, %c0_285] : memref<8x16x128xf32, #tpu.memory_space<vmem>>, vector<1x16x128xf32>
    %459 = vector.shape_cast %458 : vector<1x16x128xf32> to vector<16x128xf32>
    %460 = vector.shape_cast %456 : vector<16x128xf32> to vector<1x16x128xf32>
    tpu.vector_store %arg5[%457, %c0_284, %c0_285], %460 {strides = array<i32>} : memref<8x16x128xf32, #tpu.memory_space<vmem>>, vector<1x16x128xf32>,
    %461 = arith.index_cast %c4_i32_255 : i32 to index
    %462 = memref.load %arg0[%461] : memref<8xi32, #tpu.memory_space<smem>>
    %c1_i32_286 = arith.constant 1 : i32
    %463 = arith.cmpi eq, %462, %c1_i32_286 : i32
    %464 = arith.extui %463 : i1 to i32
    %c0_i32_287 = arith.constant 0 : i32
    %465 = arith.cmpi ne, %464, %c0_i32_287 : i32
    scf.if %465 {
      %634 = arith.index_cast %c4_i32_255 : i32 to index
      %c0_395 = arith.constant 0 : index
      %c0_396 = arith.constant 0 : index
      %635 = vector.load %arg2[%634, %c0_395, %c0_396] : memref<8x16x128xbf16, #tpu.memory_space<vmem>>, vector<1x16x128xbf16>
      %636 = vector.shape_cast %635 : vector<1x16x128xbf16> to vector<16x128xbf16>
      %c0_397 = arith.constant 0 : index
      %c0_398 = arith.constant 0 : index
      %637 = vector.load %arg6[%c0_397, %c0_398] : memref<16x128xbf16, #tpu.memory_space<vmem>>, vector<16x128xbf16>
      tpu.vector_store %arg6[%c0_397, %c0_398], %636 {strides = array<i32>} : memref<16x128xbf16, #tpu.memory_space<vmem>>, vector<16x128xbf16>,
    } else {
    }
    %c0_i32_288 = arith.constant 0 : i32
    %466 = arith.cmpi eq, %462, %c0_i32_288 : i32
    %467 = arith.extui %466 : i1 to i32
    %c0_i32_289 = arith.constant 0 : i32
    %468 = arith.cmpi ne, %467, %c0_i32_289 : i32
    scf.if %468 {
      %634 = tpu.iota {dimensions = array<i32: 1>} : vector<16x128xi32>
      %635 = arith.sitofp %634 : vector<16x128xi32> to vector<16x128xf32>
      %cst_395 = arith.constant 3.200000e+01 : f32
      %636 = vector.broadcast %cst_395 : f32 to vector<16x128xf32>
      %637 = arith.cmpf olt, %635, %636 : vector<16x128xf32>
      %cst_396 = arith.constant -1.000000e+30 : f32
      %638 = vector.broadcast %cst_396 : f32 to vector<16x128xf32>
      %639 = arith.select %637, %456, %638 : vector<16x128xi1>, vector<16x128xf32>
      %cst_397 = arith.constant dense<0xFF800000> : vector<16xf32>
      %640 = vector.multi_reduction <maximumf>, %639, %cst_397 [1] : vector<16x128xf32> to vector<16xf32>
      %641 = vector.shape_cast %640 : vector<16xf32> to vector<16x1xf32>
      %642 = vector.broadcast %641 : vector<16x1xf32> to vector<16x128xf32>
      %643 = arith.cmpf oeq, %639, %642 : vector<16x128xf32>
      %cst_398 = arith.constant 1.280000e+02 : f32
      %644 = vector.broadcast %cst_398 : f32 to vector<16x128xf32>
      %645 = arith.select %643, %635, %644 : vector<16x128xi1>, vector<16x128xf32>
      %cst_399 = arith.constant dense<0x7F800000> : vector<16xf32>
      %646 = vector.multi_reduction <minimumf>, %645, %cst_399 [1] : vector<16x128xf32> to vector<16xf32>
      %647 = vector.shape_cast %646 : vector<16xf32> to vector<16x1xf32>
      %648 = vector.broadcast %647 : vector<16x1xf32> to vector<16x128xf32>
      %649 = arith.cmpf oeq, %635, %648 : vector<16x128xf32>
      %650 = arith.extui %649 : vector<16x128xi1> to vector<16x128xi32>
      %651 = arith.sitofp %650 : vector<16x128xi32> to vector<16x128xf32>
      %652 = arith.truncf %651 : vector<16x128xf32> to vector<16x128xbf16>
      %c0_400 = arith.constant 0 : index
      %c0_401 = arith.constant 0 : index
      %653 = vector.load %arg6[%c0_400, %c0_401] : memref<16x128xbf16, #tpu.memory_space<vmem>>, vector<16x128xbf16>
      tpu.vector_store %arg6[%c0_400, %c0_401], %652 {strides = array<i32>} : memref<16x128xbf16, #tpu.memory_space<vmem>>, vector<16x128xbf16>,
    } else {
    }
    %c5_i32_290 = arith.constant 5 : i32
    %c0_291 = arith.constant 0 : index
    %c0_292 = arith.constant 0 : index
    %469 = vector.load %arg6[%c0_291, %c0_292] : memref<16x128xbf16, #tpu.memory_space<vmem>>, vector<16x128xbf16>
    %c2_293 = arith.constant 2 : index
    %c0_294 = arith.constant 0 : index
    %c0_295 = arith.constant 0 : index
    %470 = vector.load %arg3[%c2_293, %c0_294, %c0_295] : memref<8x128x128xbf16, #tpu.memory_space<vmem>>, vector<1x128x128xbf16>
    %471 = vector.shape_cast %470 : vector<1x128x128xbf16> to vector<128x128xbf16>
    %cst_296 = arith.constant dense<0.000000e+00> : vector<16x128xf32>
    %472 = tpu.matmul %469, %471, %cst_296 {dimension_numbers = #tpu.dot_dimension_numbers<[1], [0], [0], [1], [0, 0, 1, 1], [], []>} : vector<16x128xbf16>, vector<128x128xbf16>, vector<16x128xf32> -> vector<16x128xf32>
    %473 = arith.addf %472, %235 : vector<16x128xf32>
    %474 = arith.truncf %447 : vector<16x128xf32> to vector<16x128xbf16>
    %c4_297 = arith.constant 4 : index
    %c0_298 = arith.constant 0 : index
    %c0_299 = arith.constant 0 : index
    %475 = vector.load %arg3[%c4_297, %c0_298, %c0_299] : memref<8x128x128xbf16, #tpu.memory_space<vmem>>, vector<1x128x128xbf16>
    %476 = vector.shape_cast %475 : vector<1x128x128xbf16> to vector<128x128xbf16>
    %cst_300 = arith.constant dense<0.000000e+00> : vector<16x128xf32>
    %477 = tpu.matmul %474, %476, %cst_300 {dimension_numbers = #tpu.dot_dimension_numbers<[1], [0], [0], [1], [0, 0, 1, 1], [], []>} : vector<16x128xbf16>, vector<128x128xbf16>, vector<16x128xf32> -> vector<16x128xf32>
    %c3_301 = arith.constant 3 : index
    %c0_302 = arith.constant 0 : index
    %c0_303 = arith.constant 0 : index
    %478 = vector.load %arg4[%c3_301, %c0_302, %c0_303] : memref<5x16x128xf32, #tpu.memory_space<vmem>>, vector<1x16x128xf32>
    %479 = vector.shape_cast %478 : vector<1x16x128xf32> to vector<16x128xf32>
    %480 = arith.addf %477, %479 : vector<16x128xf32>
    %481 = arith.addf %473, %480 : vector<16x128xf32>
    %482 = arith.negf %481 : vector<16x128xf32>
    %483 = math.exp %482 : vector<16x128xf32>
    %cst_304 = arith.constant 1.000000e+00 : f32
    %484 = vector.broadcast %cst_304 : f32 to vector<16x128xf32>
    %485 = arith.addf %484, %483 : vector<16x128xf32>
    %486 = arith.divf %484, %485 : vector<16x128xf32>
    %c64_i32_305 = arith.constant 64 : i32
    %487 = tpu.dynamic_rotate %486 by %c64_i32_305 dim 1 : vector<16x128xf32>, i32 -> vector<16x128xf32>
    %488 = arith.mulf %487, %480 : vector<16x128xf32>
    %489 = arith.addf %473, %488 : vector<16x128xf32>
    %490 = math.tanh %489 : vector<16x128xf32>
    %c64_i32_306 = arith.constant 64 : i32
    %491 = tpu.dynamic_rotate %490 by %c64_i32_306 dim 1 : vector<16x128xf32>, i32 -> vector<16x128xf32>
    %c96_i32_307 = arith.constant 96 : i32
    %492 = tpu.dynamic_rotate %486 by %c96_i32_307 dim 1 : vector<16x128xf32>, i32 -> vector<16x128xf32>
    %cst_308 = arith.constant 1.000000e+00 : f32
    %493 = vector.broadcast %cst_308 : f32 to vector<16x128xf32>
    %494 = arith.subf %493, %492 : vector<16x128xf32>
    %495 = arith.mulf %494, %491 : vector<16x128xf32>
    %496 = arith.mulf %492, %447 : vector<16x128xf32>
    %497 = arith.addf %495, %496 : vector<16x128xf32>
    %498 = tpu.iota {dimensions = array<i32: 1>} : vector<16x128xi32>
    %c32_i32_309 = arith.constant 32 : i32
    %499 = vector.broadcast %c32_i32_309 : i32 to vector<16x128xi32>
    %500 = arith.cmpi slt, %498, %499 : vector<16x128xi32>
    %cst_310 = arith.constant 0.000000e+00 : f32
    %501 = vector.broadcast %cst_310 : f32 to vector<16x128xf32>
    %502 = arith.select %500, %497, %501 : vector<16x128xi1>, vector<16x128xf32>
    %c5_311 = arith.constant 5 : index
    %c0_312 = arith.constant 0 : index
    %c0_313 = arith.constant 0 : index
    %503 = vector.load %arg3[%c5_311, %c0_312, %c0_313] : memref<8x128x128xbf16, #tpu.memory_space<vmem>>, vector<1x128x128xbf16>
    %504 = vector.shape_cast %503 : vector<1x128x128xbf16> to vector<128x128xbf16>
    %cst_314 = arith.constant dense<0.000000e+00> : vector<16x128xf32>
    %505 = tpu.matmul %469, %504, %cst_314 {dimension_numbers = #tpu.dot_dimension_numbers<[1], [0], [0], [1], [0, 0, 1, 1], [], []>} : vector<16x128xbf16>, vector<128x128xbf16>, vector<16x128xf32> -> vector<16x128xf32>
    %506 = arith.truncf %502 : vector<16x128xf32> to vector<16x128xbf16>
    %c7_315 = arith.constant 7 : index
    %c0_316 = arith.constant 0 : index
    %c0_317 = arith.constant 0 : index
    %507 = vector.load %arg3[%c7_315, %c0_316, %c0_317] : memref<8x128x128xbf16, #tpu.memory_space<vmem>>, vector<1x128x128xbf16>
    %508 = vector.shape_cast %507 : vector<1x128x128xbf16> to vector<128x128xbf16>
    %cst_318 = arith.constant dense<0.000000e+00> : vector<16x128xf32>
    %509 = tpu.matmul %506, %508, %cst_318 {dimension_numbers = #tpu.dot_dimension_numbers<[1], [0], [0], [1], [0, 0, 1, 1], [], []>} : vector<16x128xbf16>, vector<128x128xbf16>, vector<16x128xf32> -> vector<16x128xf32>
    %510 = arith.addf %505, %509 : vector<16x128xf32>
    %511 = arith.addf %510, %241 : vector<16x128xf32>
    %512 = arith.index_cast %c5_i32_290 : i32 to index
    %c0_319 = arith.constant 0 : index
    %c0_320 = arith.constant 0 : index
    %513 = vector.load %arg5[%512, %c0_319, %c0_320] : memref<8x16x128xf32, #tpu.memory_space<vmem>>, vector<1x16x128xf32>
    %514 = vector.shape_cast %513 : vector<1x16x128xf32> to vector<16x128xf32>
    %515 = vector.shape_cast %511 : vector<16x128xf32> to vector<1x16x128xf32>
    tpu.vector_store %arg5[%512, %c0_319, %c0_320], %515 {strides = array<i32>} : memref<8x16x128xf32, #tpu.memory_space<vmem>>, vector<1x16x128xf32>,
    %516 = arith.index_cast %c5_i32_290 : i32 to index
    %517 = memref.load %arg0[%516] : memref<8xi32, #tpu.memory_space<smem>>
    %c1_i32_321 = arith.constant 1 : i32
    %518 = arith.cmpi eq, %517, %c1_i32_321 : i32
    %519 = arith.extui %518 : i1 to i32
    %c0_i32_322 = arith.constant 0 : i32
    %520 = arith.cmpi ne, %519, %c0_i32_322 : i32
    scf.if %520 {
      %634 = arith.index_cast %c5_i32_290 : i32 to index
      %c0_395 = arith.constant 0 : index
      %c0_396 = arith.constant 0 : index
      %635 = vector.load %arg2[%634, %c0_395, %c0_396] : memref<8x16x128xbf16, #tpu.memory_space<vmem>>, vector<1x16x128xbf16>
      %636 = vector.shape_cast %635 : vector<1x16x128xbf16> to vector<16x128xbf16>
      %c0_397 = arith.constant 0 : index
      %c0_398 = arith.constant 0 : index
      %637 = vector.load %arg6[%c0_397, %c0_398] : memref<16x128xbf16, #tpu.memory_space<vmem>>, vector<16x128xbf16>
      tpu.vector_store %arg6[%c0_397, %c0_398], %636 {strides = array<i32>} : memref<16x128xbf16, #tpu.memory_space<vmem>>, vector<16x128xbf16>,
    } else {
    }
    %c0_i32_323 = arith.constant 0 : i32
    %521 = arith.cmpi eq, %517, %c0_i32_323 : i32
    %522 = arith.extui %521 : i1 to i32
    %c0_i32_324 = arith.constant 0 : i32
    %523 = arith.cmpi ne, %522, %c0_i32_324 : i32
    scf.if %523 {
      %634 = tpu.iota {dimensions = array<i32: 1>} : vector<16x128xi32>
      %635 = arith.sitofp %634 : vector<16x128xi32> to vector<16x128xf32>
      %cst_395 = arith.constant 3.200000e+01 : f32
      %636 = vector.broadcast %cst_395 : f32 to vector<16x128xf32>
      %637 = arith.cmpf olt, %635, %636 : vector<16x128xf32>
      %cst_396 = arith.constant -1.000000e+30 : f32
      %638 = vector.broadcast %cst_396 : f32 to vector<16x128xf32>
      %639 = arith.select %637, %511, %638 : vector<16x128xi1>, vector<16x128xf32>
      %cst_397 = arith.constant dense<0xFF800000> : vector<16xf32>
      %640 = vector.multi_reduction <maximumf>, %639, %cst_397 [1] : vector<16x128xf32> to vector<16xf32>
      %641 = vector.shape_cast %640 : vector<16xf32> to vector<16x1xf32>
      %642 = vector.broadcast %641 : vector<16x1xf32> to vector<16x128xf32>
      %643 = arith.cmpf oeq, %639, %642 : vector<16x128xf32>
      %cst_398 = arith.constant 1.280000e+02 : f32
      %644 = vector.broadcast %cst_398 : f32 to vector<16x128xf32>
      %645 = arith.select %643, %635, %644 : vector<16x128xi1>, vector<16x128xf32>
      %cst_399 = arith.constant dense<0x7F800000> : vector<16xf32>
      %646 = vector.multi_reduction <minimumf>, %645, %cst_399 [1] : vector<16x128xf32> to vector<16xf32>
      %647 = vector.shape_cast %646 : vector<16xf32> to vector<16x1xf32>
      %648 = vector.broadcast %647 : vector<16x1xf32> to vector<16x128xf32>
      %649 = arith.cmpf oeq, %635, %648 : vector<16x128xf32>
      %650 = arith.extui %649 : vector<16x128xi1> to vector<16x128xi32>
      %651 = arith.sitofp %650 : vector<16x128xi32> to vector<16x128xf32>
      %652 = arith.truncf %651 : vector<16x128xf32> to vector<16x128xbf16>
      %c0_400 = arith.constant 0 : index
      %c0_401 = arith.constant 0 : index
      %653 = vector.load %arg6[%c0_400, %c0_401] : memref<16x128xbf16, #tpu.memory_space<vmem>>, vector<16x128xbf16>
      tpu.vector_store %arg6[%c0_400, %c0_401], %652 {strides = array<i32>} : memref<16x128xbf16, #tpu.memory_space<vmem>>, vector<16x128xbf16>,
    } else {
    }
    %c6_i32_325 = arith.constant 6 : i32
    %c0_326 = arith.constant 0 : index
    %c0_327 = arith.constant 0 : index
    %524 = vector.load %arg6[%c0_326, %c0_327] : memref<16x128xbf16, #tpu.memory_space<vmem>>, vector<16x128xbf16>
    %c2_328 = arith.constant 2 : index
    %c0_329 = arith.constant 0 : index
    %c0_330 = arith.constant 0 : index
    %525 = vector.load %arg3[%c2_328, %c0_329, %c0_330] : memref<8x128x128xbf16, #tpu.memory_space<vmem>>, vector<1x128x128xbf16>
    %526 = vector.shape_cast %525 : vector<1x128x128xbf16> to vector<128x128xbf16>
    %cst_331 = arith.constant dense<0.000000e+00> : vector<16x128xf32>
    %527 = tpu.matmul %524, %526, %cst_331 {dimension_numbers = #tpu.dot_dimension_numbers<[1], [0], [0], [1], [0, 0, 1, 1], [], []>} : vector<16x128xbf16>, vector<128x128xbf16>, vector<16x128xf32> -> vector<16x128xf32>
    %528 = arith.addf %527, %235 : vector<16x128xf32>
    %529 = arith.truncf %502 : vector<16x128xf32> to vector<16x128xbf16>
    %c4_332 = arith.constant 4 : index
    %c0_333 = arith.constant 0 : index
    %c0_334 = arith.constant 0 : index
    %530 = vector.load %arg3[%c4_332, %c0_333, %c0_334] : memref<8x128x128xbf16, #tpu.memory_space<vmem>>, vector<1x128x128xbf16>
    %531 = vector.shape_cast %530 : vector<1x128x128xbf16> to vector<128x128xbf16>
    %cst_335 = arith.constant dense<0.000000e+00> : vector<16x128xf32>
    %532 = tpu.matmul %529, %531, %cst_335 {dimension_numbers = #tpu.dot_dimension_numbers<[1], [0], [0], [1], [0, 0, 1, 1], [], []>} : vector<16x128xbf16>, vector<128x128xbf16>, vector<16x128xf32> -> vector<16x128xf32>
    %c3_336 = arith.constant 3 : index
    %c0_337 = arith.constant 0 : index
    %c0_338 = arith.constant 0 : index
    %533 = vector.load %arg4[%c3_336, %c0_337, %c0_338] : memref<5x16x128xf32, #tpu.memory_space<vmem>>, vector<1x16x128xf32>
    %534 = vector.shape_cast %533 : vector<1x16x128xf32> to vector<16x128xf32>
    %535 = arith.addf %532, %534 : vector<16x128xf32>
    %536 = arith.addf %528, %535 : vector<16x128xf32>
    %537 = arith.negf %536 : vector<16x128xf32>
    %538 = math.exp %537 : vector<16x128xf32>
    %cst_339 = arith.constant 1.000000e+00 : f32
    %539 = vector.broadcast %cst_339 : f32 to vector<16x128xf32>
    %540 = arith.addf %539, %538 : vector<16x128xf32>
    %541 = arith.divf %539, %540 : vector<16x128xf32>
    %c64_i32_340 = arith.constant 64 : i32
    %542 = tpu.dynamic_rotate %541 by %c64_i32_340 dim 1 : vector<16x128xf32>, i32 -> vector<16x128xf32>
    %543 = arith.mulf %542, %535 : vector<16x128xf32>
    %544 = arith.addf %528, %543 : vector<16x128xf32>
    %545 = math.tanh %544 : vector<16x128xf32>
    %c64_i32_341 = arith.constant 64 : i32
    %546 = tpu.dynamic_rotate %545 by %c64_i32_341 dim 1 : vector<16x128xf32>, i32 -> vector<16x128xf32>
    %c96_i32_342 = arith.constant 96 : i32
    %547 = tpu.dynamic_rotate %541 by %c96_i32_342 dim 1 : vector<16x128xf32>, i32 -> vector<16x128xf32>
    %cst_343 = arith.constant 1.000000e+00 : f32
    %548 = vector.broadcast %cst_343 : f32 to vector<16x128xf32>
    %549 = arith.subf %548, %547 : vector<16x128xf32>
    %550 = arith.mulf %549, %546 : vector<16x128xf32>
    %551 = arith.mulf %547, %502 : vector<16x128xf32>
    %552 = arith.addf %550, %551 : vector<16x128xf32>
    %553 = tpu.iota {dimensions = array<i32: 1>} : vector<16x128xi32>
    %c32_i32_344 = arith.constant 32 : i32
    %554 = vector.broadcast %c32_i32_344 : i32 to vector<16x128xi32>
    %555 = arith.cmpi slt, %553, %554 : vector<16x128xi32>
    %cst_345 = arith.constant 0.000000e+00 : f32
    %556 = vector.broadcast %cst_345 : f32 to vector<16x128xf32>
    %557 = arith.select %555, %552, %556 : vector<16x128xi1>, vector<16x128xf32>
    %c5_346 = arith.constant 5 : index
    %c0_347 = arith.constant 0 : index
    %c0_348 = arith.constant 0 : index
    %558 = vector.load %arg3[%c5_346, %c0_347, %c0_348] : memref<8x128x128xbf16, #tpu.memory_space<vmem>>, vector<1x128x128xbf16>
    %559 = vector.shape_cast %558 : vector<1x128x128xbf16> to vector<128x128xbf16>
    %cst_349 = arith.constant dense<0.000000e+00> : vector<16x128xf32>
    %560 = tpu.matmul %524, %559, %cst_349 {dimension_numbers = #tpu.dot_dimension_numbers<[1], [0], [0], [1], [0, 0, 1, 1], [], []>} : vector<16x128xbf16>, vector<128x128xbf16>, vector<16x128xf32> -> vector<16x128xf32>
    %561 = arith.truncf %557 : vector<16x128xf32> to vector<16x128xbf16>
    %c7_350 = arith.constant 7 : index
    %c0_351 = arith.constant 0 : index
    %c0_352 = arith.constant 0 : index
    %562 = vector.load %arg3[%c7_350, %c0_351, %c0_352] : memref<8x128x128xbf16, #tpu.memory_space<vmem>>, vector<1x128x128xbf16>
    %563 = vector.shape_cast %562 : vector<1x128x128xbf16> to vector<128x128xbf16>
    %cst_353 = arith.constant dense<0.000000e+00> : vector<16x128xf32>
    %564 = tpu.matmul %561, %563, %cst_353 {dimension_numbers = #tpu.dot_dimension_numbers<[1], [0], [0], [1], [0, 0, 1, 1], [], []>} : vector<16x128xbf16>, vector<128x128xbf16>, vector<16x128xf32> -> vector<16x128xf32>
    %565 = arith.addf %560, %564 : vector<16x128xf32>
    %566 = arith.addf %565, %241 : vector<16x128xf32>
    %567 = arith.index_cast %c6_i32_325 : i32 to index
    %c0_354 = arith.constant 0 : index
    %c0_355 = arith.constant 0 : index
    %568 = vector.load %arg5[%567, %c0_354, %c0_355] : memref<8x16x128xf32, #tpu.memory_space<vmem>>, vector<1x16x128xf32>
    %569 = vector.shape_cast %568 : vector<1x16x128xf32> to vector<16x128xf32>
    %570 = vector.shape_cast %566 : vector<16x128xf32> to vector<1x16x128xf32>
    tpu.vector_store %arg5[%567, %c0_354, %c0_355], %570 {strides = array<i32>} : memref<8x16x128xf32, #tpu.memory_space<vmem>>, vector<1x16x128xf32>,
    %571 = arith.index_cast %c6_i32_325 : i32 to index
    %572 = memref.load %arg0[%571] : memref<8xi32, #tpu.memory_space<smem>>
    %c1_i32_356 = arith.constant 1 : i32
    %573 = arith.cmpi eq, %572, %c1_i32_356 : i32
    %574 = arith.extui %573 : i1 to i32
    %c0_i32_357 = arith.constant 0 : i32
    %575 = arith.cmpi ne, %574, %c0_i32_357 : i32
    scf.if %575 {
      %634 = arith.index_cast %c6_i32_325 : i32 to index
      %c0_395 = arith.constant 0 : index
      %c0_396 = arith.constant 0 : index
      %635 = vector.load %arg2[%634, %c0_395, %c0_396] : memref<8x16x128xbf16, #tpu.memory_space<vmem>>, vector<1x16x128xbf16>
      %636 = vector.shape_cast %635 : vector<1x16x128xbf16> to vector<16x128xbf16>
      %c0_397 = arith.constant 0 : index
      %c0_398 = arith.constant 0 : index
      %637 = vector.load %arg6[%c0_397, %c0_398] : memref<16x128xbf16, #tpu.memory_space<vmem>>, vector<16x128xbf16>
      tpu.vector_store %arg6[%c0_397, %c0_398], %636 {strides = array<i32>} : memref<16x128xbf16, #tpu.memory_space<vmem>>, vector<16x128xbf16>,
    } else {
    }
    %c0_i32_358 = arith.constant 0 : i32
    %576 = arith.cmpi eq, %572, %c0_i32_358 : i32
    %577 = arith.extui %576 : i1 to i32
    %c0_i32_359 = arith.constant 0 : i32
    %578 = arith.cmpi ne, %577, %c0_i32_359 : i32
    scf.if %578 {
      %634 = tpu.iota {dimensions = array<i32: 1>} : vector<16x128xi32>
      %635 = arith.sitofp %634 : vector<16x128xi32> to vector<16x128xf32>
      %cst_395 = arith.constant 3.200000e+01 : f32
      %636 = vector.broadcast %cst_395 : f32 to vector<16x128xf32>
      %637 = arith.cmpf olt, %635, %636 : vector<16x128xf32>
      %cst_396 = arith.constant -1.000000e+30 : f32
      %638 = vector.broadcast %cst_396 : f32 to vector<16x128xf32>
      %639 = arith.select %637, %566, %638 : vector<16x128xi1>, vector<16x128xf32>
      %cst_397 = arith.constant dense<0xFF800000> : vector<16xf32>
      %640 = vector.multi_reduction <maximumf>, %639, %cst_397 [1] : vector<16x128xf32> to vector<16xf32>
      %641 = vector.shape_cast %640 : vector<16xf32> to vector<16x1xf32>
      %642 = vector.broadcast %641 : vector<16x1xf32> to vector<16x128xf32>
      %643 = arith.cmpf oeq, %639, %642 : vector<16x128xf32>
      %cst_398 = arith.constant 1.280000e+02 : f32
      %644 = vector.broadcast %cst_398 : f32 to vector<16x128xf32>
      %645 = arith.select %643, %635, %644 : vector<16x128xi1>, vector<16x128xf32>
      %cst_399 = arith.constant dense<0x7F800000> : vector<16xf32>
      %646 = vector.multi_reduction <minimumf>, %645, %cst_399 [1] : vector<16x128xf32> to vector<16xf32>
      %647 = vector.shape_cast %646 : vector<16xf32> to vector<16x1xf32>
      %648 = vector.broadcast %647 : vector<16x1xf32> to vector<16x128xf32>
      %649 = arith.cmpf oeq, %635, %648 : vector<16x128xf32>
      %650 = arith.extui %649 : vector<16x128xi1> to vector<16x128xi32>
      %651 = arith.sitofp %650 : vector<16x128xi32> to vector<16x128xf32>
      %652 = arith.truncf %651 : vector<16x128xf32> to vector<16x128xbf16>
      %c0_400 = arith.constant 0 : index
      %c0_401 = arith.constant 0 : index
      %653 = vector.load %arg6[%c0_400, %c0_401] : memref<16x128xbf16, #tpu.memory_space<vmem>>, vector<16x128xbf16>
      tpu.vector_store %arg6[%c0_400, %c0_401], %652 {strides = array<i32>} : memref<16x128xbf16, #tpu.memory_space<vmem>>, vector<16x128xbf16>,
    } else {
    }
    %c7_i32 = arith.constant 7 : i32
    %c0_360 = arith.constant 0 : index
    %c0_361 = arith.constant 0 : index
    %579 = vector.load %arg6[%c0_360, %c0_361] : memref<16x128xbf16, #tpu.memory_space<vmem>>, vector<16x128xbf16>
    %c2_362 = arith.constant 2 : index
    %c0_363 = arith.constant 0 : index
    %c0_364 = arith.constant 0 : index
    %580 = vector.load %arg3[%c2_362, %c0_363, %c0_364] : memref<8x128x128xbf16, #tpu.memory_space<vmem>>, vector<1x128x128xbf16>
    %581 = vector.shape_cast %580 : vector<1x128x128xbf16> to vector<128x128xbf16>
    %cst_365 = arith.constant dense<0.000000e+00> : vector<16x128xf32>
    %582 = tpu.matmul %579, %581, %cst_365 {dimension_numbers = #tpu.dot_dimension_numbers<[1], [0], [0], [1], [0, 0, 1, 1], [], []>} : vector<16x128xbf16>, vector<128x128xbf16>, vector<16x128xf32> -> vector<16x128xf32>
    %583 = arith.addf %582, %235 : vector<16x128xf32>
    %584 = arith.truncf %557 : vector<16x128xf32> to vector<16x128xbf16>
    %c4_366 = arith.constant 4 : index
    %c0_367 = arith.constant 0 : index
    %c0_368 = arith.constant 0 : index
    %585 = vector.load %arg3[%c4_366, %c0_367, %c0_368] : memref<8x128x128xbf16, #tpu.memory_space<vmem>>, vector<1x128x128xbf16>
    %586 = vector.shape_cast %585 : vector<1x128x128xbf16> to vector<128x128xbf16>
    %cst_369 = arith.constant dense<0.000000e+00> : vector<16x128xf32>
    %587 = tpu.matmul %584, %586, %cst_369 {dimension_numbers = #tpu.dot_dimension_numbers<[1], [0], [0], [1], [0, 0, 1, 1], [], []>} : vector<16x128xbf16>, vector<128x128xbf16>, vector<16x128xf32> -> vector<16x128xf32>
    %c3_370 = arith.constant 3 : index
    %c0_371 = arith.constant 0 : index
    %c0_372 = arith.constant 0 : index
    %588 = vector.load %arg4[%c3_370, %c0_371, %c0_372] : memref<5x16x128xf32, #tpu.memory_space<vmem>>, vector<1x16x128xf32>
    %589 = vector.shape_cast %588 : vector<1x16x128xf32> to vector<16x128xf32>
    %590 = arith.addf %587, %589 : vector<16x128xf32>
    %591 = arith.addf %583, %590 : vector<16x128xf32>
    %592 = arith.negf %591 : vector<16x128xf32>
    %593 = math.exp %592 : vector<16x128xf32>
    %cst_373 = arith.constant 1.000000e+00 : f32
    %594 = vector.broadcast %cst_373 : f32 to vector<16x128xf32>
    %595 = arith.addf %594, %593 : vector<16x128xf32>
    %596 = arith.divf %594, %595 : vector<16x128xf32>
    %c64_i32_374 = arith.constant 64 : i32
    %597 = tpu.dynamic_rotate %596 by %c64_i32_374 dim 1 : vector<16x128xf32>, i32 -> vector<16x128xf32>
    %598 = arith.mulf %597, %590 : vector<16x128xf32>
    %599 = arith.addf %583, %598 : vector<16x128xf32>
    %600 = math.tanh %599 : vector<16x128xf32>
    %c64_i32_375 = arith.constant 64 : i32
    %601 = tpu.dynamic_rotate %600 by %c64_i32_375 dim 1 : vector<16x128xf32>, i32 -> vector<16x128xf32>
    %c96_i32_376 = arith.constant 96 : i32
    %602 = tpu.dynamic_rotate %596 by %c96_i32_376 dim 1 : vector<16x128xf32>, i32 -> vector<16x128xf32>
    %cst_377 = arith.constant 1.000000e+00 : f32
    %603 = vector.broadcast %cst_377 : f32 to vector<16x128xf32>
    %604 = arith.subf %603, %602 : vector<16x128xf32>
    %605 = arith.mulf %604, %601 : vector<16x128xf32>
    %606 = arith.mulf %602, %557 : vector<16x128xf32>
    %607 = arith.addf %605, %606 : vector<16x128xf32>
    %608 = tpu.iota {dimensions = array<i32: 1>} : vector<16x128xi32>
    %c32_i32_378 = arith.constant 32 : i32
    %609 = vector.broadcast %c32_i32_378 : i32 to vector<16x128xi32>
    %610 = arith.cmpi slt, %608, %609 : vector<16x128xi32>
    %cst_379 = arith.constant 0.000000e+00 : f32
    %611 = vector.broadcast %cst_379 : f32 to vector<16x128xf32>
    %612 = arith.select %610, %607, %611 : vector<16x128xi1>, vector<16x128xf32>
    %c5_380 = arith.constant 5 : index
    %c0_381 = arith.constant 0 : index
    %c0_382 = arith.constant 0 : index
    %613 = vector.load %arg3[%c5_380, %c0_381, %c0_382] : memref<8x128x128xbf16, #tpu.memory_space<vmem>>, vector<1x128x128xbf16>
    %614 = vector.shape_cast %613 : vector<1x128x128xbf16> to vector<128x128xbf16>
    %cst_383 = arith.constant dense<0.000000e+00> : vector<16x128xf32>
    %615 = tpu.matmul %579, %614, %cst_383 {dimension_numbers = #tpu.dot_dimension_numbers<[1], [0], [0], [1], [0, 0, 1, 1], [], []>} : vector<16x128xbf16>, vector<128x128xbf16>, vector<16x128xf32> -> vector<16x128xf32>
    %616 = arith.truncf %612 : vector<16x128xf32> to vector<16x128xbf16>
    %c7_384 = arith.constant 7 : index
    %c0_385 = arith.constant 0 : index
    %c0_386 = arith.constant 0 : index
    %617 = vector.load %arg3[%c7_384, %c0_385, %c0_386] : memref<8x128x128xbf16, #tpu.memory_space<vmem>>, vector<1x128x128xbf16>
    %618 = vector.shape_cast %617 : vector<1x128x128xbf16> to vector<128x128xbf16>
    %cst_387 = arith.constant dense<0.000000e+00> : vector<16x128xf32>
    %619 = tpu.matmul %616, %618, %cst_387 {dimension_numbers = #tpu.dot_dimension_numbers<[1], [0], [0], [1], [0, 0, 1, 1], [], []>} : vector<16x128xbf16>, vector<128x128xbf16>, vector<16x128xf32> -> vector<16x128xf32>
    %620 = arith.addf %615, %619 : vector<16x128xf32>
    %621 = arith.addf %620, %241 : vector<16x128xf32>
    %622 = arith.index_cast %c7_i32 : i32 to index
    %c0_388 = arith.constant 0 : index
    %c0_389 = arith.constant 0 : index
    %623 = vector.load %arg5[%622, %c0_388, %c0_389] : memref<8x16x128xf32, #tpu.memory_space<vmem>>, vector<1x16x128xf32>
    %624 = vector.shape_cast %623 : vector<1x16x128xf32> to vector<16x128xf32>
    %625 = vector.shape_cast %621 : vector<16x128xf32> to vector<1x16x128xf32>
    tpu.vector_store %arg5[%622, %c0_388, %c0_389], %625 {strides = array<i32>} : memref<8x16x128xf32, #tpu.memory_space<vmem>>, vector<1x16x128xf32>,
    %626 = arith.index_cast %c7_i32 : i32 to index
    %627 = memref.load %arg0[%626] : memref<8xi32, #tpu.memory_space<smem>>
    %c1_i32_390 = arith.constant 1 : i32
    %628 = arith.cmpi eq, %627, %c1_i32_390 : i32
    %629 = arith.extui %628 : i1 to i32
    %c0_i32_391 = arith.constant 0 : i32
    %630 = arith.cmpi ne, %629, %c0_i32_391 : i32
    scf.if %630 {
      %634 = arith.index_cast %c7_i32 : i32 to index
      %c0_395 = arith.constant 0 : index
      %c0_396 = arith.constant 0 : index
      %635 = vector.load %arg2[%634, %c0_395, %c0_396] : memref<8x16x128xbf16, #tpu.memory_space<vmem>>, vector<1x16x128xbf16>
      %636 = vector.shape_cast %635 : vector<1x16x128xbf16> to vector<16x128xbf16>
      %c0_397 = arith.constant 0 : index
      %c0_398 = arith.constant 0 : index
      %637 = vector.load %arg6[%c0_397, %c0_398] : memref<16x128xbf16, #tpu.memory_space<vmem>>, vector<16x128xbf16>
      tpu.vector_store %arg6[%c0_397, %c0_398], %636 {strides = array<i32>} : memref<16x128xbf16, #tpu.memory_space<vmem>>, vector<16x128xbf16>,
    } else {
    }
    %c0_i32_392 = arith.constant 0 : i32
    %631 = arith.cmpi eq, %627, %c0_i32_392 : i32
    %632 = arith.extui %631 : i1 to i32
    %c0_i32_393 = arith.constant 0 : i32
    %633 = arith.cmpi ne, %632, %c0_i32_393 : i32
    scf.if %633 {
      %634 = tpu.iota {dimensions = array<i32: 1>} : vector<16x128xi32>
      %635 = arith.sitofp %634 : vector<16x128xi32> to vector<16x128xf32>
      %cst_395 = arith.constant 3.200000e+01 : f32
      %636 = vector.broadcast %cst_395 : f32 to vector<16x128xf32>
      %637 = arith.cmpf olt, %635, %636 : vector<16x128xf32>
      %cst_396 = arith.constant -1.000000e+30 : f32
      %638 = vector.broadcast %cst_396 : f32 to vector<16x128xf32>
      %639 = arith.select %637, %621, %638 : vector<16x128xi1>, vector<16x128xf32>
      %cst_397 = arith.constant dense<0xFF800000> : vector<16xf32>
      %640 = vector.multi_reduction <maximumf>, %639, %cst_397 [1] : vector<16x128xf32> to vector<16xf32>
      %641 = vector.shape_cast %640 : vector<16xf32> to vector<16x1xf32>
      %642 = vector.broadcast %641 : vector<16x1xf32> to vector<16x128xf32>
      %643 = arith.cmpf oeq, %639, %642 : vector<16x128xf32>
      %cst_398 = arith.constant 1.280000e+02 : f32
      %644 = vector.broadcast %cst_398 : f32 to vector<16x128xf32>
      %645 = arith.select %643, %635, %644 : vector<16x128xi1>, vector<16x128xf32>
      %cst_399 = arith.constant dense<0x7F800000> : vector<16xf32>
      %646 = vector.multi_reduction <minimumf>, %645, %cst_399 [1] : vector<16x128xf32> to vector<16xf32>
      %647 = vector.shape_cast %646 : vector<16xf32> to vector<16x1xf32>
      %648 = vector.broadcast %647 : vector<16x1xf32> to vector<16x128xf32>
      %649 = arith.cmpf oeq, %635, %648 : vector<16x128xf32>
      %650 = arith.extui %649 : vector<16x128xi1> to vector<16x128xi32>
      %651 = arith.sitofp %650 : vector<16x128xi32> to vector<16x128xf32>
      %652 = arith.truncf %651 : vector<16x128xf32> to vector<16x128xbf16>
      %c0_400 = arith.constant 0 : index
      %c0_401 = arith.constant 0 : index
      %653 = vector.load %arg6[%c0_400, %c0_401] : memref<16x128xbf16, #tpu.memory_space<vmem>>, vector<16x128xbf16>
      tpu.vector_store %arg6[%c0_400, %c0_401], %652 {strides = array<i32>} : memref<16x128xbf16, #tpu.memory_space<vmem>>, vector<16x128xbf16>,
    } else {
    }
    %c7_i32_394 = arith.constant 7 : i32
    return
  }
}

</mosaic_0001>

<llo_original>
// kernel: seq2seq_forward.1
$region0: #{seq2seq_forward.1}
  #allocation0 [shape = 'u32[]', space=smem, size = 0x4, offset = 0x4, fixed_abs, tag = 'smem constant byte address 0x4 - core index']
  #allocation1 [shape = 'u32[144,128]{1,0:T(1,128)}', space=vmem, size = 0x12000, scoped, tag = 'internal scratch']
  #allocation2 [shape = 'bf16[16,128]{1,0:T(16,128)(2,1)}', space=vmem, size = 0x1000, scoped, tag = 'scratch operand']
  %s0 = inlined_call_operand.vmem [shape: s32[8], index: 0, kind: input, shape index: {}]
  %s1 = inlined_call_operand.vmem [shape: bf16[6,16,128], index: 1, kind: input, shape index: {}]
  %s2 = inlined_call_operand.vmem [shape: bf16[8,16,128], index: 2, kind: input, shape index: {}]
  %s3 = inlined_call_operand.hbm [shape: bf16[8,128,128], index: 3, kind: input, shape index: {}]
  %s4 = inlined_call_operand.vmem [shape: f32[5,16,128], index: 4, kind: input, shape index: {}]
  %s5 = inlined_call_operand.vmem [shape: f32[8,16,128], index: 5, kind: output, shape index: {}]
  %s6 = sld [smem:[#allocation0]]
  $region94: #{seq2seq_forward.1} parent=0
    _
  %s8 = ssub.s32 1, %s6
  %s9 = scalar_select 0, %s8, %s6
  $region1: #{seq2seq_forward.1} parent=0
    #allocation3 [shape = 'u8[512]{0}', space=smem, size = 0x200, scoped, tag = 'input window, operand 0, single buffered']
    #allocation4 [shape = 's32[1]{0}', space=sflag, size = 0x4, scoped, tag = 'scoped memory for seq2seq_forward.1']
    #allocation5 [shape = 's32[1]{0}', space=sflag, size = 0x4, scoped, tag = 'scoped memory for seq2seq_forward.1']
    #allocation6 [shape = 'u8[262144]{0}', space=vmem, size = 0x40000, scoped, tag = 'input window, operand 3, single buffered']
    %10 = vsyncpa [#allocation5], 0
    %11 = vsyncpa [#allocation4], 0
    // Predicated region
    $region2: #{seq2seq_forward.1} parent=1 // pred_check
      _
    $region3: #{seq2seq_forward.1} parent=1 // pred_check_branch
      %13 = sbr.rel (0) target = $region5
    $region4: #{seq2seq_forward.1} parent=1 // pred_region
      %s15 = ssub.s32 16, 16
      %16 = vsyncadd [#allocation5], %s15
      %s18 = sshll.u32 %s0, 4
      %s19 = int_to_ptr.vmem [resolvable:$true] %s18
      %21 = dma.vmem_to_smem %s19, 16, [#allocation3], [#allocation5]
    $region5: #{seq2seq_forward.1} parent=1 // pred_fallthru
      _
    // Predicated region
    $region6: #{seq2seq_forward.1} parent=1 // pred_check
      _
    $region7: #{seq2seq_forward.1} parent=1 // pred_check_branch
      %23 = sbr.rel (0) target = $region9
    $region8: #{seq2seq_forward.1} parent=1 // pred_region
      _
    $region9: #{seq2seq_forward.1} parent=1 // pred_fallthru
      _
    // Predicated region
    $region10: #{seq2seq_forward.1} parent=1 // pred_check
      _
    $region11: #{seq2seq_forward.1} parent=1 // pred_check_branch
      %25 = sbr.rel (0) target = $region13
    $region12: #{seq2seq_forward.1} parent=1 // pred_region
      _
    $region13: #{seq2seq_forward.1} parent=1 // pred_fallthru
      _
    // Predicated region
    $region14: #{seq2seq_forward.1} parent=1 // pred_check
      _
    $region15: #{seq2seq_forward.1} parent=1 // pred_check_branch
      %27 = sbr.rel (0) target = $region17
    $region16: #{seq2seq_forward.1} parent=1 // pred_region
      %s29 = ssub.s32 8192, 8192
      %30 = vsyncadd [#allocation4], %s29
      %s31 = sshll.u32 [#allocation6], 4
      %s32 = int_to_ptr.vmem [resolvable:$true] %s31
      %37 = dma.hbm_to_vmem [thread:$0]  %s3, 8192, %s32, [#allocation4], 64, 64, 4
    $region17: #{seq2seq_forward.1} parent=1 // pred_fallthru
      _
    // Predicated region
    $region18: #{seq2seq_forward.1} parent=1 // pred_check
      _
    $region19: #{seq2seq_forward.1} parent=1 // pred_check_branch
      %39 = sbr.rel (0) target = $region21
    $region20: #{seq2seq_forward.1} parent=1 // pred_region
      _
    $region21: #{seq2seq_forward.1} parent=1 // pred_fallthru
      _
    // Predicated region
    $region22: #{seq2seq_forward.1} parent=1 // pred_check
      _
    $region23: #{seq2seq_forward.1} parent=1 // pred_check_branch
      %41 = sbr.rel (0) target = $region25
    $region24: #{seq2seq_forward.1} parent=1 // pred_region
      %42 = dma.done [#allocation5], 16
    $region25: #{seq2seq_forward.1} parent=1 // pred_fallthru
      _
    // Predicated region
    $region26: #{seq2seq_forward.1} parent=1 // pred_check
      _
    $region27: #{seq2seq_forward.1} parent=1 // pred_check_branch
      %44 = sbr.rel (0) target = $region29
    $region28: #{seq2seq_forward.1} parent=1 // pred_region
      %45 = dma.done [#allocation4], 8192
    $region29: #{seq2seq_forward.1} parent=1 // pred_fallthru
      _
    %46 = sfence
    %v48 = vld [vmem:[%s1] sm:$0xf]
    %v49 = vld [vmem:[%s1 + $0x4] sm:$0xf]
    %v50 = vld [vmem:[#allocation6] sm:$0xf]
    %v51 = vld [vmem:[#allocation6 + $0x4] sm:$0xf]
    %v52 = vld [vmem:[#allocation6 + $0x8] sm:$0xf]
    %v53 = vld [vmem:[#allocation6 + $0xc] sm:$0xf]
    %v54 = vld [vmem:[#allocation6 + $0x10] sm:$0xf]
    %v55 = vld [vmem:[#allocation6 + $0x14] sm:$0xf]
    %v56 = vld [vmem:[#allocation6 + $0x18] sm:$0xf]
    %v57 = vld [vmem:[#allocation6 + $0x1c] sm:$0xf]
    %v58 = vld [vmem:[#allocation6 + $0x20] sm:$0xf]
    %v59 = vld [vmem:[#allocation6 + $0x24] sm:$0xf]
    %v60 = vld [vmem:[#allocation6 + $0x28] sm:$0xf]
    %v61 = vld [vmem:[#allocation6 + $0x2c] sm:$0xf]
    %v62 = vld [vmem:[#allocation6 + $0x30] sm:$0xf]
    %v63 = vld [vmem:[#allocation6 + $0x34] sm:$0xf]
    %v64 = vld [vmem:[#allocation6 + $0x38] sm:$0xf]
    %v65 = vld [vmem:[#allocation6 + $0x3c] sm:$0xf]
    %v66 = vld [vmem:[%s4] sm:$0xff]
    %v67 = vld [vmem:[%s4 + $0x8] sm:$0xff]
    %v70 = vunpack.c.l.b16 %v48
    %v71 = vunpack.c.l.b16 %v49
    %v72 = vpack.c.b16 %v71, %v70
    %v90 = vunpack.c.l.b16 %v50
    %v91 = vunpack.c.l.b16 %v51
    %v92 = vunpack.c.l.b16 %v52
    %v93 = vunpack.c.l.b16 %v53
    %v94 = vunpack.c.l.b16 %v54
    %v95 = vunpack.c.l.b16 %v55
    %v96 = vunpack.c.l.b16 %v56
    %v97 = vunpack.c.l.b16 %v57
    %v98 = vunpack.c.l.b16 %v58
    %v99 = vunpack.c.l.b16 %v59
    %v100 = vunpack.c.l.b16 %v60
    %v101 = vunpack.c.l.b16 %v61
    %v102 = vunpack.c.l.b16 %v62
    %v103 = vunpack.c.l.b16 %v63
    %v104 = vunpack.c.l.b16 %v64
    %v105 = vunpack.c.l.b16 %v65
    %v106 = vpack.c.b16 %v91, %v90
    %v107 = vpack.c.b16 %v93, %v92
    %v108 = vpack.c.b16 %v95, %v94
    %v109 = vpack.c.b16 %v97, %v96
    %v110 = vpack.c.b16 %v99, %v98
    %v111 = vpack.c.b16 %v101, %v100
    %v112 = vpack.c.b16 %v103, %v102
    %v113 = vpack.c.b16 %v105, %v104
    %122 = vmatprep.subr.bf16.mxu0 0
    %123 = vmatpush1.bf16.msra.mxu0 %v106
    %124 = vmatprep.subr.bf16.mxu0 0
    %125 = vmatpush1.bf16.msra.mxu0 %v107
    %126 = vmatprep.subr.bf16.mxu0 0
    %127 = vmatpush1.bf16.msra.mxu0 %v108
    %128 = vmatprep.subr.bf16.mxu0 0
    %129 = vmatpush1.bf16.msra.mxu0 %v109
    %130 = vmatprep.subr.bf16.mxu0 0
    %131 = vmatpush1.bf16.msra.mxu0 %v110
    %132 = vmatprep.subr.bf16.mxu0 0
    %133 = vmatpush1.bf16.msra.mxu0 %v111
    %134 = vmatprep.subr.bf16.mxu0 0
    %135 = vmatpush1.bf16.msra.mxu0 %v112
    %136 = vmatprep.subr.bf16.mxu0 0
    %137 = vmatpush1.bf16.msra.mxu0 %v113
    %138 = vmatprep.subr.bf16.mxu0 0
    %139 = vmatpush1.bf16.msra.mxu0 0
    %140 = vmatprep.subr.bf16.mxu0 0
    %141 = vmatpush1.bf16.msra.mxu0 0
    %142 = vmatprep.subr.bf16.mxu0 0
    %143 = vmatpush1.bf16.msra.mxu0 0
    %144 = vmatprep.subr.bf16.mxu0 0
    %145 = vmatpush1.bf16.msra.mxu0 0
    %146 = vmatprep.subr.bf16.mxu0 0
    %147 = vmatpush1.bf16.msra.mxu0 0
    %148 = vmatprep.subr.bf16.mxu0 0
    %149 = vmatpush1.bf16.msra.mxu0 0
    %150 = vmatprep.subr.bf16.mxu0 0
    %151 = vmatpush1.bf16.msra.mxu0 0
    %152 = vmatprep.subr.bf16.mxu0 0
    %153 = vmatpush1.bf16.msra.mxu0 0
    %154 = vmatprep.mubr.bf16.mxu0 0
    %155 = vmatmul.mubr.bf16.gmra.mrb[0].mxu0 %v72
    %v156 = vpop.f32.mrb[0].mxu0
    %v157 = vadd.f32 %v66, %v156
    %v158 = vpop.f32.mrb[0].mxu0
    %v159 = vpop.f32.mrb[0].mxu0
    %v160 = vadd.f32 %v67, %v159
    %v161 = vpop.f32.mrb[0].mxu0
    %162 = vdwg.mxu0
    %s163 = scalar_lea.vmem [#allocation6], 64
    %v164 = vld [vmem:[%s163] sm:$0xf]
    %v165 = vld [vmem:[%s163 + $0x4] sm:$0xf]
    %v166 = vld [vmem:[%s163 + $0x8] sm:$0xf]
    %v167 = vld [vmem:[%s163 + $0xc] sm:$0xf]
    %v168 = vld [vmem:[%s163 + $0x10] sm:$0xf]
    %v169 = vld [vmem:[%s163 + $0x14] sm:$0xf]
    %v170 = vld [vmem:[%s163 + $0x18] sm:$0xf]
    %v171 = vld [vmem:[%s163 + $0x1c] sm:$0xf]
    %v172 = vld [vmem:[%s163 + $0x20] sm:$0xf]
    %v173 = vld [vmem:[%s163 + $0x24] sm:$0xf]
    %v174 = vld [vmem:[%s163 + $0x28] sm:$0xf]
    %v175 = vld [vmem:[%s163 + $0x2c] sm:$0xf]
    %v176 = vld [vmem:[%s163 + $0x30] sm:$0xf]
    %v177 = vld [vmem:[%s163 + $0x34] sm:$0xf]
    %v178 = vld [vmem:[%s163 + $0x38] sm:$0xf]
    %v179 = vld [vmem:[%s163 + $0x3c] sm:$0xf]
    %s180 = scalar_lea.vmem %s4, 16
    %v181 = vld [vmem:[%s180] sm:$0xff]
    %v182 = vld [vmem:[%s180 + $0x8] sm:$0xff]
    %v199 = vunpack.c.l.b16 %v164
    %v200 = vunpack.c.l.b16 %v165
    %v201 = vunpack.c.l.b16 %v166
    %v202 = vunpack.c.l.b16 %v167
    %v203 = vunpack.c.l.b16 %v168
    %v204 = vunpack.c.l.b16 %v169
    %v205 = vunpack.c.l.b16 %v170
    %v206 = vunpack.c.l.b16 %v171
    %v207 = vunpack.c.l.b16 %v172
    %v208 = vunpack.c.l.b16 %v173
    %v209 = vunpack.c.l.b16 %v174
    %v210 = vunpack.c.l.b16 %v175
    %v211 = vunpack.c.l.b16 %v176
    %v212 = vunpack.c.l.b16 %v177
    %v213 = vunpack.c.l.b16 %v178
    %v214 = vunpack.c.l.b16 %v179
    %v215 = vpack.c.b16 %v200, %v199
    %v216 = vpack.c.b16 %v202, %v201
    %v217 = vpack.c.b16 %v204, %v203
    %v218 = vpack.c.b16 %v206, %v205
    %v219 = vpack.c.b16 %v208, %v207
    %v220 = vpack.c.b16 %v210, %v209
    %v221 = vpack.c.b16 %v212, %v211
    %v222 = vpack.c.b16 %v214, %v213
    %231 = vmatprep.subr.bf16.mxu0 0
    %232 = vmatpush1.bf16.msra.mxu0 %v215
    %233 = vmatprep.subr.bf16.mxu0 0
    %234 = vmatpush1.bf16.msra.mxu0 %v216
    %235 = vmatprep.subr.bf16.mxu0 0
    %236 = vmatpush1.bf16.msra.mxu0 %v217
    %237 = vmatprep.subr.bf16.mxu0 0
    %238 = vmatpush1.bf16.msra.mxu0 %v218
    %239 = vmatprep.subr.bf16.mxu0 0
    %240 = vmatpush1.bf16.msra.mxu0 %v219
    %241 = vmatprep.subr.bf16.mxu0 0
    %242 = vmatpush1.bf16.msra.mxu0 %v220
    %243 = vmatprep.subr.bf16.mxu0 0
    %244 = vmatpush1.bf16.msra.mxu0 %v221
    %245 = vmatprep.subr.bf16.mxu0 0
    %246 = vmatpush1.bf16.msra.mxu0 %v222
    %247 = vmatprep.subr.bf16.mxu0 0
    %248 = vmatpush1.bf16.msra.mxu0 0
    %249 = vmatprep.subr.bf16.mxu0 0
    %250 = vmatpush1.bf16.msra.mxu0 0
    %251 = vmatprep.subr.bf16.mxu0 0
    %252 = vmatpush1.bf16.msra.mxu0 0
    %253 = vmatprep.subr.bf16.mxu0 0
    %254 = vmatpush1.bf16.msra.mxu0 0
    %255 = vmatprep.subr.bf16.mxu0 0
    %256 = vmatpush1.bf16.msra.mxu0 0
    %257 = vmatprep.subr.bf16.mxu0 0
    %258 = vmatpush1.bf16.msra.mxu0 0
    %259 = vmatprep.subr.bf16.mxu0 0
    %260 = vmatpush1.bf16.msra.mxu0 0
    %261 = vmatprep.subr.bf16.mxu0 0
    %262 = vmatpush1.bf16.msra.mxu0 0
    %263 = vmatprep.mubr.bf16.mxu0 0
    %264 = vmatmul.mubr.bf16.gmra.mrb[0].mxu0 0
    %v265 = vpop.f32.mrb[0].mxu0
    %v266 = vadd.f32 %v181, %v265
    %v267 = vpop.f32.mrb[0].mxu0
    %v268 = vpop.f32.mrb[0].mxu0
    %v269 = vadd.f32 %v182, %v268
    %v270 = vpop.f32.mrb[0].mxu0
    %271 = vdwg.mxu0
    %v272 = vadd.f32 %v157, %v266
    %v273 = vadd.f32 %v160, %v269
    %v274 = vxor.u32 %v272, 2147483648
    %v275 = vxor.u32 %v273, 2147483648
    %v276 = vmul.f32 %v274, 1.442695
    %v277 = vpow.pop %v276
    %v278 = vmul.f32 %v275, 1.442695
    %v279 = vpow.pop %v278
    %v280 = vadd.f32 %v277, 1.0
    %v281 = vadd.f32 %v279, 1.0
    %v282 = vrcp.pop %v280
    %v283 = vmul.f32 1.0, %v282
    %v284 = vrcp.pop %v281
    %v285 = vmul.f32 1.0, %v284
    %286 = vrot.lane.b32.xlu0 %v283, 64
    %v287 = vpop.permute.xlu0 %286
    %288 = vrot.lane.b32.xlu0 %v285, 64
    %v289 = vpop.permute.xlu0 %288
    %v290 = vmul.f32 %v287, %v266
    %v291 = vmul.f32 %v289, %v269
    %v292 = vadd.f32 %v157, %v290
    %v293 = vadd.f32 %v160, %v291
    %v294 = vtanh.pop %v292
    %v295 = vtanh.pop %v293
    %296 = vrot.lane.b32.xlu0 %v294, 64
    %v297 = vpop.permute.xlu0 %296
    %298 = vrot.lane.b32.xlu0 %v295, 64
    %v299 = vpop.permute.xlu0 %298
    %300 = vrot.lane.b32.xlu0 %v283, 96
    %v301 = vpop.permute.xlu0 %300
    %302 = vrot.lane.b32.xlu0 %v285, 96
    %v303 = vpop.permute.xlu0 %302
    %v304 = vsub.f32 1.0, %v301
    %v305 = vsub.f32 1.0, %v303
    %v306 = vmul.f32 %v304, %v297
    %v307 = vmul.f32 %v305, %v299
    %v308 = vmul.f32 %v301, 0.0
    %v309 = vmul.f32 %v303, 0.0
    %v310 = vadd.f32 %v306, %v308
    %v311 = vadd.f32 %v307, %v309
    %v312 = vlaneseq
    %v313 = vand.u32 %v312, 127
    %vm314 = vcmp.lt.s32.totalorder %v313, 32
    %v315 = vsel %vm314, %v310, 0.0
    %v316 = vsel %vm314, %v311, 0.0
    %s317 = scalar_lea.vmem %s1, 8
    %v318 = vld [vmem:[%s317] sm:$0xf]
    %v319 = vld [vmem:[%s317 + $0x4] sm:$0xf]
    %v322 = vunpack.c.l.b16 %v318
    %v323 = vunpack.c.l.b16 %v319
    %v324 = vpack.c.b16 %v323, %v322
    %326 = vmatprep.subr.bf16.mxu0 0
    %327 = vmatpush1.bf16.msra.mxu0 %v106
    %328 = vmatprep.subr.bf16.mxu0 0
    %329 = vmatpush1.bf16.msra.mxu0 %v107
    %330 = vmatprep.subr.bf16.mxu0 0
    %331 = vmatpush1.bf16.msra.mxu0 %v108
    %332 = vmatprep.subr.bf16.mxu0 0
    %333 = vmatpush1.bf16.msra.mxu0 %v109
    %334 = vmatprep.subr.bf16.mxu0 0
    %335 = vmatpush1.bf16.msra.mxu0 %v110
    %336 = vmatprep.subr.bf16.mxu0 0
    %337 = vmatpush1.bf16.msra.mxu0 %v111
    %338 = vmatprep.subr.bf16.mxu0 0
    %339 = vmatpush1.bf16.msra.mxu0 %v112
    %340 = vmatprep.subr.bf16.mxu0 0
    %341 = vmatpush1.bf16.msra.mxu0 %v113
    %342 = vmatprep.subr.bf16.mxu0 0
    %343 = vmatpush1.bf16.msra.mxu0 0
    %344 = vmatprep.subr.bf16.mxu0 0
    %345 = vmatpush1.bf16.msra.mxu0 0
    %346 = vmatprep.subr.bf16.mxu0 0
    %347 = vmatpush1.bf16.msra.mxu0 0
    %348 = vmatprep.subr.bf16.mxu0 0
    %349 = vmatpush1.bf16.msra.mxu0 0
    %350 = vmatprep.subr.bf16.mxu0 0
    %351 = vmatpush1.bf16.msra.mxu0 0
    %352 = vmatprep.subr.bf16.mxu0 0
    %353 = vmatpush1.bf16.msra.mxu0 0
    %354 = vmatprep.subr.bf16.mxu0 0
    %355 = vmatpush1.bf16.msra.mxu0 0
    %356 = vmatprep.subr.bf16.mxu0 0
    %357 = vmatpush1.bf16.msra.mxu0 0
    %358 = vmatprep.mubr.bf16.mxu0 0
    %359 = vmatmul.mubr.bf16.gmra.mrb[0].mxu0 %v324
    %v360 = vpop.f32.mrb[0].mxu0
    %v361 = vadd.f32 %v66, %v360
    %v362 = vpop.f32.mrb[0].mxu0
    %v363 = vpop.f32.mrb[0].mxu0
    %v364 = vadd.f32 %v67, %v363
    %v365 = vpop.f32.mrb[0].mxu0
    %366 = vdwg.mxu0
    %v367 = vpack.c.bf16 %v316, %v315
    %368 = vmatprep.subr.bf16.mxu0 0
    %369 = vmatpush1.bf16.msra.mxu0 %v215
    %370 = vmatprep.subr.bf16.mxu0 0
    %371 = vmatpush1.bf16.msra.mxu0 %v216
    %372 = vmatprep.subr.bf16.mxu0 0
    %373 = vmatpush1.bf16.msra.mxu0 %v217
    %374 = vmatprep.subr.bf16.mxu0 0
    %375 = vmatpush1.bf16.msra.mxu0 %v218
    %376 = vmatprep.subr.bf16.mxu0 0
    %377 = vmatpush1.bf16.msra.mxu0 %v219
    %378 = vmatprep.subr.bf16.mxu0 0
    %379 = vmatpush1.bf16.msra.mxu0 %v220
    %380 = vmatprep.subr.bf16.mxu0 0
    %381 = vmatpush1.bf16.msra.mxu0 %v221
    %382 = vmatprep.subr.bf16.mxu0 0
    %383 = vmatpush1.bf16.msra.mxu0 %v222
    %384 = vmatprep.subr.bf16.mxu0 0
    %385 = vmatpush1.bf16.msra.mxu0 0
    %386 = vmatprep.subr.bf16.mxu0 0
    %387 = vmatpush1.bf16.msra.mxu0 0
    %388 = vmatprep.subr.bf16.mxu0 0
    %389 = vmatpush1.bf16.msra.mxu0 0
    %390 = vmatprep.subr.bf16.mxu0 0
    %391 = vmatpush1.bf16.msra.mxu0 0
    %392 = vmatprep.subr.bf16.mxu0 0
    %393 = vmatpush1.bf16.msra.mxu0 0
    %394 = vmatprep.subr.bf16.mxu0 0
    %395 = vmatpush1.bf16.msra.mxu0 0
    %396 = vmatprep.subr.bf16.mxu0 0
    %397 = vmatpush1.bf16.msra.mxu0 0
    %398 = vmatprep.subr.bf16.mxu0 0
    %399 = vmatpush1.bf16.msra.mxu0 0
    %400 = vmatprep.mubr.bf16.mxu0 0
    %401 = vmatmul.mubr.bf16.gmra.mrb[0].mxu0 %v367
    %v402 = vpop.f32.mrb[0].mxu0
    %v403 = vadd.f32 %v181, %v402
    %v404 = vpop.f32.mrb[0].mxu0
    %v405 = vpop.f32.mrb[0].mxu0
    %v406 = vadd.f32 %v182, %v405
    %v407 = vpop.f32.mrb[0].mxu0
    %408 = vdwg.mxu0
    %v409 = vadd.f32 %v361, %v403
    %v410 = vadd.f32 %v364, %v406
    %v411 = vxor.u32 %v409, 2147483648
    %v412 = vxor.u32 %v410, 2147483648
    %v413 = vmul.f32 %v411, 1.442695
    %v414 = vpow.pop %v413
    %v415 = vmul.f32 %v412, 1.442695
    %v416 = vpow.pop %v415
    %v417 = vadd.f32 %v414, 1.0
    %v418 = vadd.f32 %v416, 1.0
    %v419 = vrcp.pop %v417
    %v420 = vmul.f32 1.0, %v419
    %v421 = vrcp.pop %v418
    %v422 = vmul.f32 1.0, %v421
    %423 = vrot.lane.b32.xlu0 %v420, 64
    %v424 = vpop.permute.xlu0 %423
    %425 = vrot.lane.b32.xlu0 %v422, 64
    %v426 = vpop.permute.xlu0 %425
    %v427 = vmul.f32 %v424, %v403
    %v428 = vmul.f32 %v426, %v406
    %v429 = vadd.f32 %v361, %v427
    %v430 = vadd.f32 %v364, %v428
    %v431 = vtanh.pop %v429
    %v432 = vtanh.pop %v430
    %433 = vrot.lane.b32.xlu0 %v431, 64
    %v434 = vpop.permute.xlu0 %433
    %435 = vrot.lane.b32.xlu0 %v432, 64
    %v436 = vpop.permute.xlu0 %435
    %437 = vrot.lane.b32.xlu0 %v420, 96
    %v438 = vpop.permute.xlu0 %437
    %439 = vrot.lane.b32.xlu0 %v422, 96
    %v440 = vpop.permute.xlu0 %439
    %v441 = vsub.f32 1.0, %v438
    %v442 = vsub.f32 1.0, %v440
    %v443 = vmul.f32 %v441, %v434
    %v444 = vmul.f32 %v442, %v436
    %v445 = vmul.f32 %v438, %v315
    %v446 = vmul.f32 %v440, %v316
    %v447 = vadd.f32 %v443, %v445
    %v448 = vadd.f32 %v444, %v446
    %v449 = vsel %vm314, %v447, 0.0
    %v450 = vsel %vm314, %v448, 0.0
    %s451 = scalar_lea.vmem %s1, 16
    %v452 = vld [vmem:[%s451] sm:$0xf]
    %v453 = vld [vmem:[%s451 + $0x4] sm:$0xf]
    %v456 = vunpack.c.l.b16 %v452
    %v457 = vunpack.c.l.b16 %v453
    %v458 = vpack.c.b16 %v457, %v456
    %460 = vmatprep.subr.bf16.mxu0 0
    %461 = vmatpush1.bf16.msra.mxu0 %v106
    %462 = vmatprep.subr.bf16.mxu0 0
    %463 = vmatpush1.bf16.msra.mxu0 %v107
    %464 = vmatprep.subr.bf16.mxu0 0
    %465 = vmatpush1.bf16.msra.mxu0 %v108
    %466 = vmatprep.subr.bf16.mxu0 0
    %467 = vmatpush1.bf16.msra.mxu0 %v109
    %468 = vmatprep.subr.bf16.mxu0 0
    %469 = vmatpush1.bf16.msra.mxu0 %v110
    %470 = vmatprep.subr.bf16.mxu0 0
    %471 = vmatpush1.bf16.msra.mxu0 %v111
    %472 = vmatprep.subr.bf16.mxu0 0
    %473 = vmatpush1.bf16.msra.mxu0 %v112
    %474 = vmatprep.subr.bf16.mxu0 0
    %475 = vmatpush1.bf16.msra.mxu0 %v113
    %476 = vmatprep.subr.bf16.mxu0 0
    %477 = vmatpush1.bf16.msra.mxu0 0
    %478 = vmatprep.subr.bf16.mxu0 0
    %479 = vmatpush1.bf16.msra.mxu0 0
    %480 = vmatprep.subr.bf16.mxu0 0
    %481 = vmatpush1.bf16.msra.mxu0 0
    %482 = vmatprep.subr.bf16.mxu0 0
    %483 = vmatpush1.bf16.msra.mxu0 0
    %484 = vmatprep.subr.bf16.mxu0 0
    %485 = vmatpush1.bf16.msra.mxu0 0
    %486 = vmatprep.subr.bf16.mxu0 0
    %487 = vmatpush1.bf16.msra.mxu0 0
    %488 = vmatprep.subr.bf16.mxu0 0
    %489 = vmatpush1.bf16.msra.mxu0 0
    %490 = vmatprep.subr.bf16.mxu0 0
    %491 = vmatpush1.bf16.msra.mxu0 0
    %492 = vmatprep.mubr.bf16.mxu0 0
    %493 = vmatmul.mubr.bf16.gmra.mrb[0].mxu0 %v458
    %v494 = vpop.f32.mrb[0].mxu0
    %v495 = vadd.f32 %v66, %v494
    %v496 = vpop.f32.mrb[0].mxu0
    %v497 = vpop.f32.mrb[0].mxu0
    %v498 = vadd.f32 %v67, %v497
    %v499 = vpop.f32.mrb[0].mxu0
    %500 = vdwg.mxu0
    %v501 = vpack.c.bf16 %v450, %v449
    %502 = vmatprep.subr.bf16.mxu0 0
    %503 = vmatpush1.bf16.msra.mxu0 %v215
    %504 = vmatprep.subr.bf16.mxu0 0
    %505 = vmatpush1.bf16.msra.mxu0 %v216
    %506 = vmatprep.subr.bf16.mxu0 0
    %507 = vmatpush1.bf16.msra.mxu0 %v217
    %508 = vmatprep.subr.bf16.mxu0 0
    %509 = vmatpush1.bf16.msra.mxu0 %v218
    %510 = vmatprep.subr.bf16.mxu0 0
    %511 = vmatpush1.bf16.msra.mxu0 %v219
    %512 = vmatprep.subr.bf16.mxu0 0
    %513 = vmatpush1.bf16.msra.mxu0 %v220
    %514 = vmatprep.subr.bf16.mxu0 0
    %515 = vmatpush1.bf16.msra.mxu0 %v221
    %516 = vmatprep.subr.bf16.mxu0 0
    %517 = vmatpush1.bf16.msra.mxu0 %v222
    %518 = vmatprep.subr.bf16.mxu0 0
    %519 = vmatpush1.bf16.msra.mxu0 0
    %520 = vmatprep.subr.bf16.mxu0 0
    %521 = vmatpush1.bf16.msra.mxu0 0
    %522 = vmatprep.subr.bf16.mxu0 0
    %523 = vmatpush1.bf16.msra.mxu0 0
    %524 = vmatprep.subr.bf16.mxu0 0
    %525 = vmatpush1.bf16.msra.mxu0 0
    %526 = vmatprep.subr.bf16.mxu0 0
    %527 = vmatpush1.bf16.msra.mxu0 0
    %528 = vmatprep.subr.bf16.mxu0 0
    %529 = vmatpush1.bf16.msra.mxu0 0
    %530 = vmatprep.subr.bf16.mxu0 0
    %531 = vmatpush1.bf16.msra.mxu0 0
    %532 = vmatprep.subr.bf16.mxu0 0
    %533 = vmatpush1.bf16.msra.mxu0 0
    %534 = vmatprep.mubr.bf16.mxu0 0
    %535 = vmatmul.mubr.bf16.gmra.mrb[0].mxu0 %v501
    %v536 = vpop.f32.mrb[0].mxu0
    %v537 = vadd.f32 %v181, %v536
    %v538 = vpop.f32.mrb[0].mxu0
    %v539 = vpop.f32.mrb[0].mxu0
    %v540 = vadd.f32 %v182, %v539
    %v541 = vpop.f32.mrb[0].mxu0
    %542 = vdwg.mxu0
    %v543 = vadd.f32 %v495, %v537
    %v544 = vadd.f32 %v498, %v540
    %v545 = vxor.u32 %v543, 2147483648
    %v546 = vxor.u32 %v544, 2147483648
    %v547 = vmul.f32 %v545, 1.442695
    %v548 = vpow.pop %v547
    %v549 = vmul.f32 %v546, 1.442695
    %v550 = vpow.pop %v549
    %v551 = vadd.f32 %v548, 1.0
    %v552 = vadd.f32 %v550, 1.0
    %v553 = vrcp.pop %v551
    %v554 = vmul.f32 1.0, %v553
    %v555 = vrcp.pop %v552
    %v556 = vmul.f32 1.0, %v555
    %557 = vrot.lane.b32.xlu0 %v554, 64
    %v558 = vpop.permute.xlu0 %557
    %559 = vrot.lane.b32.xlu0 %v556, 64
    %v560 = vpop.permute.xlu0 %559
    %v561 = vmul.f32 %v558, %v537
    %v562 = vmul.f32 %v560, %v540
    %v563 = vadd.f32 %v495, %v561
    %v564 = vadd.f32 %v498, %v562
    %v565 = vtanh.pop %v563
    %v566 = vtanh.pop %v564
    %567 = vrot.lane.b32.xlu0 %v565, 64
    %v568 = vpop.permute.xlu0 %567
    %569 = vrot.lane.b32.xlu0 %v566, 64
    %v570 = vpop.permute.xlu0 %569
    %571 = vrot.lane.b32.xlu0 %v554, 96
    %v572 = vpop.permute.xlu0 %571
    %573 = vrot.lane.b32.xlu0 %v556, 96
    %v574 = vpop.permute.xlu0 %573
    %v575 = vsub.f32 1.0, %v572
    %v576 = vsub.f32 1.0, %v574
    %v577 = vmul.f32 %v575, %v568
    %v578 = vmul.f32 %v576, %v570
    %v579 = vmul.f32 %v572, %v449
    %v580 = vmul.f32 %v574, %v450
    %v581 = vadd.f32 %v577, %v579
    %v582 = vadd.f32 %v578, %v580
    %v583 = vsel %vm314, %v581, 0.0
    %v584 = vsel %vm314, %v582, 0.0
    %s585 = scalar_lea.vmem %s1, 24
    %v586 = vld [vmem:[%s585] sm:$0xf]
    %v587 = vld [vmem:[%s585 + $0x4] sm:$0xf]
    %v590 = vunpack.c.l.b16 %v586
    %v591 = vunpack.c.l.b16 %v587
    %v592 = vpack.c.b16 %v591, %v590
    %594 = vmatprep.subr.bf16.mxu0 0
    %595 = vmatpush1.bf16.msra.mxu0 %v106
    %596 = vmatprep.subr.bf16.mxu0 0
    %597 = vmatpush1.bf16.msra.mxu0 %v107
    %598 = vmatprep.subr.bf16.mxu0 0
    %599 = vmatpush1.bf16.msra.mxu0 %v108
    %600 = vmatprep.subr.bf16.mxu0 0
    %601 = vmatpush1.bf16.msra.mxu0 %v109
    %602 = vmatprep.subr.bf16.mxu0 0
    %603 = vmatpush1.bf16.msra.mxu0 %v110
    %604 = vmatprep.subr.bf16.mxu0 0
    %605 = vmatpush1.bf16.msra.mxu0 %v111
    %606 = vmatprep.subr.bf16.mxu0 0
    %607 = vmatpush1.bf16.msra.mxu0 %v112
    %608 = vmatprep.subr.bf16.mxu0 0
    %609 = vmatpush1.bf16.msra.mxu0 %v113
    %610 = vmatprep.subr.bf16.mxu0 0
    %611 = vmatpush1.bf16.msra.mxu0 0
    %612 = vmatprep.subr.bf16.mxu0 0
    %613 = vmatpush1.bf16.msra.mxu0 0
    %614 = vmatprep.subr.bf16.mxu0 0
    %615 = vmatpush1.bf16.msra.mxu0 0
    %616 = vmatprep.subr.bf16.mxu0 0
    %617 = vmatpush1.bf16.msra.mxu0 0
    %618 = vmatprep.subr.bf16.mxu0 0
    %619 = vmatpush1.bf16.msra.mxu0 0
    %620 = vmatprep.subr.bf16.mxu0 0
    %621 = vmatpush1.bf16.msra.mxu0 0
    %622 = vmatprep.subr.bf16.mxu0 0
    %623 = vmatpush1.bf16.msra.mxu0 0
    %624 = vmatprep.subr.bf16.mxu0 0
    %625 = vmatpush1.bf16.msra.mxu0 0
    %626 = vmatprep.mubr.bf16.mxu0 0
    %627 = vmatmul.mubr.bf16.gmra.mrb[0].mxu0 %v592
    %v628 = vpop.f32.mrb[0].mxu0
    %v629 = vadd.f32 %v66, %v628
    %v630 = vpop.f32.mrb[0].mxu0
    %v631 = vpop.f32.mrb[0].mxu0
    %v632 = vadd.f32 %v67, %v631
    %v633 = vpop.f32.mrb[0].mxu0
    %634 = vdwg.mxu0
    %v635 = vpack.c.bf16 %v584, %v583
    %636 = vmatprep.subr.bf16.mxu0 0
    %637 = vmatpush1.bf16.msra.mxu0 %v215
    %638 = vmatprep.subr.bf16.mxu0 0
    %639 = vmatpush1.bf16.msra.mxu0 %v216
    %640 = vmatprep.subr.bf16.mxu0 0
    %641 = vmatpush1.bf16.msra.mxu0 %v217
    %642 = vmatprep.subr.bf16.mxu0 0
    %643 = vmatpush1.bf16.msra.mxu0 %v218
    %644 = vmatprep.subr.bf16.mxu0 0
    %645 = vmatpush1.bf16.msra.mxu0 %v219
    %646 = vmatprep.subr.bf16.mxu0 0
    %647 = vmatpush1.bf16.msra.mxu0 %v220
    %648 = vmatprep.subr.bf16.mxu0 0
    %649 = vmatpush1.bf16.msra.mxu0 %v221
    %650 = vmatprep.subr.bf16.mxu0 0
    %651 = vmatpush1.bf16.msra.mxu0 %v222
    %652 = vmatprep.subr.bf16.mxu0 0
    %653 = vmatpush1.bf16.msra.mxu0 0
    %654 = vmatprep.subr.bf16.mxu0 0
    %655 = vmatpush1.bf16.msra.mxu0 0
    %656 = vmatprep.subr.bf16.mxu0 0
    %657 = vmatpush1.bf16.msra.mxu0 0
    %658 = vmatprep.subr.bf16.mxu0 0
    %659 = vmatpush1.bf16.msra.mxu0 0
    %660 = vmatprep.subr.bf16.mxu0 0
    %661 = vmatpush1.bf16.msra.mxu0 0
    %662 = vmatprep.subr.bf16.mxu0 0
    %663 = vmatpush1.bf16.msra.mxu0 0
    %664 = vmatprep.subr.bf16.mxu0 0
    %665 = vmatpush1.bf16.msra.mxu0 0
    %666 = vmatprep.subr.bf16.mxu0 0
    %667 = vmatpush1.bf16.msra.mxu0 0
    %668 = vmatprep.mubr.bf16.mxu0 0
    %669 = vmatmul.mubr.bf16.gmra.mrb[0].mxu0 %v635
    %v670 = vpop.f32.mrb[0].mxu0
    %v671 = vadd.f32 %v181, %v670
    %v672 = vpop.f32.mrb[0].mxu0
    %v673 = vpop.f32.mrb[0].mxu0
    %v674 = vadd.f32 %v182, %v673
    %v675 = vpop.f32.mrb[0].mxu0
    %676 = vdwg.mxu0
    %v677 = vadd.f32 %v629, %v671
    %v678 = vadd.f32 %v632, %v674
    %v679 = vxor.u32 %v677, 2147483648
    %v680 = vxor.u32 %v678, 2147483648
    %v681 = vmul.f32 %v679, 1.442695
    %v682 = vpow.pop %v681
    %v683 = vmul.f32 %v680, 1.442695
    %v684 = vpow.pop %v683
    %v685 = vadd.f32 %v682, 1.0
    %v686 = vadd.f32 %v684, 1.0
    %v687 = vrcp.pop %v685
    %v688 = vmul.f32 1.0, %v687
    %v689 = vrcp.pop %v686
    %v690 = vmul.f32 1.0, %v689
    %691 = vrot.lane.b32.xlu0 %v688, 64
    %v692 = vpop.permute.xlu0 %691
    %693 = vrot.lane.b32.xlu0 %v690, 64
    %v694 = vpop.permute.xlu0 %693
    %v695 = vmul.f32 %v692, %v671
    %v696 = vmul.f32 %v694, %v674
    %v697 = vadd.f32 %v629, %v695
    %v698 = vadd.f32 %v632, %v696
    %v699 = vtanh.pop %v697
    %v700 = vtanh.pop %v698
    %701 = vrot.lane.b32.xlu0 %v699, 64
    %v702 = vpop.permute.xlu0 %701
    %703 = vrot.lane.b32.xlu0 %v700, 64
    %v704 = vpop.permute.xlu0 %703
    %705 = vrot.lane.b32.xlu0 %v688, 96
    %v706 = vpop.permute.xlu0 %705
    %707 = vrot.lane.b32.xlu0 %v690, 96
    %v708 = vpop.permute.xlu0 %707
    %v709 = vsub.f32 1.0, %v706
    %v710 = vsub.f32 1.0, %v708
    %v711 = vmul.f32 %v709, %v702
    %v712 = vmul.f32 %v710, %v704
    %v713 = vmul.f32 %v706, %v583
    %v714 = vmul.f32 %v708, %v584
    %v715 = vadd.f32 %v711, %v713
    %v716 = vadd.f32 %v712, %v714
    %v717 = vsel %vm314, %v715, 0.0
    %v718 = vsel %vm314, %v716, 0.0
    %s719 = scalar_lea.vmem %s1, 32
    %v720 = vld [vmem:[%s719] sm:$0xf]
    %v721 = vld [vmem:[%s719 + $0x4] sm:$0xf]
    %v724 = vunpack.c.l.b16 %v720
    %v725 = vunpack.c.l.b16 %v721
    %v726 = vpack.c.b16 %v725, %v724
    %728 = vmatprep.subr.bf16.mxu0 0
    %729 = vmatpush1.bf16.msra.mxu0 %v106
    %730 = vmatprep.subr.bf16.mxu0 0
    %731 = vmatpush1.bf16.msra.mxu0 %v107
    %732 = vmatprep.subr.bf16.mxu0 0
    %733 = vmatpush1.bf16.msra.mxu0 %v108
    %734 = vmatprep.subr.bf16.mxu0 0
    %735 = vmatpush1.bf16.msra.mxu0 %v109
    %736 = vmatprep.subr.bf16.mxu0 0
    %737 = vmatpush1.bf16.msra.mxu0 %v110
    %738 = vmatprep.subr.bf16.mxu0 0
    %739 = vmatpush1.bf16.msra.mxu0 %v111
    %740 = vmatprep.subr.bf16.mxu0 0
    %741 = vmatpush1.bf16.msra.mxu0 %v112
    %742 = vmatprep.subr.bf16.mxu0 0
    %743 = vmatpush1.bf16.msra.mxu0 %v113
    %744 = vmatprep.subr.bf16.mxu0 0
    %745 = vmatpush1.bf16.msra.mxu0 0
    %746 = vmatprep.subr.bf16.mxu0 0
    %747 = vmatpush1.bf16.msra.mxu0 0
    %748 = vmatprep.subr.bf16.mxu0 0
    %749 = vmatpush1.bf16.msra.mxu0 0
    %750 = vmatprep.subr.bf16.mxu0 0
    %751 = vmatpush1.bf16.msra.mxu0 0
    %752 = vmatprep.subr.bf16.mxu0 0
    %753 = vmatpush1.bf16.msra.mxu0 0
    %754 = vmatprep.subr.bf16.mxu0 0
    %755 = vmatpush1.bf16.msra.mxu0 0
    %756 = vmatprep.subr.bf16.mxu0 0
    %757 = vmatpush1.bf16.msra.mxu0 0
    %758 = vmatprep.subr.bf16.mxu0 0
    %759 = vmatpush1.bf16.msra.mxu0 0
    %760 = vmatprep.mubr.bf16.mxu0 0
    %761 = vmatmul.mubr.bf16.gmra.mrb[0].mxu0 %v726
    %v762 = vpop.f32.mrb[0].mxu0
    %v763 = vadd.f32 %v66, %v762
    %v764 = vpop.f32.mrb[0].mxu0
    %v765 = vpop.f32.mrb[0].mxu0
    %v766 = vadd.f32 %v67, %v765
    %v767 = vpop.f32.mrb[0].mxu0
    %768 = vdwg.mxu0
    %v769 = vpack.c.bf16 %v718, %v717
    %770 = vmatprep.subr.bf16.mxu0 0
    %771 = vmatpush1.bf16.msra.mxu0 %v215
    %772 = vmatprep.subr.bf16.mxu0 0
    %773 = vmatpush1.bf16.msra.mxu0 %v216
    %774 = vmatprep.subr.bf16.mxu0 0
    %775 = vmatpush1.bf16.msra.mxu0 %v217
    %776 = vmatprep.subr.bf16.mxu0 0
    %777 = vmatpush1.bf16.msra.mxu0 %v218
    %778 = vmatprep.subr.bf16.mxu0 0
    %779 = vmatpush1.bf16.msra.mxu0 %v219
    %780 = vmatprep.subr.bf16.mxu0 0
    %781 = vmatpush1.bf16.msra.mxu0 %v220
    %782 = vmatprep.subr.bf16.mxu0 0
    %783 = vmatpush1.bf16.msra.mxu0 %v221
    %784 = vmatprep.subr.bf16.mxu0 0
    %785 = vmatpush1.bf16.msra.mxu0 %v222
    %786 = vmatprep.subr.bf16.mxu0 0
    %787 = vmatpush1.bf16.msra.mxu0 0
    %788 = vmatprep.subr.bf16.mxu0 0
    %789 = vmatpush1.bf16.msra.mxu0 0
    %790 = vmatprep.subr.bf16.mxu0 0
    %791 = vmatpush1.bf16.msra.mxu0 0
    %792 = vmatprep.subr.bf16.mxu0 0
    %793 = vmatpush1.bf16.msra.mxu0 0
    %794 = vmatprep.subr.bf16.mxu0 0
    %795 = vmatpush1.bf16.msra.mxu0 0
    %796 = vmatprep.subr.bf16.mxu0 0
    %797 = vmatpush1.bf16.msra.mxu0 0
    %798 = vmatprep.subr.bf16.mxu0 0
    %799 = vmatpush1.bf16.msra.mxu0 0
    %800 = vmatprep.subr.bf16.mxu0 0
    %801 = vmatpush1.bf16.msra.mxu0 0
    %802 = vmatprep.mubr.bf16.mxu0 0
    %803 = vmatmul.mubr.bf16.gmra.mrb[0].mxu0 %v769
    %v804 = vpop.f32.mrb[0].mxu0
    %v805 = vadd.f32 %v181, %v804
    %v806 = vpop.f32.mrb[0].mxu0
    %v807 = vpop.f32.mrb[0].mxu0
    %v808 = vadd.f32 %v182, %v807
    %v809 = vpop.f32.mrb[0].mxu0
    %810 = vdwg.mxu0
    %v811 = vadd.f32 %v763, %v805
    %v812 = vadd.f32 %v766, %v808
    %v813 = vxor.u32 %v811, 2147483648
    %v814 = vxor.u32 %v812, 2147483648
    %v815 = vmul.f32 %v813, 1.442695
    %v816 = vpow.pop %v815
    %v817 = vmul.f32 %v814, 1.442695
    %v818 = vpow.pop %v817
    %v819 = vadd.f32 %v816, 1.0
    %v820 = vadd.f32 %v818, 1.0
    %v821 = vrcp.pop %v819
    %v822 = vmul.f32 1.0, %v821
    %v823 = vrcp.pop %v820
    %v824 = vmul.f32 1.0, %v823
    %825 = vrot.lane.b32.xlu0 %v822, 64
    %v826 = vpop.permute.xlu0 %825
    %827 = vrot.lane.b32.xlu0 %v824, 64
    %v828 = vpop.permute.xlu0 %827
    %v829 = vmul.f32 %v826, %v805
    %v830 = vmul.f32 %v828, %v808
    %v831 = vadd.f32 %v763, %v829
    %v832 = vadd.f32 %v766, %v830
    %v833 = vtanh.pop %v831
    %v834 = vtanh.pop %v832
    %835 = vrot.lane.b32.xlu0 %v833, 64
    %v836 = vpop.permute.xlu0 %835
    %837 = vrot.lane.b32.xlu0 %v834, 64
    %v838 = vpop.permute.xlu0 %837
    %839 = vrot.lane.b32.xlu0 %v822, 96
    %v840 = vpop.permute.xlu0 %839
    %841 = vrot.lane.b32.xlu0 %v824, 96
    %v842 = vpop.permute.xlu0 %841
    %v843 = vsub.f32 1.0, %v840
    %v844 = vsub.f32 1.0, %v842
    %v845 = vmul.f32 %v843, %v836
    %v846 = vmul.f32 %v844, %v838
    %v847 = vmul.f32 %v840, %v717
    %v848 = vmul.f32 %v842, %v718
    %v849 = vadd.f32 %v845, %v847
    %v850 = vadd.f32 %v846, %v848
    %v851 = vsel %vm314, %v849, 0.0
    %v852 = vsel %vm314, %v850, 0.0
    %s853 = scalar_lea.vmem %s1, 40
    %v854 = vld [vmem:[%s853] sm:$0xf]
    %v855 = vld [vmem:[%s853 + $0x4] sm:$0xf]
    %v858 = vunpack.c.l.b16 %v854
    %v859 = vunpack.c.l.b16 %v855
    %v860 = vpack.c.b16 %v859, %v858
    %862 = vmatprep.subr.bf16.mxu0 0
    %863 = vmatpush1.bf16.msra.mxu0 %v106
    %864 = vmatprep.subr.bf16.mxu0 0
    %865 = vmatpush1.bf16.msra.mxu0 %v107
    %866 = vmatprep.subr.bf16.mxu0 0
    %867 = vmatpush1.bf16.msra.mxu0 %v108
    %868 = vmatprep.subr.bf16.mxu0 0
    %869 = vmatpush1.bf16.msra.mxu0 %v109
    %870 = vmatprep.subr.bf16.mxu0 0
    %871 = vmatpush1.bf16.msra.mxu0 %v110
    %872 = vmatprep.subr.bf16.mxu0 0
    %873 = vmatpush1.bf16.msra.mxu0 %v111
    %874 = vmatprep.subr.bf16.mxu0 0
    %875 = vmatpush1.bf16.msra.mxu0 %v112
    %876 = vmatprep.subr.bf16.mxu0 0
    %877 = vmatpush1.bf16.msra.mxu0 %v113
    %878 = vmatprep.subr.bf16.mxu0 0
    %879 = vmatpush1.bf16.msra.mxu0 0
    %880 = vmatprep.subr.bf16.mxu0 0
    %881 = vmatpush1.bf16.msra.mxu0 0
    %882 = vmatprep.subr.bf16.mxu0 0
    %883 = vmatpush1.bf16.msra.mxu0 0
    %884 = vmatprep.subr.bf16.mxu0 0
    %885 = vmatpush1.bf16.msra.mxu0 0
    %886 = vmatprep.subr.bf16.mxu0 0
    %887 = vmatpush1.bf16.msra.mxu0 0
    %888 = vmatprep.subr.bf16.mxu0 0
    %889 = vmatpush1.bf16.msra.mxu0 0
    %890 = vmatprep.subr.bf16.mxu0 0
    %891 = vmatpush1.bf16.msra.mxu0 0
    %892 = vmatprep.subr.bf16.mxu0 0
    %893 = vmatpush1.bf16.msra.mxu0 0
    %894 = vmatprep.mubr.bf16.mxu0 0
    %895 = vmatmul.mubr.bf16.gmra.mrb[0].mxu0 %v860
    %v896 = vpop.f32.mrb[0].mxu0
    %v897 = vadd.f32 %v66, %v896
    %v898 = vpop.f32.mrb[0].mxu0
    %v899 = vpop.f32.mrb[0].mxu0
    %v900 = vadd.f32 %v67, %v899
    %v901 = vpop.f32.mrb[0].mxu0
    %902 = vdwg.mxu0
    %v903 = vpack.c.bf16 %v852, %v851
    %904 = vmatprep.subr.bf16.mxu0 0
    %905 = vmatpush1.bf16.msra.mxu0 %v215
    %906 = vmatprep.subr.bf16.mxu0 0
    %907 = vmatpush1.bf16.msra.mxu0 %v216
    %908 = vmatprep.subr.bf16.mxu0 0
    %909 = vmatpush1.bf16.msra.mxu0 %v217
    %910 = vmatprep.subr.bf16.mxu0 0
    %911 = vmatpush1.bf16.msra.mxu0 %v218
    %912 = vmatprep.subr.bf16.mxu0 0
    %913 = vmatpush1.bf16.msra.mxu0 %v219
    %914 = vmatprep.subr.bf16.mxu0 0
    %915 = vmatpush1.bf16.msra.mxu0 %v220
    %916 = vmatprep.subr.bf16.mxu0 0
    %917 = vmatpush1.bf16.msra.mxu0 %v221
    %918 = vmatprep.subr.bf16.mxu0 0
    %919 = vmatpush1.bf16.msra.mxu0 %v222
    %920 = vmatprep.subr.bf16.mxu0 0
    %921 = vmatpush1.bf16.msra.mxu0 0
    %922 = vmatprep.subr.bf16.mxu0 0
    %923 = vmatpush1.bf16.msra.mxu0 0
    %924 = vmatprep.subr.bf16.mxu0 0
    %925 = vmatpush1.bf16.msra.mxu0 0
    %926 = vmatprep.subr.bf16.mxu0 0
    %927 = vmatpush1.bf16.msra.mxu0 0
    %928 = vmatprep.subr.bf16.mxu0 0
    %929 = vmatpush1.bf16.msra.mxu0 0
    %930 = vmatprep.subr.bf16.mxu0 0
    %931 = vmatpush1.bf16.msra.mxu0 0
    %932 = vmatprep.subr.bf16.mxu0 0
    %933 = vmatpush1.bf16.msra.mxu0 0
    %934 = vmatprep.subr.bf16.mxu0 0
    %935 = vmatpush1.bf16.msra.mxu0 0
    %936 = vmatprep.mubr.bf16.mxu0 0
    %937 = vmatmul.mubr.bf16.gmra.mrb[0].mxu0 %v903
    %v938 = vpop.f32.mrb[0].mxu0
    %v939 = vadd.f32 %v181, %v938
    %v940 = vpop.f32.mrb[0].mxu0
    %v941 = vpop.f32.mrb[0].mxu0
    %v942 = vadd.f32 %v182, %v941
    %v943 = vpop.f32.mrb[0].mxu0
    %944 = vdwg.mxu0
    %v945 = vadd.f32 %v897, %v939
    %v946 = vadd.f32 %v900, %v942
    %v947 = vxor.u32 %v945, 2147483648
    %v948 = vxor.u32 %v946, 2147483648
    %v949 = vmul.f32 %v947, 1.442695
    %v950 = vpow.pop %v949
    %v951 = vmul.f32 %v948, 1.442695
    %v952 = vpow.pop %v951
    %v953 = vadd.f32 %v950, 1.0
    %v954 = vadd.f32 %v952, 1.0
    %v955 = vrcp.pop %v953
    %v956 = vmul.f32 1.0, %v955
    %v957 = vrcp.pop %v954
    %v958 = vmul.f32 1.0, %v957
    %959 = vrot.lane.b32.xlu0 %v956, 64
    %v960 = vpop.permute.xlu0 %959
    %961 = vrot.lane.b32.xlu0 %v958, 64
    %v962 = vpop.permute.xlu0 %961
    %v963 = vmul.f32 %v960, %v939
    %v964 = vmul.f32 %v962, %v942
    %v965 = vadd.f32 %v897, %v963
    %v966 = vadd.f32 %v900, %v964
    %v967 = vtanh.pop %v965
    %v968 = vtanh.pop %v966
    %969 = vrot.lane.b32.xlu0 %v967, 64
    %v970 = vpop.permute.xlu0 %969
    %971 = vrot.lane.b32.xlu0 %v968, 64
    %v972 = vpop.permute.xlu0 %971
    %973 = vrot.lane.b32.xlu0 %v956, 96
    %v974 = vpop.permute.xlu0 %973
    %975 = vrot.lane.b32.xlu0 %v958, 96
    %v976 = vpop.permute.xlu0 %975
    %v977 = vsub.f32 1.0, %v974
    %v978 = vsub.f32 1.0, %v976
    %v979 = vmul.f32 %v977, %v970
    %v980 = vmul.f32 %v978, %v972
    %v981 = vmul.f32 %v974, %v851
    %v982 = vmul.f32 %v976, %v852
    %v983 = vadd.f32 %v979, %v981
    %v984 = vadd.f32 %v980, %v982
    %v985 = vsel %vm314, %v983, 0.0
    %v986 = vsel %vm314, %v984, 0.0
    %v987 = vpack.c.bf16 %v986, %v985
    %s988 = scalar_lea.vmem [#allocation6], 192
    %v989 = vld [vmem:[%s988] sm:$0xf]
    %v990 = vld [vmem:[%s988 + $0x4] sm:$0xf]
    %v991 = vld [vmem:[%s988 + $0x8] sm:$0xf]
    %v992 = vld [vmem:[%s988 + $0xc] sm:$0xf]
    %v993 = vld [vmem:[%s988 + $0x10] sm:$0xf]
    %v994 = vld [vmem:[%s988 + $0x14] sm:$0xf]
    %v995 = vld [vmem:[%s988 + $0x18] sm:$0xf]
    %v996 = vld [vmem:[%s988 + $0x1c] sm:$0xf]
    %v997 = vld [vmem:[%s988 + $0x20] sm:$0xf]
    %v998 = vld [vmem:[%s988 + $0x24] sm:$0xf]
    %v999 = vld [vmem:[%s988 + $0x28] sm:$0xf]
    %v1000 = vld [vmem:[%s988 + $0x2c] sm:$0xf]
    %v1001 = vld [vmem:[%s988 + $0x30] sm:$0xf]
    %v1002 = vld [vmem:[%s988 + $0x34] sm:$0xf]
    %v1003 = vld [vmem:[%s988 + $0x38] sm:$0xf]
    %v1004 = vld [vmem:[%s988 + $0x3c] sm:$0xf]
    %s1005 = scalar_lea.vmem %s4, 32
    %v1006 = vld [vmem:[%s1005] sm:$0xff]
    %v1007 = vld [vmem:[%s1005 + $0x8] sm:$0xff]
    %v1024 = vunpack.c.l.b16 %v989
    %v1025 = vunpack.c.l.b16 %v990
    %v1026 = vunpack.c.l.b16 %v991
    %v1027 = vunpack.c.l.b16 %v992
    %v1028 = vunpack.c.l.b16 %v993
    %v1029 = vunpack.c.l.b16 %v994
    %v1030 = vunpack.c.l.b16 %v995
    %v1031 = vunpack.c.l.b16 %v996
    %v1032 = vunpack.c.l.b16 %v997
    %v1033 = vunpack.c.l.b16 %v998
    %v1034 = vunpack.c.l.b16 %v999
    %v1035 = vunpack.c.l.b16 %v1000
    %v1036 = vunpack.c.l.b16 %v1001
    %v1037 = vunpack.c.l.b16 %v1002
    %v1038 = vunpack.c.l.b16 %v1003
    %v1039 = vunpack.c.l.b16 %v1004
    %v1040 = vpack.c.b16 %v1025, %v1024
    %v1041 = vpack.c.b16 %v1027, %v1026
    %v1042 = vpack.c.b16 %v1029, %v1028
    %v1043 = vpack.c.b16 %v1031, %v1030
    %v1044 = vpack.c.b16 %v1033, %v1032
    %v1045 = vpack.c.b16 %v1035, %v1034
    %v1046 = vpack.c.b16 %v1037, %v1036
    %v1047 = vpack.c.b16 %v1039, %v1038
    %1056 = vmatprep.subr.bf16.mxu0 0
    %1057 = vmatpush1.bf16.msra.mxu0 %v1040
    %1058 = vmatprep.subr.bf16.mxu0 0
    %1059 = vmatpush1.bf16.msra.mxu0 %v1041
    %1060 = vmatprep.subr.bf16.mxu0 0
    %1061 = vmatpush1.bf16.msra.mxu0 %v1042
    %1062 = vmatprep.subr.bf16.mxu0 0
    %1063 = vmatpush1.bf16.msra.mxu0 %v1043
    %1064 = vmatprep.subr.bf16.mxu0 0
    %1065 = vmatpush1.bf16.msra.mxu0 %v1044
    %1066 = vmatprep.subr.bf16.mxu0 0
    %1067 = vmatpush1.bf16.msra.mxu0 %v1045
    %1068 = vmatprep.subr.bf16.mxu0 0
    %1069 = vmatpush1.bf16.msra.mxu0 %v1046
    %1070 = vmatprep.subr.bf16.mxu0 0
    %1071 = vmatpush1.bf16.msra.mxu0 %v1047
    %1072 = vmatprep.subr.bf16.mxu0 0
    %1073 = vmatpush1.bf16.msra.mxu0 0
    %1074 = vmatprep.subr.bf16.mxu0 0
    %1075 = vmatpush1.bf16.msra.mxu0 0
    %1076 = vmatprep.subr.bf16.mxu0 0
    %1077 = vmatpush1.bf16.msra.mxu0 0
    %1078 = vmatprep.subr.bf16.mxu0 0
    %1079 = vmatpush1.bf16.msra.mxu0 0
    %1080 = vmatprep.subr.bf16.mxu0 0
    %1081 = vmatpush1.bf16.msra.mxu0 0
    %1082 = vmatprep.subr.bf16.mxu0 0
    %1083 = vmatpush1.bf16.msra.mxu0 0
    %1084 = vmatprep.subr.bf16.mxu0 0
    %1085 = vmatpush1.bf16.msra.mxu0 0
    %1086 = vmatprep.subr.bf16.mxu0 0
    %1087 = vmatpush1.bf16.msra.mxu0 0
    %1088 = vmatprep.mubr.bf16.mxu0 0
    %1089 = vmatmul.mubr.bf16.gmra.mrb[0].mxu0 %v987
    %v1090 = vpop.f32.mrb[0].mxu0
    %v1091 = vadd.f32 %v1006, %v1090
    %v1092 = vpop.f32.mrb[0].mxu0
    %v1093 = vpop.f32.mrb[0].mxu0
    %v1094 = vadd.f32 %v1007, %v1093
    %v1095 = vpop.f32.mrb[0].mxu0
    %1096 = vdwg.mxu0
    %s1097 = scalar_lea.vmem [#allocation6], 384
    %v1098 = vld [vmem:[%s1097] sm:$0xf]
    %v1099 = vld [vmem:[%s1097 + $0x4] sm:$0xf]
    %v1100 = vld [vmem:[%s1097 + $0x8] sm:$0xf]
    %v1101 = vld [vmem:[%s1097 + $0xc] sm:$0xf]
    %v1102 = vld [vmem:[%s1097 + $0x10] sm:$0xf]
    %v1103 = vld [vmem:[%s1097 + $0x14] sm:$0xf]
    %v1104 = vld [vmem:[%s1097 + $0x18] sm:$0xf]
    %v1105 = vld [vmem:[%s1097 + $0x1c] sm:$0xf]
    %v1106 = vld [vmem:[%s1097 + $0x20] sm:$0xf]
    %v1107 = vld [vmem:[%s1097 + $0x24] sm:$0xf]
    %v1108 = vld [vmem:[%s1097 + $0x28] sm:$0xf]
    %v1109 = vld [vmem:[%s1097 + $0x2c] sm:$0xf]
    %v1110 = vld [vmem:[%s1097 + $0x30] sm:$0xf]
    %v1111 = vld [vmem:[%s1097 + $0x34] sm:$0xf]
    %v1112 = vld [vmem:[%s1097 + $0x38] sm:$0xf]
    %v1113 = vld [vmem:[%s1097 + $0x3c] sm:$0xf]
    %s1114 = scalar_lea.vmem %s4, 64
    %v1115 = vld [vmem:[%s1114] sm:$0xff]
    %v1116 = vld [vmem:[%s1114 + $0x8] sm:$0xff]
    %v1133 = vunpack.c.l.b16 %v1098
    %v1134 = vunpack.c.l.b16 %v1099
    %v1135 = vunpack.c.l.b16 %v1100
    %v1136 = vunpack.c.l.b16 %v1101
    %v1137 = vunpack.c.l.b16 %v1102
    %v1138 = vunpack.c.l.b16 %v1103
    %v1139 = vunpack.c.l.b16 %v1104
    %v1140 = vunpack.c.l.b16 %v1105
    %v1141 = vunpack.c.l.b16 %v1106
    %v1142 = vunpack.c.l.b16 %v1107
    %v1143 = vunpack.c.l.b16 %v1108
    %v1144 = vunpack.c.l.b16 %v1109
    %v1145 = vunpack.c.l.b16 %v1110
    %v1146 = vunpack.c.l.b16 %v1111
    %v1147 = vunpack.c.l.b16 %v1112
    %v1148 = vunpack.c.l.b16 %v1113
    %v1149 = vpack.c.b16 %v1134, %v1133
    %v1150 = vpack.c.b16 %v1136, %v1135
    %v1151 = vpack.c.b16 %v1138, %v1137
    %v1152 = vpack.c.b16 %v1140, %v1139
    %v1153 = vpack.c.b16 %v1142, %v1141
    %v1154 = vpack.c.b16 %v1144, %v1143
    %v1155 = vpack.c.b16 %v1146, %v1145
    %v1156 = vpack.c.b16 %v1148, %v1147
    %1165 = vmatprep.subr.bf16.mxu0 0
    %1166 = vmatpush1.bf16.msra.mxu0 %v1149
    %1167 = vmatprep.subr.bf16.mxu0 0
    %1168 = vmatpush1.bf16.msra.mxu0 %v1150
    %1169 = vmatprep.subr.bf16.mxu0 0
    %1170 = vmatpush1.bf16.msra.mxu0 %v1151
    %1171 = vmatprep.subr.bf16.mxu0 0
    %1172 = vmatpush1.bf16.msra.mxu0 %v1152
    %1173 = vmatprep.subr.bf16.mxu0 0
    %1174 = vmatpush1.bf16.msra.mxu0 %v1153
    %1175 = vmatprep.subr.bf16.mxu0 0
    %1176 = vmatpush1.bf16.msra.mxu0 %v1154
    %1177 = vmatprep.subr.bf16.mxu0 0
    %1178 = vmatpush1.bf16.msra.mxu0 %v1155
    %1179 = vmatprep.subr.bf16.mxu0 0
    %1180 = vmatpush1.bf16.msra.mxu0 %v1156
    %1181 = vmatprep.subr.bf16.mxu0 0
    %1182 = vmatpush1.bf16.msra.mxu0 0
    %1183 = vmatprep.subr.bf16.mxu0 0
    %1184 = vmatpush1.bf16.msra.mxu0 0
    %1185 = vmatprep.subr.bf16.mxu0 0
    %1186 = vmatpush1.bf16.msra.mxu0 0
    %1187 = vmatprep.subr.bf16.mxu0 0
    %1188 = vmatpush1.bf16.msra.mxu0 0
    %1189 = vmatprep.subr.bf16.mxu0 0
    %1190 = vmatpush1.bf16.msra.mxu0 0
    %1191 = vmatprep.subr.bf16.mxu0 0
    %1192 = vmatpush1.bf16.msra.mxu0 0
    %1193 = vmatprep.subr.bf16.mxu0 0
    %1194 = vmatpush1.bf16.msra.mxu0 0
    %1195 = vmatprep.subr.bf16.mxu0 0
    %1196 = vmatpush1.bf16.msra.mxu0 0
    %1197 = vmatprep.mubr.bf16.mxu0 0
    %1198 = vmatmul.mubr.bf16.gmra.mrb[0].mxu0 %v987
    %v1199 = vpop.f32.mrb[0].mxu0
    %v1200 = vadd.f32 %v1115, %v1199
    %v1201 = vpop.f32.mrb[0].mxu0
    %v1202 = vpop.f32.mrb[0].mxu0
    %v1203 = vadd.f32 %v1116, %v1202
    %v1204 = vpop.f32.mrb[0].mxu0
    %1205 = vdwg.mxu0
    %1206 = vst [vmem:[%s5] sm:$0xff] 0.0
    %1207 = vst [vmem:[%s5 + $0x8] sm:$0xff] 0.0
    %v1208 = vld [vmem:[%s2] sm:$0xf]
    %v1209 = vld [vmem:[%s2 + $0x4] sm:$0xf]
    %v1212 = vunpack.c.l.b16 %v1208
    %v1213 = vunpack.c.l.b16 %v1209
    %v1214 = vpack.c.b16 %v1213, %v1212
    %1216 = vst [vmem:[#allocation2] sm:$0xff] %v1214
    %v1217 = vld [vmem:[#allocation2] sm:$0xff]
    %s1218 = scalar_lea.vmem [#allocation6], 128
    %v1219 = vld [vmem:[%s1218] sm:$0xf]
    %v1220 = vld [vmem:[%s1218 + $0x4] sm:$0xf]
    %v1221 = vld [vmem:[%s1218 + $0x8] sm:$0xf]
    %v1222 = vld [vmem:[%s1218 + $0xc] sm:$0xf]
    %v1223 = vld [vmem:[%s1218 + $0x10] sm:$0xf]
    %v1224 = vld [vmem:[%s1218 + $0x14] sm:$0xf]
    %v1225 = vld [vmem:[%s1218 + $0x18] sm:$0xf]
    %v1226 = vld [vmem:[%s1218 + $0x1c] sm:$0xf]
    %v1227 = vld [vmem:[%s1218 + $0x20] sm:$0xf]
    %v1228 = vld [vmem:[%s1218 + $0x24] sm:$0xf]
    %v1229 = vld [vmem:[%s1218 + $0x28] sm:$0xf]
    %v1230 = vld [vmem:[%s1218 + $0x2c] sm:$0xf]
    %v1231 = vld [vmem:[%s1218 + $0x30] sm:$0xf]
    %v1232 = vld [vmem:[%s1218 + $0x34] sm:$0xf]
    %v1233 = vld [vmem:[%s1218 + $0x38] sm:$0xf]
    %v1234 = vld [vmem:[%s1218 + $0x3c] sm:$0xf]
    %v1251 = vunpack.c.l.b16 %v1219
    %v1252 = vunpack.c.l.b16 %v1220
    %v1253 = vunpack.c.l.b16 %v1221
    %v1254 = vunpack.c.l.b16 %v1222
    %v1255 = vunpack.c.l.b16 %v1223
    %v1256 = vunpack.c.l.b16 %v1224
    %v1257 = vunpack.c.l.b16 %v1225
    %v1258 = vunpack.c.l.b16 %v1226
    %v1259 = vunpack.c.l.b16 %v1227
    %v1260 = vunpack.c.l.b16 %v1228
    %v1261 = vunpack.c.l.b16 %v1229
    %v1262 = vunpack.c.l.b16 %v1230
    %v1263 = vunpack.c.l.b16 %v1231
    %v1264 = vunpack.c.l.b16 %v1232
    %v1265 = vunpack.c.l.b16 %v1233
    %v1266 = vunpack.c.l.b16 %v1234
    %v1267 = vpack.c.b16 %v1252, %v1251
    %v1268 = vpack.c.b16 %v1254, %v1253
    %v1269 = vpack.c.b16 %v1256, %v1255
    %v1270 = vpack.c.b16 %v1258, %v1257
    %v1271 = vpack.c.b16 %v1260, %v1259
    %v1272 = vpack.c.b16 %v1262, %v1261
    %v1273 = vpack.c.b16 %v1264, %v1263
    %v1274 = vpack.c.b16 %v1266, %v1265
    %1283 = vmatprep.subr.bf16.mxu0 0
    %1284 = vmatpush1.bf16.msra.mxu0 %v1267
    %1285 = vmatprep.subr.bf16.mxu0 0
    %1286 = vmatpush1.bf16.msra.mxu0 %v1268
    %1287 = vmatprep.subr.bf16.mxu0 0
    %1288 = vmatpush1.bf16.msra.mxu0 %v1269
    %1289 = vmatprep.subr.bf16.mxu0 0
    %1290 = vmatpush1.bf16.msra.mxu0 %v1270
    %1291 = vmatprep.subr.bf16.mxu0 0
    %1292 = vmatpush1.bf16.msra.mxu0 %v1271
    %1293 = vmatprep.subr.bf16.mxu0 0
    %1294 = vmatpush1.bf16.msra.mxu0 %v1272
    %1295 = vmatprep.subr.bf16.mxu0 0
    %1296 = vmatpush1.bf16.msra.mxu0 %v1273
    %1297 = vmatprep.subr.bf16.mxu0 0
    %1298 = vmatpush1.bf16.msra.mxu0 %v1274
    %1299 = vmatprep.subr.bf16.mxu0 0
    %1300 = vmatpush1.bf16.msra.mxu0 0
    %1301 = vmatprep.subr.bf16.mxu0 0
    %1302 = vmatpush1.bf16.msra.mxu0 0
    %1303 = vmatprep.subr.bf16.mxu0 0
    %1304 = vmatpush1.bf16.msra.mxu0 0
    %1305 = vmatprep.subr.bf16.mxu0 0
    %1306 = vmatpush1.bf16.msra.mxu0 0
    %1307 = vmatprep.subr.bf16.mxu0 0
    %1308 = vmatpush1.bf16.msra.mxu0 0
    %1309 = vmatprep.subr.bf16.mxu0 0
    %1310 = vmatpush1.bf16.msra.mxu0 0
    %1311 = vmatprep.subr.bf16.mxu0 0
    %1312 = vmatpush1.bf16.msra.mxu0 0
    %1313 = vmatprep.subr.bf16.mxu0 0
    %1314 = vmatpush1.bf16.msra.mxu0 0
    %1315 = vmatprep.mubr.bf16.mxu0 0
    %1316 = vmatmul.mubr.bf16.gmra.mrb[0].mxu0 %v1217
    %v1317 = vpop.f32.mrb[0].mxu0
    %v1318 = vadd.f32 %v1091, %v1317
    %v1319 = vpop.f32.mrb[0].mxu0
    %v1320 = vpop.f32.mrb[0].mxu0
    %v1321 = vadd.f32 %v1094, %v1320
    %v1322 = vpop.f32.mrb[0].mxu0
    %1323 = vdwg.mxu0
    %s1324 = scalar_lea.vmem [#allocation6], 256
    %v1325 = vld [vmem:[%s1324] sm:$0xf]
    %v1326 = vld [vmem:[%s1324 + $0x4] sm:$0xf]
    %v1327 = vld [vmem:[%s1324 + $0x8] sm:$0xf]
    %v1328 = vld [vmem:[%s1324 + $0xc] sm:$0xf]
    %v1329 = vld [vmem:[%s1324 + $0x10] sm:$0xf]
    %v1330 = vld [vmem:[%s1324 + $0x14] sm:$0xf]
    %v1331 = vld [vmem:[%s1324 + $0x18] sm:$0xf]
    %v1332 = vld [vmem:[%s1324 + $0x1c] sm:$0xf]
    %v1333 = vld [vmem:[%s1324 + $0x20] sm:$0xf]
    %v1334 = vld [vmem:[%s1324 + $0x24] sm:$0xf]
    %v1335 = vld [vmem:[%s1324 + $0x28] sm:$0xf]
    %v1336 = vld [vmem:[%s1324 + $0x2c] sm:$0xf]
    %v1337 = vld [vmem:[%s1324 + $0x30] sm:$0xf]
    %v1338 = vld [vmem:[%s1324 + $0x34] sm:$0xf]
    %v1339 = vld [vmem:[%s1324 + $0x38] sm:$0xf]
    %v1340 = vld [vmem:[%s1324 + $0x3c] sm:$0xf]
    %s1341 = scalar_lea.vmem %s4, 48
    %v1342 = vld [vmem:[%s1341] sm:$0xff]
    %v1343 = vld [vmem:[%s1341 + $0x8] sm:$0xff]
    %v1360 = vunpack.c.l.b16 %v1325
    %v1361 = vunpack.c.l.b16 %v1326
    %v1362 = vunpack.c.l.b16 %v1327
    %v1363 = vunpack.c.l.b16 %v1328
    %v1364 = vunpack.c.l.b16 %v1329
    %v1365 = vunpack.c.l.b16 %v1330
    %v1366 = vunpack.c.l.b16 %v1331
    %v1367 = vunpack.c.l.b16 %v1332
    %v1368 = vunpack.c.l.b16 %v1333
    %v1369 = vunpack.c.l.b16 %v1334
    %v1370 = vunpack.c.l.b16 %v1335
    %v1371 = vunpack.c.l.b16 %v1336
    %v1372 = vunpack.c.l.b16 %v1337
    %v1373 = vunpack.c.l.b16 %v1338
    %v1374 = vunpack.c.l.b16 %v1339
    %v1375 = vunpack.c.l.b16 %v1340
    %v1376 = vpack.c.b16 %v1361, %v1360
    %v1377 = vpack.c.b16 %v1363, %v1362
    %v1378 = vpack.c.b16 %v1365, %v1364
    %v1379 = vpack.c.b16 %v1367, %v1366
    %v1380 = vpack.c.b16 %v1369, %v1368
    %v1381 = vpack.c.b16 %v1371, %v1370
    %v1382 = vpack.c.b16 %v1373, %v1372
    %v1383 = vpack.c.b16 %v1375, %v1374
    %1392 = vmatprep.subr.bf16.mxu0 0
    %1393 = vmatpush1.bf16.msra.mxu0 %v1376
    %1394 = vmatprep.subr.bf16.mxu0 0
    %1395 = vmatpush1.bf16.msra.mxu0 %v1377
    %1396 = vmatprep.subr.bf16.mxu0 0
    %1397 = vmatpush1.bf16.msra.mxu0 %v1378
    %1398 = vmatprep.subr.bf16.mxu0 0
    %1399 = vmatpush1.bf16.msra.mxu0 %v1379
    %1400 = vmatprep.subr.bf16.mxu0 0
    %1401 = vmatpush1.bf16.msra.mxu0 %v1380
    %1402 = vmatprep.subr.bf16.mxu0 0
    %1403 = vmatpush1.bf16.msra.mxu0 %v1381
    %1404 = vmatprep.subr.bf16.mxu0 0
    %1405 = vmatpush1.bf16.msra.mxu0 %v1382
    %1406 = vmatprep.subr.bf16.mxu0 0
    %1407 = vmatpush1.bf16.msra.mxu0 %v1383
    %1408 = vmatprep.subr.bf16.mxu0 0
    %1409 = vmatpush1.bf16.msra.mxu0 0
    %1410 = vmatprep.subr.bf16.mxu0 0
    %1411 = vmatpush1.bf16.msra.mxu0 0
    %1412 = vmatprep.subr.bf16.mxu0 0
    %1413 = vmatpush1.bf16.msra.mxu0 0
    %1414 = vmatprep.subr.bf16.mxu0 0
    %1415 = vmatpush1.bf16.msra.mxu0 0
    %1416 = vmatprep.subr.bf16.mxu0 0
    %1417 = vmatpush1.bf16.msra.mxu0 0
    %1418 = vmatprep.subr.bf16.mxu0 0
    %1419 = vmatpush1.bf16.msra.mxu0 0
    %1420 = vmatprep.subr.bf16.mxu0 0
    %1421 = vmatpush1.bf16.msra.mxu0 0
    %1422 = vmatprep.subr.bf16.mxu0 0
    %1423 = vmatpush1.bf16.msra.mxu0 0
    %1424 = vmatprep.mubr.bf16.mxu0 0
    %1425 = vmatmul.mubr.bf16.gmra.mrb[0].mxu0 %v987
    %v1426 = vpop.f32.mrb[0].mxu0
    %v1427 = vadd.f32 %v1342, %v1426
    %v1428 = vpop.f32.mrb[0].mxu0
    %v1429 = vpop.f32.mrb[0].mxu0
    %v1430 = vadd.f32 %v1343, %v1429
    %v1431 = vpop.f32.mrb[0].mxu0
    %1432 = vdwg.mxu0
    %v1433 = vadd.f32 %v1318, %v1427
    %v1434 = vadd.f32 %v1321, %v1430
    %v1435 = vxor.u32 %v1433, 2147483648
    %v1436 = vxor.u32 %v1434, 2147483648
    %v1437 = vmul.f32 %v1435, 1.442695
    %v1438 = vpow.pop %v1437
    %v1439 = vmul.f32 %v1436, 1.442695
    %v1440 = vpow.pop %v1439
    %v1441 = vadd.f32 %v1438, 1.0
    %v1442 = vadd.f32 %v1440, 1.0
    %v1443 = vrcp.pop %v1441
    %v1444 = vmul.f32 1.0, %v1443
    %v1445 = vrcp.pop %v1442
    %v1446 = vmul.f32 1.0, %v1445
    %1447 = vrot.lane.b32.xlu0 %v1444, 64
    %v1448 = vpop.permute.xlu0 %1447
    %1449 = vrot.lane.b32.xlu0 %v1446, 64
    %v1450 = vpop.permute.xlu0 %1449
    %v1451 = vmul.f32 %v1448, %v1427
    %v1452 = vmul.f32 %v1450, %v1430
    %v1453 = vadd.f32 %v1318, %v1451
    %v1454 = vadd.f32 %v1321, %v1452
    %v1455 = vtanh.pop %v1453
    %v1456 = vtanh.pop %v1454
    %1457 = vrot.lane.b32.xlu0 %v1455, 64
    %v1458 = vpop.permute.xlu0 %1457
    %1459 = vrot.lane.b32.xlu0 %v1456, 64
    %v1460 = vpop.permute.xlu0 %1459
    %1461 = vrot.lane.b32.xlu0 %v1444, 96
    %v1462 = vpop.permute.xlu0 %1461
    %1463 = vrot.lane.b32.xlu0 %v1446, 96
    %v1464 = vpop.permute.xlu0 %1463
    %v1465 = vsub.f32 1.0, %v1462
    %v1466 = vsub.f32 1.0, %v1464
    %v1467 = vmul.f32 %v1465, %v1458
    %v1468 = vmul.f32 %v1466, %v1460
    %v1469 = vmul.f32 %v1462, %v985
    %v1470 = vmul.f32 %v1464, %v986
    %v1471 = vadd.f32 %v1467, %v1469
    %v1472 = vadd.f32 %v1468, %v1470
    %v1473 = vsel %vm314, %v1471, 0.0
    %v1474 = vsel %vm314, %v1472, 0.0
    %s1475 = scalar_lea.vmem [#allocation6], 320
    %v1476 = vld [vmem:[%s1475] sm:$0xf]
    %v1477 = vld [vmem:[%s1475 + $0x4] sm:$0xf]
    %v1478 = vld [vmem:[%s1475 + $0x8] sm:$0xf]
    %v1479 = vld [vmem:[%s1475 + $0xc] sm:$0xf]
    %v1480 = vld [vmem:[%s1475 + $0x10] sm:$0xf]
    %v1481 = vld [vmem:[%s1475 + $0x14] sm:$0xf]
    %v1482 = vld [vmem:[%s1475 + $0x18] sm:$0xf]
    %v1483 = vld [vmem:[%s1475 + $0x1c] sm:$0xf]
    %v1484 = vld [vmem:[%s1475 + $0x20] sm:$0xf]
    %v1485 = vld [vmem:[%s1475 + $0x24] sm:$0xf]
    %v1486 = vld [vmem:[%s1475 + $0x28] sm:$0xf]
    %v1487 = vld [vmem:[%s1475 + $0x2c] sm:$0xf]
    %v1488 = vld [vmem:[%s1475 + $0x30] sm:$0xf]
    %v1489 = vld [vmem:[%s1475 + $0x34] sm:$0xf]
    %v1490 = vld [vmem:[%s1475 + $0x38] sm:$0xf]
    %v1491 = vld [vmem:[%s1475 + $0x3c] sm:$0xf]
    %v1492 = vpack.c.bf16 %v1474, %v1473
    %s1493 = scalar_lea.vmem [#allocation6], 448
    %v1494 = vld [vmem:[%s1493] sm:$0xf]
    %v1495 = vld [vmem:[%s1493 + $0x4] sm:$0xf]
    %v1496 = vld [vmem:[%s1493 + $0x8] sm:$0xf]
    %v1497 = vld [vmem:[%s1493 + $0xc] sm:$0xf]
    %v1498 = vld [vmem:[%s1493 + $0x10] sm:$0xf]
    %v1499 = vld [vmem:[%s1493 + $0x14] sm:$0xf]
    %v1500 = vld [vmem:[%s1493 + $0x18] sm:$0xf]
    %v1501 = vld [vmem:[%s1493 + $0x1c] sm:$0xf]
    %v1502 = vld [vmem:[%s1493 + $0x20] sm:$0xf]
    %v1503 = vld [vmem:[%s1493 + $0x24] sm:$0xf]
    %v1504 = vld [vmem:[%s1493 + $0x28] sm:$0xf]
    %v1505 = vld [vmem:[%s1493 + $0x2c] sm:$0xf]
    %v1506 = vld [vmem:[%s1493 + $0x30] sm:$0xf]
    %v1507 = vld [vmem:[%s1493 + $0x34] sm:$0xf]
    %v1508 = vld [vmem:[%s1493 + $0x38] sm:$0xf]
    %v1509 = vld [vmem:[%s1493 + $0x3c] sm:$0xf]
    %v1526 = vunpack.c.l.b16 %v1494
    %v1527 = vunpack.c.l.b16 %v1495
    %v1528 = vunpack.c.l.b16 %v1496
    %v1529 = vunpack.c.l.b16 %v1497
    %v1530 = vunpack.c.l.b16 %v1498
    %v1531 = vunpack.c.l.b16 %v1499
    %v1532 = vunpack.c.l.b16 %v1500
    %v1533 = vunpack.c.l.b16 %v1501
    %v1534 = vunpack.c.l.b16 %v1502
    %v1535 = vunpack.c.l.b16 %v1503
    %v1536 = vunpack.c.l.b16 %v1504
    %v1537 = vunpack.c.l.b16 %v1505
    %v1538 = vunpack.c.l.b16 %v1506
    %v1539 = vunpack.c.l.b16 %v1507
    %v1540 = vunpack.c.l.b16 %v1508
    %v1541 = vunpack.c.l.b16 %v1509
    %v1542 = vpack.c.b16 %v1527, %v1526
    %v1543 = vpack.c.b16 %v1529, %v1528
    %v1544 = vpack.c.b16 %v1531, %v1530
    %v1545 = vpack.c.b16 %v1533, %v1532
    %v1546 = vpack.c.b16 %v1535, %v1534
    %v1547 = vpack.c.b16 %v1537, %v1536
    %v1548 = vpack.c.b16 %v1539, %v1538
    %v1549 = vpack.c.b16 %v1541, %v1540
    %1558 = vmatprep.subr.bf16.mxu0 0
    %1559 = vmatpush1.bf16.msra.mxu0 %v1542
    %1560 = vmatprep.subr.bf16.mxu0 0
    %1561 = vmatpush1.bf16.msra.mxu0 %v1543
    %1562 = vmatprep.subr.bf16.mxu0 0
    %1563 = vmatpush1.bf16.msra.mxu0 %v1544
    %1564 = vmatprep.subr.bf16.mxu0 0
    %1565 = vmatpush1.bf16.msra.mxu0 %v1545
    %1566 = vmatprep.subr.bf16.mxu0 0
    %1567 = vmatpush1.bf16.msra.mxu0 %v1546
    %1568 = vmatprep.subr.bf16.mxu0 0
    %1569 = vmatpush1.bf16.msra.mxu0 %v1547
    %1570 = vmatprep.subr.bf16.mxu0 0
    %1571 = vmatpush1.bf16.msra.mxu0 %v1548
    %1572 = vmatprep.subr.bf16.mxu0 0
    %1573 = vmatpush1.bf16.msra.mxu0 %v1549
    %1574 = vmatprep.subr.bf16.mxu0 0
    %1575 = vmatpush1.bf16.msra.mxu0 0
    %1576 = vmatprep.subr.bf16.mxu0 0
    %1577 = vmatpush1.bf16.msra.mxu0 0
    %1578 = vmatprep.subr.bf16.mxu0 0
    %1579 = vmatpush1.bf16.msra.mxu0 0
    %1580 = vmatprep.subr.bf16.mxu0 0
    %1581 = vmatpush1.bf16.msra.mxu0 0
    %1582 = vmatprep.subr.bf16.mxu0 0
    %1583 = vmatpush1.bf16.msra.mxu0 0
    %1584 = vmatprep.subr.bf16.mxu0 0
    %1585 = vmatpush1.bf16.msra.mxu0 0
    %1586 = vmatprep.subr.bf16.mxu0 0
    %1587 = vmatpush1.bf16.msra.mxu0 0
    %1588 = vmatprep.subr.bf16.mxu0 0
    %1589 = vmatpush1.bf16.msra.mxu0 0
    %1590 = vmatprep.mubr.bf16.mxu0 0
    %1591 = vmatmul.mubr.bf16.gmra.mrb[0].mxu0 %v1492
    %v1592 = vpop.f32.mrb[0].mxu0
    %v1593 = vadd.f32 0.0, %v1592
    %v1594 = vpop.f32.mrb[0].mxu0
    %v1595 = vpop.f32.mrb[0].mxu0
    %v1596 = vadd.f32 0.0, %v1595
    %v1597 = vpop.f32.mrb[0].mxu0
    %1598 = vdwg.mxu0
    %v1615 = vunpack.c.l.b16 %v1476
    %v1616 = vunpack.c.l.b16 %v1477
    %v1617 = vunpack.c.l.b16 %v1478
    %v1618 = vunpack.c.l.b16 %v1479
    %v1619 = vunpack.c.l.b16 %v1480
    %v1620 = vunpack.c.l.b16 %v1481
    %v1621 = vunpack.c.l.b16 %v1482
    %v1622 = vunpack.c.l.b16 %v1483
    %v1623 = vunpack.c.l.b16 %v1484
    %v1624 = vunpack.c.l.b16 %v1485
    %v1625 = vunpack.c.l.b16 %v1486
    %v1626 = vunpack.c.l.b16 %v1487
    %v1627 = vunpack.c.l.b16 %v1488
    %v1628 = vunpack.c.l.b16 %v1489
    %v1629 = vunpack.c.l.b16 %v1490
    %v1630 = vunpack.c.l.b16 %v1491
    %v1631 = vpack.c.b16 %v1616, %v1615
    %v1632 = vpack.c.b16 %v1618, %v1617
    %v1633 = vpack.c.b16 %v1620, %v1619
    %v1634 = vpack.c.b16 %v1622, %v1621
    %v1635 = vpack.c.b16 %v1624, %v1623
    %v1636 = vpack.c.b16 %v1626, %v1625
    %v1637 = vpack.c.b16 %v1628, %v1627
    %v1638 = vpack.c.b16 %v1630, %v1629
    %1647 = vmatprep.subr.bf16.mxu0 0
    %1648 = vmatpush1.bf16.msra.mxu0 %v1631
    %1649 = vmatprep.subr.bf16.mxu0 0
    %1650 = vmatpush1.bf16.msra.mxu0 %v1632
    %1651 = vmatprep.subr.bf16.mxu0 0
    %1652 = vmatpush1.bf16.msra.mxu0 %v1633
    %1653 = vmatprep.subr.bf16.mxu0 0
    %1654 = vmatpush1.bf16.msra.mxu0 %v1634
    %1655 = vmatprep.subr.bf16.mxu0 0
    %1656 = vmatpush1.bf16.msra.mxu0 %v1635
    %1657 = vmatprep.subr.bf16.mxu0 0
    %1658 = vmatpush1.bf16.msra.mxu0 %v1636
    %1659 = vmatprep.subr.bf16.mxu0 0
    %1660 = vmatpush1.bf16.msra.mxu0 %v1637
    %1661 = vmatprep.subr.bf16.mxu0 0
    %1662 = vmatpush1.bf16.msra.mxu0 %v1638
    %1663 = vmatprep.subr.bf16.mxu0 0
    %1664 = vmatpush1.bf16.msra.mxu0 0
    %1665 = vmatprep.subr.bf16.mxu0 0
    %1666 = vmatpush1.bf16.msra.mxu0 0
    %1667 = vmatprep.subr.bf16.mxu0 0
    %1668 = vmatpush1.bf16.msra.mxu0 0
    %1669 = vmatprep.subr.bf16.mxu0 0
    %1670 = vmatpush1.bf16.msra.mxu0 0
    %1671 = vmatprep.subr.bf16.mxu0 0
    %1672 = vmatpush1.bf16.msra.mxu0 0
    %1673 = vmatprep.subr.bf16.mxu0 0
    %1674 = vmatpush1.bf16.msra.mxu0 0
    %1675 = vmatprep.subr.bf16.mxu0 0
    %1676 = vmatpush1.bf16.msra.mxu0 0
    %1677 = vmatprep.subr.bf16.mxu0 0
    %1678 = vmatpush1.bf16.msra.mxu0 0
    %1679 = vmatprep.mubr.bf16.mxu0 0
    %1680 = vmatmul.mubr.bf16.gmra.mrb[0].mxu0 %v1217
    %v1681 = vpop.f32.mrb[0].mxu0
    %v1682 = vadd.f32 %v1593, %v1681
    %v1683 = vpop.f32.mrb[0].mxu0
    %v1684 = vpop.f32.mrb[0].mxu0
    %v1685 = vadd.f32 %v1596, %v1684
    %v1686 = vpop.f32.mrb[0].mxu0
    %1687 = vdwg.mxu0
    %v1688 = vadd.f32 %v1682, %v1200
    %v1689 = vadd.f32 %v1685, %v1203
    %s1690 = scalar_lea.vmem %s5, 16
    %1691 = vst [vmem:[%s1690] sm:$0xff] %v1688
    %1692 = vst [vmem:[%s1690 + $0x8] sm:$0xff] %v1689
    %s1693 = sld [smem:[#allocation3 + $0x1]]
    %p1694 = scmp.eq.s32.totalorder %s1693, 1
    // Predicated region
    $region30: #{seq2seq_forward.1} parent=1 // pred_check
      %p1695 = pneg %p1694
    $region31: #{seq2seq_forward.1} parent=1 // pred_check_branch
      %1697 = sbr.rel (%p1695) target = $region33
    $region32: #{seq2seq_forward.1} parent=1 // pred_region
      %s1698 = scalar_lea.vmem %s2, 8
      %v1699 = vld [vmem:[%s1698] sm:$0xf]
      %v1700 = vld [vmem:[%s1698 + $0x4] sm:$0xf]
      %v1703 = vunpack.c.l.b16 %v1699
      %v1704 = vunpack.c.l.b16 %v1700
      %v1705 = vpack.c.b16 %v1704, %v1703
      %1707 = vst [vmem:[#allocation2] sm:$0xff] %v1705
    $region33: #{seq2seq_forward.1} parent=1 // pred_fallthru
      _
    %p1708 = scmp.eq.s32.totalorder %s1693, 0
    // Predicated region
    $region34: #{seq2seq_forward.1} parent=1 // pred_check
      %p1709 = pneg %p1708
    $region35: #{seq2seq_forward.1} parent=1 // pred_check_branch
      %1711 = sbr.rel (%p1709) target = $region37
    $region36: #{seq2seq_forward.1} parent=1 // pred_region
      %v1712 = vcvt.s32.f32 %v313
      %vm1713 = vcmp.lt.f32.partialorder %v1712, 32.0
      %v1714 = vsel %vm1713, %v1688, -1e+30
      %v1715 = vsel %vm1713, %v1689, -1e+30
      %1716 = vmax.xlane.f32.xlu0 %v1714
      %v1717 = vpop.xlane.xlu0 %1716
      %1718 = vmax.xlane.f32.xlu0 %v1715
      %v1719 = vpop.xlane.xlu0 %1718
      %vm1720 = vcmp.eq.f32.partialorder %v1714, %v1717
      %vm1721 = vcmp.eq.f32.partialorder %v1715, %v1719
      %v1722 = vsel %vm1720, %v1712, 128.0
      %v1723 = vsel %vm1721, %v1712, 128.0
      %1724 = vmin.xlane.f32.xlu0 %v1722
      %v1725 = vpop.xlane.xlu0 %1724
      %1726 = vmin.xlane.f32.xlu0 %v1723
      %v1727 = vpop.xlane.xlu0 %1726
      %vm1728 = vcmp.eq.f32.partialorder %v1712, %v1725
      %vm1729 = vcmp.eq.f32.partialorder %v1712, %v1727
      %v1730 = vsel %vm1728, 1, 0
      %v1731 = vsel %vm1729, 1, 0
      %v1732 = vcvt.s32.f32 %v1730
      %v1733 = vcvt.s32.f32 %v1731
      %v1734 = vpack.c.bf16 %v1733, %v1732
      %1735 = vst [vmem:[#allocation2] sm:$0xff] %v1734
    $region37: #{seq2seq_forward.1} parent=1 // pred_fallthru
      _
    %v1736 = vld [vmem:[#allocation2] sm:$0xff]
    %v1737 = vld [vmem:[%s1218] sm:$0xf]
    %v1738 = vld [vmem:[%s1218 + $0x4] sm:$0xf]
    %v1739 = vld [vmem:[%s1218 + $0x8] sm:$0xf]
    %v1740 = vld [vmem:[%s1218 + $0xc] sm:$0xf]
    %v1741 = vld [vmem:[%s1218 + $0x10] sm:$0xf]
    %v1742 = vld [vmem:[%s1218 + $0x14] sm:$0xf]
    %v1743 = vld [vmem:[%s1218 + $0x18] sm:$0xf]
    %v1744 = vld [vmem:[%s1218 + $0x1c] sm:$0xf]
    %v1745 = vld [vmem:[%s1218 + $0x20] sm:$0xf]
    %v1746 = vld [vmem:[%s1218 + $0x24] sm:$0xf]
    %v1747 = vld [vmem:[%s1218 + $0x28] sm:$0xf]
    %v1748 = vld [vmem:[%s1218 + $0x2c] sm:$0xf]
    %v1749 = vld [vmem:[%s1218 + $0x30] sm:$0xf]
    %v1750 = vld [vmem:[%s1218 + $0x34] sm:$0xf]
    %v1751 = vld [vmem:[%s1218 + $0x38] sm:$0xf]
    %v1752 = vld [vmem:[%s1218 + $0x3c] sm:$0xf]
    %v1769 = vunpack.c.l.b16 %v1737
    %v1770 = vunpack.c.l.b16 %v1738
    %v1771 = vunpack.c.l.b16 %v1739
    %v1772 = vunpack.c.l.b16 %v1740
    %v1773 = vunpack.c.l.b16 %v1741
    %v1774 = vunpack.c.l.b16 %v1742
    %v1775 = vunpack.c.l.b16 %v1743
    %v1776 = vunpack.c.l.b16 %v1744
    %v1777 = vunpack.c.l.b16 %v1745
    %v1778 = vunpack.c.l.b16 %v1746
    %v1779 = vunpack.c.l.b16 %v1747
    %v1780 = vunpack.c.l.b16 %v1748
    %v1781 = vunpack.c.l.b16 %v1749
    %v1782 = vunpack.c.l.b16 %v1750
    %v1783 = vunpack.c.l.b16 %v1751
    %v1784 = vunpack.c.l.b16 %v1752
    %v1785 = vpack.c.b16 %v1770, %v1769
    %v1786 = vpack.c.b16 %v1772, %v1771
    %v1787 = vpack.c.b16 %v1774, %v1773
    %v1788 = vpack.c.b16 %v1776, %v1775
    %v1789 = vpack.c.b16 %v1778, %v1777
    %v1790 = vpack.c.b16 %v1780, %v1779
    %v1791 = vpack.c.b16 %v1782, %v1781
    %v1792 = vpack.c.b16 %v1784, %v1783
    %1801 = vmatprep.subr.bf16.mxu0 0
    %1802 = vmatpush1.bf16.msra.mxu0 %v1785
    %1803 = vmatprep.subr.bf16.mxu0 0
    %1804 = vmatpush1.bf16.msra.mxu0 %v1786
    %1805 = vmatprep.subr.bf16.mxu0 0
    %1806 = vmatpush1.bf16.msra.mxu0 %v1787
    %1807 = vmatprep.subr.bf16.mxu0 0
    %1808 = vmatpush1.bf16.msra.mxu0 %v1788
    %1809 = vmatprep.subr.bf16.mxu0 0
    %1810 = vmatpush1.bf16.msra.mxu0 %v1789
    %1811 = vmatprep.subr.bf16.mxu0 0
    %1812 = vmatpush1.bf16.msra.mxu0 %v1790
    %1813 = vmatprep.subr.bf16.mxu0 0
    %1814 = vmatpush1.bf16.msra.mxu0 %v1791
    %1815 = vmatprep.subr.bf16.mxu0 0
    %1816 = vmatpush1.bf16.msra.mxu0 %v1792
    %1817 = vmatprep.subr.bf16.mxu0 0
    %1818 = vmatpush1.bf16.msra.mxu0 0
    %1819 = vmatprep.subr.bf16.mxu0 0
    %1820 = vmatpush1.bf16.msra.mxu0 0
    %1821 = vmatprep.subr.bf16.mxu0 0
    %1822 = vmatpush1.bf16.msra.mxu0 0
    %1823 = vmatprep.subr.bf16.mxu0 0
    %1824 = vmatpush1.bf16.msra.mxu0 0
    %1825 = vmatprep.subr.bf16.mxu0 0
    %1826 = vmatpush1.bf16.msra.mxu0 0
    %1827 = vmatprep.subr.bf16.mxu0 0
    %1828 = vmatpush1.bf16.msra.mxu0 0
    %1829 = vmatprep.subr.bf16.mxu0 0
    %1830 = vmatpush1.bf16.msra.mxu0 0
    %1831 = vmatprep.subr.bf16.mxu0 0
    %1832 = vmatpush1.bf16.msra.mxu0 0
    %1833 = vmatprep.mubr.bf16.mxu0 0
    %1834 = vmatmul.mubr.bf16.gmra.mrb[0].mxu0 %v1736
    %v1835 = vpop.f32.mrb[0].mxu0
    %v1836 = vadd.f32 %v1091, %v1835
    %v1837 = vpop.f32.mrb[0].mxu0
    %v1838 = vpop.f32.mrb[0].mxu0
    %v1839 = vadd.f32 %v1094, %v1838
    %v1840 = vpop.f32.mrb[0].mxu0
    %1841 = vdwg.mxu0
    %v1842 = vld [vmem:[%s1324] sm:$0xf]
    %v1843 = vld [vmem:[%s1324 + $0x4] sm:$0xf]
    %v1844 = vld [vmem:[%s1324 + $0x8] sm:$0xf]
    %v1845 = vld [vmem:[%s1324 + $0xc] sm:$0xf]
    %v1846 = vld [vmem:[%s1324 + $0x10] sm:$0xf]
    %v1847 = vld [vmem:[%s1324 + $0x14] sm:$0xf]
    %v1848 = vld [vmem:[%s1324 + $0x18] sm:$0xf]
    %v1849 = vld [vmem:[%s1324 + $0x1c] sm:$0xf]
    %v1850 = vld [vmem:[%s1324 + $0x20] sm:$0xf]
    %v1851 = vld [vmem:[%s1324 + $0x24] sm:$0xf]
    %v1852 = vld [vmem:[%s1324 + $0x28] sm:$0xf]
    %v1853 = vld [vmem:[%s1324 + $0x2c] sm:$0xf]
    %v1854 = vld [vmem:[%s1324 + $0x30] sm:$0xf]
    %v1855 = vld [vmem:[%s1324 + $0x34] sm:$0xf]
    %v1856 = vld [vmem:[%s1324 + $0x38] sm:$0xf]
    %v1857 = vld [vmem:[%s1324 + $0x3c] sm:$0xf]
    %v1858 = vld [vmem:[%s1341] sm:$0xff]
    %v1859 = vld [vmem:[%s1341 + $0x8] sm:$0xff]
    %v1876 = vunpack.c.l.b16 %v1842
    %v1877 = vunpack.c.l.b16 %v1843
    %v1878 = vunpack.c.l.b16 %v1844
    %v1879 = vunpack.c.l.b16 %v1845
    %v1880 = vunpack.c.l.b16 %v1846
    %v1881 = vunpack.c.l.b16 %v1847
    %v1882 = vunpack.c.l.b16 %v1848
    %v1883 = vunpack.c.l.b16 %v1849
    %v1884 = vunpack.c.l.b16 %v1850
    %v1885 = vunpack.c.l.b16 %v1851
    %v1886 = vunpack.c.l.b16 %v1852
    %v1887 = vunpack.c.l.b16 %v1853
    %v1888 = vunpack.c.l.b16 %v1854
    %v1889 = vunpack.c.l.b16 %v1855
    %v1890 = vunpack.c.l.b16 %v1856
    %v1891 = vunpack.c.l.b16 %v1857
    %v1892 = vpack.c.b16 %v1877, %v1876
    %v1893 = vpack.c.b16 %v1879, %v1878
    %v1894 = vpack.c.b16 %v1881, %v1880
    %v1895 = vpack.c.b16 %v1883, %v1882
    %v1896 = vpack.c.b16 %v1885, %v1884
    %v1897 = vpack.c.b16 %v1887, %v1886
    %v1898 = vpack.c.b16 %v1889, %v1888
    %v1899 = vpack.c.b16 %v1891, %v1890
    %1908 = vmatprep.subr.bf16.mxu0 0
    %1909 = vmatpush1.bf16.msra.mxu0 %v1892
    %1910 = vmatprep.subr.bf16.mxu0 0
    %1911 = vmatpush1.bf16.msra.mxu0 %v1893
    %1912 = vmatprep.subr.bf16.mxu0 0
    %1913 = vmatpush1.bf16.msra.mxu0 %v1894
    %1914 = vmatprep.subr.bf16.mxu0 0
    %1915 = vmatpush1.bf16.msra.mxu0 %v1895
    %1916 = vmatprep.subr.bf16.mxu0 0
    %1917 = vmatpush1.bf16.msra.mxu0 %v1896
    %1918 = vmatprep.subr.bf16.mxu0 0
    %1919 = vmatpush1.bf16.msra.mxu0 %v1897
    %1920 = vmatprep.subr.bf16.mxu0 0
    %1921 = vmatpush1.bf16.msra.mxu0 %v1898
    %1922 = vmatprep.subr.bf16.mxu0 0
    %1923 = vmatpush1.bf16.msra.mxu0 %v1899
    %1924 = vmatprep.subr.bf16.mxu0 0
    %1925 = vmatpush1.bf16.msra.mxu0 0
    %1926 = vmatprep.subr.bf16.mxu0 0
    %1927 = vmatpush1.bf16.msra.mxu0 0
    %1928 = vmatprep.subr.bf16.mxu0 0
    %1929 = vmatpush1.bf16.msra.mxu0 0
    %1930 = vmatprep.subr.bf16.mxu0 0
    %1931 = vmatpush1.bf16.msra.mxu0 0
    %1932 = vmatprep.subr.bf16.mxu0 0
    %1933 = vmatpush1.bf16.msra.mxu0 0
    %1934 = vmatprep.subr.bf16.mxu0 0
    %1935 = vmatpush1.bf16.msra.mxu0 0
    %1936 = vmatprep.subr.bf16.mxu0 0
    %1937 = vmatpush1.bf16.msra.mxu0 0
    %1938 = vmatprep.subr.bf16.mxu0 0
    %1939 = vmatpush1.bf16.msra.mxu0 0
    %1940 = vmatprep.mubr.bf16.mxu0 0
    %1941 = vmatmul.mubr.bf16.gmra.mrb[0].mxu0 %v1492
    %v1942 = vpop.f32.mrb[0].mxu0
    %v1943 = vadd.f32 %v1858, %v1942
    %v1944 = vpop.f32.mrb[0].mxu0
    %v1945 = vpop.f32.mrb[0].mxu0
    %v1946 = vadd.f32 %v1859, %v1945
    %v1947 = vpop.f32.mrb[0].mxu0
    %1948 = vdwg.mxu0
    %v1949 = vadd.f32 %v1836, %v1943
    %v1950 = vadd.f32 %v1839, %v1946
    %v1951 = vxor.u32 %v1949, 2147483648
    %v1952 = vxor.u32 %v1950, 2147483648
    %v1953 = vmul.f32 %v1951, 1.442695
    %v1954 = vpow.pop %v1953
    %v1955 = vmul.f32 %v1952, 1.442695
    %v1956 = vpow.pop %v1955
    %v1957 = vadd.f32 %v1954, 1.0
    %v1958 = vadd.f32 %v1956, 1.0
    %v1959 = vrcp.pop %v1957
    %v1960 = vmul.f32 1.0, %v1959
    %v1961 = vrcp.pop %v1958
    %v1962 = vmul.f32 1.0, %v1961
    %1963 = vrot.lane.b32.xlu0 %v1960, 64
    %v1964 = vpop.permute.xlu0 %1963
    %1965 = vrot.lane.b32.xlu0 %v1962, 64
    %v1966 = vpop.permute.xlu0 %1965
    %v1967 = vmul.f32 %v1964, %v1943
    %v1968 = vmul.f32 %v1966, %v1946
    %v1969 = vadd.f32 %v1836, %v1967
    %v1970 = vadd.f32 %v1839, %v1968
    %v1971 = vtanh.pop %v1969
    %v1972 = vtanh.pop %v1970
    %1973 = vrot.lane.b32.xlu0 %v1971, 64
    %v1974 = vpop.permute.xlu0 %1973
    %1975 = vrot.lane.b32.xlu0 %v1972, 64
    %v1976 = vpop.permute.xlu0 %1975
    %1977 = vrot.lane.b32.xlu0 %v1960, 96
    %v1978 = vpop.permute.xlu0 %1977
    %1979 = vrot.lane.b32.xlu0 %v1962, 96
    %v1980 = vpop.permute.xlu0 %1979
    %v1981 = vsub.f32 1.0, %v1978
    %v1982 = vsub.f32 1.0, %v1980
    %v1983 = vmul.f32 %v1981, %v1974
    %v1984 = vmul.f32 %v1982, %v1976
    %v1985 = vmul.f32 %v1978, %v1473
    %v1986 = vmul.f32 %v1980, %v1474
    %v1987 = vadd.f32 %v1983, %v1985
    %v1988 = vadd.f32 %v1984, %v1986
    %v1989 = vsel %vm314, %v1987, 0.0
    %v1990 = vsel %vm314, %v1988, 0.0
    %v1991 = vld [vmem:[%s1475] sm:$0xf]
    %v1992 = vld [vmem:[%s1475 + $0x4] sm:$0xf]
    %v1993 = vld [vmem:[%s1475 + $0x8] sm:$0xf]
    %v1994 = vld [vmem:[%s1475 + $0xc] sm:$0xf]
    %v1995 = vld [vmem:[%s1475 + $0x10] sm:$0xf]
    %v1996 = vld [vmem:[%s1475 + $0x14] sm:$0xf]
    %v1997 = vld [vmem:[%s1475 + $0x18] sm:$0xf]
    %v1998 = vld [vmem:[%s1475 + $0x1c] sm:$0xf]
    %v1999 = vld [vmem:[%s1475 + $0x20] sm:$0xf]
    %v2000 = vld [vmem:[%s1475 + $0x24] sm:$0xf]
    %v2001 = vld [vmem:[%s1475 + $0x28] sm:$0xf]
    %v2002 = vld [vmem:[%s1475 + $0x2c] sm:$0xf]
    %v2003 = vld [vmem:[%s1475 + $0x30] sm:$0xf]
    %v2004 = vld [vmem:[%s1475 + $0x34] sm:$0xf]
    %v2005 = vld [vmem:[%s1475 + $0x38] sm:$0xf]
    %v2006 = vld [vmem:[%s1475 + $0x3c] sm:$0xf]
    %v2007 = vpack.c.bf16 %v1990, %v1989
    %v2008 = vld [vmem:[%s1493] sm:$0xf]
    %v2009 = vld [vmem:[%s1493 + $0x4] sm:$0xf]
    %v2010 = vld [vmem:[%s1493 + $0x8] sm:$0xf]
    %v2011 = vld [vmem:[%s1493 + $0xc] sm:$0xf]
    %v2012 = vld [vmem:[%s1493 + $0x10] sm:$0xf]
    %v2013 = vld [vmem:[%s1493 + $0x14] sm:$0xf]
    %v2014 = vld [vmem:[%s1493 + $0x18] sm:$0xf]
    %v2015 = vld [vmem:[%s1493 + $0x1c] sm:$0xf]
    %v2016 = vld [vmem:[%s1493 + $0x20] sm:$0xf]
    %v2017 = vld [vmem:[%s1493 + $0x24] sm:$0xf]
    %v2018 = vld [vmem:[%s1493 + $0x28] sm:$0xf]
    %v2019 = vld [vmem:[%s1493 + $0x2c] sm:$0xf]
    %v2020 = vld [vmem:[%s1493 + $0x30] sm:$0xf]
    %v2021 = vld [vmem:[%s1493 + $0x34] sm:$0xf]
    %v2022 = vld [vmem:[%s1493 + $0x38] sm:$0xf]
    %v2023 = vld [vmem:[%s1493 + $0x3c] sm:$0xf]
    %v2040 = vunpack.c.l.b16 %v2008
    %v2041 = vunpack.c.l.b16 %v2009
    %v2042 = vunpack.c.l.b16 %v2010
    %v2043 = vunpack.c.l.b16 %v2011
    %v2044 = vunpack.c.l.b16 %v2012
    %v2045 = vunpack.c.l.b16 %v2013
    %v2046 = vunpack.c.l.b16 %v2014
    %v2047 = vunpack.c.l.b16 %v2015
    %v2048 = vunpack.c.l.b16 %v2016
    %v2049 = vunpack.c.l.b16 %v2017
    %v2050 = vunpack.c.l.b16 %v2018
    %v2051 = vunpack.c.l.b16 %v2019
    %v2052 = vunpack.c.l.b16 %v2020
    %v2053 = vunpack.c.l.b16 %v2021
    %v2054 = vunpack.c.l.b16 %v2022
    %v2055 = vunpack.c.l.b16 %v2023
    %v2056 = vpack.c.b16 %v2041, %v2040
    %v2057 = vpack.c.b16 %v2043, %v2042
    %v2058 = vpack.c.b16 %v2045, %v2044
    %v2059 = vpack.c.b16 %v2047, %v2046
    %v2060 = vpack.c.b16 %v2049, %v2048
    %v2061 = vpack.c.b16 %v2051, %v2050
    %v2062 = vpack.c.b16 %v2053, %v2052
    %v2063 = vpack.c.b16 %v2055, %v2054
    %2072 = vmatprep.subr.bf16.mxu0 0
    %2073 = vmatpush1.bf16.msra.mxu0 %v2056
    %2074 = vmatprep.subr.bf16.mxu0 0
    %2075 = vmatpush1.bf16.msra.mxu0 %v2057
    %2076 = vmatprep.subr.bf16.mxu0 0
    %2077 = vmatpush1.bf16.msra.mxu0 %v2058
    %2078 = vmatprep.subr.bf16.mxu0 0
    %2079 = vmatpush1.bf16.msra.mxu0 %v2059
    %2080 = vmatprep.subr.bf16.mxu0 0
    %2081 = vmatpush1.bf16.msra.mxu0 %v2060
    %2082 = vmatprep.subr.bf16.mxu0 0
    %2083 = vmatpush1.bf16.msra.mxu0 %v2061
    %2084 = vmatprep.subr.bf16.mxu0 0
    %2085 = vmatpush1.bf16.msra.mxu0 %v2062
    %2086 = vmatprep.subr.bf16.mxu0 0
    %2087 = vmatpush1.bf16.msra.mxu0 %v2063
    %2088 = vmatprep.subr.bf16.mxu0 0
    %2089 = vmatpush1.bf16.msra.mxu0 0
    %2090 = vmatprep.subr.bf16.mxu0 0
    %2091 = vmatpush1.bf16.msra.mxu0 0
    %2092 = vmatprep.subr.bf16.mxu0 0
    %2093 = vmatpush1.bf16.msra.mxu0 0
    %2094 = vmatprep.subr.bf16.mxu0 0
    %2095 = vmatpush1.bf16.msra.mxu0 0
    %2096 = vmatprep.subr.bf16.mxu0 0
    %2097 = vmatpush1.bf16.msra.mxu0 0
    %2098 = vmatprep.subr.bf16.mxu0 0
    %2099 = vmatpush1.bf16.msra.mxu0 0
    %2100 = vmatprep.subr.bf16.mxu0 0
    %2101 = vmatpush1.bf16.msra.mxu0 0
    %2102 = vmatprep.subr.bf16.mxu0 0
    %2103 = vmatpush1.bf16.msra.mxu0 0
    %2104 = vmatprep.mubr.bf16.mxu0 0
    %2105 = vmatmul.mubr.bf16.gmra.mrb[0].mxu0 %v2007
    %v2106 = vpop.f32.mrb[0].mxu0
    %v2107 = vadd.f32 0.0, %v2106
    %v2108 = vpop.f32.mrb[0].mxu0
    %v2109 = vpop.f32.mrb[0].mxu0
    %v2110 = vadd.f32 0.0, %v2109
    %v2111 = vpop.f32.mrb[0].mxu0
    %2112 = vdwg.mxu0
    %v2129 = vunpack.c.l.b16 %v1991
    %v2130 = vunpack.c.l.b16 %v1992
    %v2131 = vunpack.c.l.b16 %v1993
    %v2132 = vunpack.c.l.b16 %v1994
    %v2133 = vunpack.c.l.b16 %v1995
    %v2134 = vunpack.c.l.b16 %v1996
    %v2135 = vunpack.c.l.b16 %v1997
    %v2136 = vunpack.c.l.b16 %v1998
    %v2137 = vunpack.c.l.b16 %v1999
    %v2138 = vunpack.c.l.b16 %v2000
    %v2139 = vunpack.c.l.b16 %v2001
    %v2140 = vunpack.c.l.b16 %v2002
    %v2141 = vunpack.c.l.b16 %v2003
    %v2142 = vunpack.c.l.b16 %v2004
    %v2143 = vunpack.c.l.b16 %v2005
    %v2144 = vunpack.c.l.b16 %v2006
    %v2145 = vpack.c.b16 %v2130, %v2129
    %v2146 = vpack.c.b16 %v2132, %v2131
    %v2147 = vpack.c.b16 %v2134, %v2133
    %v2148 = vpack.c.b16 %v2136, %v2135
    %v2149 = vpack.c.b16 %v2138, %v2137
    %v2150 = vpack.c.b16 %v2140, %v2139
    %v2151 = vpack.c.b16 %v2142, %v2141
    %v2152 = vpack.c.b16 %v2144, %v2143
    %2161 = vmatprep.subr.bf16.mxu0 0
    %2162 = vmatpush1.bf16.msra.mxu0 %v2145
    %2163 = vmatprep.subr.bf16.mxu0 0
    %2164 = vmatpush1.bf16.msra.mxu0 %v2146
    %2165 = vmatprep.subr.bf16.mxu0 0
    %2166 = vmatpush1.bf16.msra.mxu0 %v2147
    %2167 = vmatprep.subr.bf16.mxu0 0
    %2168 = vmatpush1.bf16.msra.mxu0 %v2148
    %2169 = vmatprep.subr.bf16.mxu0 0
    %2170 = vmatpush1.bf16.msra.mxu0 %v2149
    %2171 = vmatprep.subr.bf16.mxu0 0
    %2172 = vmatpush1.bf16.msra.mxu0 %v2150
    %2173 = vmatprep.subr.bf16.mxu0 0
    %2174 = vmatpush1.bf16.msra.mxu0 %v2151
    %2175 = vmatprep.subr.bf16.mxu0 0
    %2176 = vmatpush1.bf16.msra.mxu0 %v2152
    %2177 = vmatprep.subr.bf16.mxu0 0
    %2178 = vmatpush1.bf16.msra.mxu0 0
    %2179 = vmatprep.subr.bf16.mxu0 0
    %2180 = vmatpush1.bf16.msra.mxu0 0
    %2181 = vmatprep.subr.bf16.mxu0 0
    %2182 = vmatpush1.bf16.msra.mxu0 0
    %2183 = vmatprep.subr.bf16.mxu0 0
    %2184 = vmatpush1.bf16.msra.mxu0 0
    %2185 = vmatprep.subr.bf16.mxu0 0
    %2186 = vmatpush1.bf16.msra.mxu0 0
    %2187 = vmatprep.subr.bf16.mxu0 0
    %2188 = vmatpush1.bf16.msra.mxu0 0
    %2189 = vmatprep.subr.bf16.mxu0 0
    %2190 = vmatpush1.bf16.msra.mxu0 0
    %2191 = vmatprep.subr.bf16.mxu0 0
    %2192 = vmatpush1.bf16.msra.mxu0 0
    %2193 = vmatprep.mubr.bf16.mxu0 0
    %2194 = vmatmul.mubr.bf16.gmra.mrb[0].mxu0 %v1736
    %v2195 = vpop.f32.mrb[0].mxu0
    %v2196 = vadd.f32 %v2107, %v2195
    %v2197 = vpop.f32.mrb[0].mxu0
    %v2198 = vpop.f32.mrb[0].mxu0
    %v2199 = vadd.f32 %v2110, %v2198
    %v2200 = vpop.f32.mrb[0].mxu0
    %2201 = vdwg.mxu0
    %v2202 = vadd.f32 %v2196, %v1200
    %v2203 = vadd.f32 %v2199, %v1203
    %s2204 = scalar_lea.vmem %s5, 32
    %2205 = vst [vmem:[%s2204] sm:$0xff] %v2202
    %2206 = vst [vmem:[%s2204 + $0x8] sm:$0xff] %v2203
    %s2207 = sld [smem:[#allocation3 + $0x2]]
    %p2208 = scmp.eq.s32.totalorder %s2207, 1
    // Predicated region
    $region38: #{seq2seq_forward.1} parent=1 // pred_check
      %p2209 = pneg %p2208
    $region39: #{seq2seq_forward.1} parent=1 // pred_check_branch
      %2211 = sbr.rel (%p2209) target = $region41
    $region40: #{seq2seq_forward.1} parent=1 // pred_region
      %s2212 = scalar_lea.vmem %s2, 16
      %v2213 = vld [vmem:[%s2212] sm:$0xf]
      %v2214 = vld [vmem:[%s2212 + $0x4] sm:$0xf]
      %v2217 = vunpack.c.l.b16 %v2213
      %v2218 = vunpack.c.l.b16 %v2214
      %v2219 = vpack.c.b16 %v2218, %v2217
      %2221 = vst [vmem:[#allocation2] sm:$0xff] %v2219
    $region41: #{seq2seq_forward.1} parent=1 // pred_fallthru
      _
    %p2222 = scmp.eq.s32.totalorder %s2207, 0
    // Predicated region
    $region42: #{seq2seq_forward.1} parent=1 // pred_check
      %p2223 = pneg %p2222
    $region43: #{seq2seq_forward.1} parent=1 // pred_check_branch
      %2225 = sbr.rel (%p2223) target = $region45
    $region44: #{seq2seq_forward.1} parent=1 // pred_region
      %v2226 = vcvt.s32.f32 %v313
      %vm2227 = vcmp.lt.f32.partialorder %v2226, 32.0
      %v2228 = vsel %vm2227, %v2202, -1e+30
      %v2229 = vsel %vm2227, %v2203, -1e+30
      %2230 = vmax.xlane.f32.xlu0 %v2228
      %v2231 = vpop.xlane.xlu0 %2230
      %2232 = vmax.xlane.f32.xlu0 %v2229
      %v2233 = vpop.xlane.xlu0 %2232
      %vm2234 = vcmp.eq.f32.partialorder %v2228, %v2231
      %vm2235 = vcmp.eq.f32.partialorder %v2229, %v2233
      %v2236 = vsel %vm2234, %v2226, 128.0
      %v2237 = vsel %vm2235, %v2226, 128.0
      %2238 = vmin.xlane.f32.xlu0 %v2236
      %v2239 = vpop.xlane.xlu0 %2238
      %2240 = vmin.xlane.f32.xlu0 %v2237
      %v2241 = vpop.xlane.xlu0 %2240
      %vm2242 = vcmp.eq.f32.partialorder %v2226, %v2239
      %vm2243 = vcmp.eq.f32.partialorder %v2226, %v2241
      %v2244 = vsel %vm2242, 1, 0
      %v2245 = vsel %vm2243, 1, 0
      %v2246 = vcvt.s32.f32 %v2244
      %v2247 = vcvt.s32.f32 %v2245
      %v2248 = vpack.c.bf16 %v2247, %v2246
      %2249 = vst [vmem:[#allocation2] sm:$0xff] %v2248
    $region45: #{seq2seq_forward.1} parent=1 // pred_fallthru
      _
    %v2250 = vld [vmem:[#allocation2] sm:$0xff]
    %v2251 = vld [vmem:[%s1218] sm:$0xf]
    %v2252 = vld [vmem:[%s1218 + $0x4] sm:$0xf]
    %v2253 = vld [vmem:[%s1218 + $0x8] sm:$0xf]
    %v2254 = vld [vmem:[%s1218 + $0xc] sm:$0xf]
    %v2255 = vld [vmem:[%s1218 + $0x10] sm:$0xf]
    %v2256 = vld [vmem:[%s1218 + $0x14] sm:$0xf]
    %v2257 = vld [vmem:[%s1218 + $0x18] sm:$0xf]
    %v2258 = vld [vmem:[%s1218 + $0x1c] sm:$0xf]
    %v2259 = vld [vmem:[%s1218 + $0x20] sm:$0xf]
    %v2260 = vld [vmem:[%s1218 + $0x24] sm:$0xf]
    %v2261 = vld [vmem:[%s1218 + $0x28] sm:$0xf]
    %v2262 = vld [vmem:[%s1218 + $0x2c] sm:$0xf]
    %v2263 = vld [vmem:[%s1218 + $0x30] sm:$0xf]
    %v2264 = vld [vmem:[%s1218 + $0x34] sm:$0xf]
    %v2265 = vld [vmem:[%s1218 + $0x38] sm:$0xf]
    %v2266 = vld [vmem:[%s1218 + $0x3c] sm:$0xf]
    %v2283 = vunpack.c.l.b16 %v2251
    %v2284 = vunpack.c.l.b16 %v2252
    %v2285 = vunpack.c.l.b16 %v2253
    %v2286 = vunpack.c.l.b16 %v2254
    %v2287 = vunpack.c.l.b16 %v2255
    %v2288 = vunpack.c.l.b16 %v2256
    %v2289 = vunpack.c.l.b16 %v2257
    %v2290 = vunpack.c.l.b16 %v2258
    %v2291 = vunpack.c.l.b16 %v2259
    %v2292 = vunpack.c.l.b16 %v2260
    %v2293 = vunpack.c.l.b16 %v2261
    %v2294 = vunpack.c.l.b16 %v2262
    %v2295 = vunpack.c.l.b16 %v2263
    %v2296 = vunpack.c.l.b16 %v2264
    %v2297 = vunpack.c.l.b16 %v2265
    %v2298 = vunpack.c.l.b16 %v2266
    %v2299 = vpack.c.b16 %v2284, %v2283
    %v2300 = vpack.c.b16 %v2286, %v2285
    %v2301 = vpack.c.b16 %v2288, %v2287
    %v2302 = vpack.c.b16 %v2290, %v2289
    %v2303 = vpack.c.b16 %v2292, %v2291
    %v2304 = vpack.c.b16 %v2294, %v2293
    %v2305 = vpack.c.b16 %v2296, %v2295
    %v2306 = vpack.c.b16 %v2298, %v2297
    %2315 = vmatprep.subr.bf16.mxu0 0
    %2316 = vmatpush1.bf16.msra.mxu0 %v2299
    %2317 = vmatprep.subr.bf16.mxu0 0
    %2318 = vmatpush1.bf16.msra.mxu0 %v2300
    %2319 = vmatprep.subr.bf16.mxu0 0
    %2320 = vmatpush1.bf16.msra.mxu0 %v2301
    %2321 = vmatprep.subr.bf16.mxu0 0
    %2322 = vmatpush1.bf16.msra.mxu0 %v2302
    %2323 = vmatprep.subr.bf16.mxu0 0
    %2324 = vmatpush1.bf16.msra.mxu0 %v2303
    %2325 = vmatprep.subr.bf16.mxu0 0
    %2326 = vmatpush1.bf16.msra.mxu0 %v2304
    %2327 = vmatprep.subr.bf16.mxu0 0
    %2328 = vmatpush1.bf16.msra.mxu0 %v2305
    %2329 = vmatprep.subr.bf16.mxu0 0
    %2330 = vmatpush1.bf16.msra.mxu0 %v2306
    %2331 = vmatprep.subr.bf16.mxu0 0
    %2332 = vmatpush1.bf16.msra.mxu0 0
    %2333 = vmatprep.subr.bf16.mxu0 0
    %2334 = vmatpush1.bf16.msra.mxu0 0
    %2335 = vmatprep.subr.bf16.mxu0 0
    %2336 = vmatpush1.bf16.msra.mxu0 0
    %2337 = vmatprep.subr.bf16.mxu0 0
    %2338 = vmatpush1.bf16.msra.mxu0 0
    %2339 = vmatprep.subr.bf16.mxu0 0
    %2340 = vmatpush1.bf16.msra.mxu0 0
    %2341 = vmatprep.subr.bf16.mxu0 0
    %2342 = vmatpush1.bf16.msra.mxu0 0
    %2343 = vmatprep.subr.bf16.mxu0 0
    %2344 = vmatpush1.bf16.msra.mxu0 0
    %2345 = vmatprep.subr.bf16.mxu0 0
    %2346 = vmatpush1.bf16.msra.mxu0 0
    %2347 = vmatprep.mubr.bf16.mxu0 0
    %2348 = vmatmul.mubr.bf16.gmra.mrb[0].mxu0 %v2250
    %v2349 = vpop.f32.mrb[0].mxu0
    %v2350 = vadd.f32 %v1091, %v2349
    %v2351 = vpop.f32.mrb[0].mxu0
    %v2352 = vpop.f32.mrb[0].mxu0
    %v2353 = vadd.f32 %v1094, %v2352
    %v2354 = vpop.f32.mrb[0].mxu0
    %2355 = vdwg.mxu0
    %v2356 = vld [vmem:[%s1324] sm:$0xf]
    %v2357 = vld [vmem:[%s1324 + $0x4] sm:$0xf]
    %v2358 = vld [vmem:[%s1324 + $0x8] sm:$0xf]
    %v2359 = vld [vmem:[%s1324 + $0xc] sm:$0xf]
    %v2360 = vld [vmem:[%s1324 + $0x10] sm:$0xf]
    %v2361 = vld [vmem:[%s1324 + $0x14] sm:$0xf]
    %v2362 = vld [vmem:[%s1324 + $0x18] sm:$0xf]
    %v2363 = vld [vmem:[%s1324 + $0x1c] sm:$0xf]
    %v2364 = vld [vmem:[%s1324 + $0x20] sm:$0xf]
    %v2365 = vld [vmem:[%s1324 + $0x24] sm:$0xf]
    %v2366 = vld [vmem:[%s1324 + $0x28] sm:$0xf]
    %v2367 = vld [vmem:[%s1324 + $0x2c] sm:$0xf]
    %v2368 = vld [vmem:[%s1324 + $0x30] sm:$0xf]
    %v2369 = vld [vmem:[%s1324 + $0x34] sm:$0xf]
    %v2370 = vld [vmem:[%s1324 + $0x38] sm:$0xf]
    %v2371 = vld [vmem:[%s1324 + $0x3c] sm:$0xf]
    %v2372 = vld [vmem:[%s1341] sm:$0xff]
    %v2373 = vld [vmem:[%s1341 + $0x8] sm:$0xff]
    %v2390 = vunpack.c.l.b16 %v2356
    %v2391 = vunpack.c.l.b16 %v2357
    %v2392 = vunpack.c.l.b16 %v2358
    %v2393 = vunpack.c.l.b16 %v2359
    %v2394 = vunpack.c.l.b16 %v2360
    %v2395 = vunpack.c.l.b16 %v2361
    %v2396 = vunpack.c.l.b16 %v2362
    %v2397 = vunpack.c.l.b16 %v2363
    %v2398 = vunpack.c.l.b16 %v2364
    %v2399 = vunpack.c.l.b16 %v2365
    %v2400 = vunpack.c.l.b16 %v2366
    %v2401 = vunpack.c.l.b16 %v2367
    %v2402 = vunpack.c.l.b16 %v2368
    %v2403 = vunpack.c.l.b16 %v2369
    %v2404 = vunpack.c.l.b16 %v2370
    %v2405 = vunpack.c.l.b16 %v2371
    %v2406 = vpack.c.b16 %v2391, %v2390
    %v2407 = vpack.c.b16 %v2393, %v2392
    %v2408 = vpack.c.b16 %v2395, %v2394
    %v2409 = vpack.c.b16 %v2397, %v2396
    %v2410 = vpack.c.b16 %v2399, %v2398
    %v2411 = vpack.c.b16 %v2401, %v2400
    %v2412 = vpack.c.b16 %v2403, %v2402
    %v2413 = vpack.c.b16 %v2405, %v2404
    %2422 = vmatprep.subr.bf16.mxu0 0
    %2423 = vmatpush1.bf16.msra.mxu0 %v2406
    %2424 = vmatprep.subr.bf16.mxu0 0
    %2425 = vmatpush1.bf16.msra.mxu0 %v2407
    %2426 = vmatprep.subr.bf16.mxu0 0
    %2427 = vmatpush1.bf16.msra.mxu0 %v2408
    %2428 = vmatprep.subr.bf16.mxu0 0
    %2429 = vmatpush1.bf16.msra.mxu0 %v2409
    %2430 = vmatprep.subr.bf16.mxu0 0
    %2431 = vmatpush1.bf16.msra.mxu0 %v2410
    %2432 = vmatprep.subr.bf16.mxu0 0
    %2433 = vmatpush1.bf16.msra.mxu0 %v2411
    %2434 = vmatprep.subr.bf16.mxu0 0
    %2435 = vmatpush1.bf16.msra.mxu0 %v2412
    %2436 = vmatprep.subr.bf16.mxu0 0
    %2437 = vmatpush1.bf16.msra.mxu0 %v2413
    %2438 = vmatprep.subr.bf16.mxu0 0
    %2439 = vmatpush1.bf16.msra.mxu0 0
    %2440 = vmatprep.subr.bf16.mxu0 0
    %2441 = vmatpush1.bf16.msra.mxu0 0
    %2442 = vmatprep.subr.bf16.mxu0 0
    %2443 = vmatpush1.bf16.msra.mxu0 0
    %2444 = vmatprep.subr.bf16.mxu0 0
    %2445 = vmatpush1.bf16.msra.mxu0 0
    %2446 = vmatprep.subr.bf16.mxu0 0
    %2447 = vmatpush1.bf16.msra.mxu0 0
    %2448 = vmatprep.subr.bf16.mxu0 0
    %2449 = vmatpush1.bf16.msra.mxu0 0
    %2450 = vmatprep.subr.bf16.mxu0 0
    %2451 = vmatpush1.bf16.msra.mxu0 0
    %2452 = vmatprep.subr.bf16.mxu0 0
    %2453 = vmatpush1.bf16.msra.mxu0 0
    %2454 = vmatprep.mubr.bf16.mxu0 0
    %2455 = vmatmul.mubr.bf16.gmra.mrb[0].mxu0 %v2007
    %v2456 = vpop.f32.mrb[0].mxu0
    %v2457 = vadd.f32 %v2372, %v2456
    %v2458 = vpop.f32.mrb[0].mxu0
    %v2459 = vpop.f32.mrb[0].mxu0
    %v2460 = vadd.f32 %v2373, %v2459
    %v2461 = vpop.f32.mrb[0].mxu0
    %2462 = vdwg.mxu0
    %v2463 = vadd.f32 %v2350, %v2457
    %v2464 = vadd.f32 %v2353, %v2460
    %v2465 = vxor.u32 %v2463, 2147483648
    %v2466 = vxor.u32 %v2464, 2147483648
    %v2467 = vmul.f32 %v2465, 1.442695
    %v2468 = vpow.pop %v2467
    %v2469 = vmul.f32 %v2466, 1.442695
    %v2470 = vpow.pop %v2469
    %v2471 = vadd.f32 %v2468, 1.0
    %v2472 = vadd.f32 %v2470, 1.0
    %v2473 = vrcp.pop %v2471
    %v2474 = vmul.f32 1.0, %v2473
    %v2475 = vrcp.pop %v2472
    %v2476 = vmul.f32 1.0, %v2475
    %2477 = vrot.lane.b32.xlu0 %v2474, 64
    %v2478 = vpop.permute.xlu0 %2477
    %2479 = vrot.lane.b32.xlu0 %v2476, 64
    %v2480 = vpop.permute.xlu0 %2479
    %v2481 = vmul.f32 %v2478, %v2457
    %v2482 = vmul.f32 %v2480, %v2460
    %v2483 = vadd.f32 %v2350, %v2481
    %v2484 = vadd.f32 %v2353, %v2482
    %v2485 = vtanh.pop %v2483
    %v2486 = vtanh.pop %v2484
    %2487 = vrot.lane.b32.xlu0 %v2485, 64
    %v2488 = vpop.permute.xlu0 %2487
    %2489 = vrot.lane.b32.xlu0 %v2486, 64
    %v2490 = vpop.permute.xlu0 %2489
    %2491 = vrot.lane.b32.xlu0 %v2474, 96
    %v2492 = vpop.permute.xlu0 %2491
    %2493 = vrot.lane.b32.xlu0 %v2476, 96
    %v2494 = vpop.permute.xlu0 %2493
    %v2495 = vsub.f32 1.0, %v2492
    %v2496 = vsub.f32 1.0, %v2494
    %v2497 = vmul.f32 %v2495, %v2488
    %v2498 = vmul.f32 %v2496, %v2490
    %v2499 = vmul.f32 %v2492, %v1989
    %v2500 = vmul.f32 %v2494, %v1990
    %v2501 = vadd.f32 %v2497, %v2499
    %v2502 = vadd.f32 %v2498, %v2500
    %v2503 = vsel %vm314, %v2501, 0.0
    %v2504 = vsel %vm314, %v2502, 0.0
    %v2505 = vld [vmem:[%s1475] sm:$0xf]
    %v2506 = vld [vmem:[%s1475 + $0x4] sm:$0xf]
    %v2507 = vld [vmem:[%s1475 + $0x8] sm:$0xf]
    %v2508 = vld [vmem:[%s1475 + $0xc] sm:$0xf]
    %v2509 = vld [vmem:[%s1475 + $0x10] sm:$0xf]
    %v2510 = vld [vmem:[%s1475 + $0x14] sm:$0xf]
    %v2511 = vld [vmem:[%s1475 + $0x18] sm:$0xf]
    %v2512 = vld [vmem:[%s1475 + $0x1c] sm:$0xf]
    %v2513 = vld [vmem:[%s1475 + $0x20] sm:$0xf]
    %v2514 = vld [vmem:[%s1475 + $0x24] sm:$0xf]
    %v2515 = vld [vmem:[%s1475 + $0x28] sm:$0xf]
    %v2516 = vld [vmem:[%s1475 + $0x2c] sm:$0xf]
    %v2517 = vld [vmem:[%s1475 + $0x30] sm:$0xf]
    %v2518 = vld [vmem:[%s1475 + $0x34] sm:$0xf]
    %v2519 = vld [vmem:[%s1475 + $0x38] sm:$0xf]
    %v2520 = vld [vmem:[%s1475 + $0x3c] sm:$0xf]
    %v2521 = vpack.c.bf16 %v2504, %v2503
    %v2522 = vld [vmem:[%s1493] sm:$0xf]
    %v2523 = vld [vmem:[%s1493 + $0x4] sm:$0xf]
    %v2524 = vld [vmem:[%s1493 + $0x8] sm:$0xf]
    %v2525 = vld [vmem:[%s1493 + $0xc] sm:$0xf]
    %v2526 = vld [vmem:[%s1493 + $0x10] sm:$0xf]
    %v2527 = vld [vmem:[%s1493 + $0x14] sm:$0xf]
    %v2528 = vld [vmem:[%s1493 + $0x18] sm:$0xf]
    %v2529 = vld [vmem:[%s1493 + $0x1c] sm:$0xf]
    %v2530 = vld [vmem:[%s1493 + $0x20] sm:$0xf]
    %v2531 = vld [vmem:[%s1493 + $0x24] sm:$0xf]
    %v2532 = vld [vmem:[%s1493 + $0x28] sm:$0xf]
    %v2533 = vld [vmem:[%s1493 + $0x2c] sm:$0xf]
    %v2534 = vld [vmem:[%s1493 + $0x30] sm:$0xf]
    %v2535 = vld [vmem:[%s1493 + $0x34] sm:$0xf]
    %v2536 = vld [vmem:[%s1493 + $0x38] sm:$0xf]
    %v2537 = vld [vmem:[%s1493 + $0x3c] sm:$0xf]
    %v2554 = vunpack.c.l.b16 %v2522
    %v2555 = vunpack.c.l.b16 %v2523
    %v2556 = vunpack.c.l.b16 %v2524
    %v2557 = vunpack.c.l.b16 %v2525
    %v2558 = vunpack.c.l.b16 %v2526
    %v2559 = vunpack.c.l.b16 %v2527
    %v2560 = vunpack.c.l.b16 %v2528
    %v2561 = vunpack.c.l.b16 %v2529
    %v2562 = vunpack.c.l.b16 %v2530
    %v2563 = vunpack.c.l.b16 %v2531
    %v2564 = vunpack.c.l.b16 %v2532
    %v2565 = vunpack.c.l.b16 %v2533
    %v2566 = vunpack.c.l.b16 %v2534
    %v2567 = vunpack.c.l.b16 %v2535
    %v2568 = vunpack.c.l.b16 %v2536
    %v2569 = vunpack.c.l.b16 %v2537
    %v2570 = vpack.c.b16 %v2555, %v2554
    %v2571 = vpack.c.b16 %v2557, %v2556
    %v2572 = vpack.c.b16 %v2559, %v2558
    %v2573 = vpack.c.b16 %v2561, %v2560
    %v2574 = vpack.c.b16 %v2563, %v2562
    %v2575 = vpack.c.b16 %v2565, %v2564
    %v2576 = vpack.c.b16 %v2567, %v2566
    %v2577 = vpack.c.b16 %v2569, %v2568
    %2586 = vmatprep.subr.bf16.mxu0 0
    %2587 = vmatpush1.bf16.msra.mxu0 %v2570
    %2588 = vmatprep.subr.bf16.mxu0 0
    %2589 = vmatpush1.bf16.msra.mxu0 %v2571
    %2590 = vmatprep.subr.bf16.mxu0 0
    %2591 = vmatpush1.bf16.msra.mxu0 %v2572
    %2592 = vmatprep.subr.bf16.mxu0 0
    %2593 = vmatpush1.bf16.msra.mxu0 %v2573
    %2594 = vmatprep.subr.bf16.mxu0 0
    %2595 = vmatpush1.bf16.msra.mxu0 %v2574
    %2596 = vmatprep.subr.bf16.mxu0 0
    %2597 = vmatpush1.bf16.msra.mxu0 %v2575
    %2598 = vmatprep.subr.bf16.mxu0 0
    %2599 = vmatpush1.bf16.msra.mxu0 %v2576
    %2600 = vmatprep.subr.bf16.mxu0 0
    %2601 = vmatpush1.bf16.msra.mxu0 %v2577
    %2602 = vmatprep.subr.bf16.mxu0 0
    %2603 = vmatpush1.bf16.msra.mxu0 0
    %2604 = vmatprep.subr.bf16.mxu0 0
    %2605 = vmatpush1.bf16.msra.mxu0 0
    %2606 = vmatprep.subr.bf16.mxu0 0
    %2607 = vmatpush1.bf16.msra.mxu0 0
    %2608 = vmatprep.subr.bf16.mxu0 0
    %2609 = vmatpush1.bf16.msra.mxu0 0
    %2610 = vmatprep.subr.bf16.mxu0 0
    %2611 = vmatpush1.bf16.msra.mxu0 0
    %2612 = vmatprep.subr.bf16.mxu0 0
    %2613 = vmatpush1.bf16.msra.mxu0 0
    %2614 = vmatprep.subr.bf16.mxu0 0
    %2615 = vmatpush1.bf16.msra.mxu0 0
    %2616 = vmatprep.subr.bf16.mxu0 0
    %2617 = vmatpush1.bf16.msra.mxu0 0
    %2618 = vmatprep.mubr.bf16.mxu0 0
    %2619 = vmatmul.mubr.bf16.gmra.mrb[0].mxu0 %v2521
    %v2620 = vpop.f32.mrb[0].mxu0
    %v2621 = vadd.f32 0.0, %v2620
    %v2622 = vpop.f32.mrb[0].mxu0
    %v2623 = vpop.f32.mrb[0].mxu0
    %v2624 = vadd.f32 0.0, %v2623
    %v2625 = vpop.f32.mrb[0].mxu0
    %2626 = vdwg.mxu0
    %v2643 = vunpack.c.l.b16 %v2505
    %v2644 = vunpack.c.l.b16 %v2506
    %v2645 = vunpack.c.l.b16 %v2507
    %v2646 = vunpack.c.l.b16 %v2508
    %v2647 = vunpack.c.l.b16 %v2509
    %v2648 = vunpack.c.l.b16 %v2510
    %v2649 = vunpack.c.l.b16 %v2511
    %v2650 = vunpack.c.l.b16 %v2512
    %v2651 = vunpack.c.l.b16 %v2513
    %v2652 = vunpack.c.l.b16 %v2514
    %v2653 = vunpack.c.l.b16 %v2515
    %v2654 = vunpack.c.l.b16 %v2516
    %v2655 = vunpack.c.l.b16 %v2517
    %v2656 = vunpack.c.l.b16 %v2518
    %v2657 = vunpack.c.l.b16 %v2519
    %v2658 = vunpack.c.l.b16 %v2520
    %v2659 = vpack.c.b16 %v2644, %v2643
    %v2660 = vpack.c.b16 %v2646, %v2645
    %v2661 = vpack.c.b16 %v2648, %v2647
    %v2662 = vpack.c.b16 %v2650, %v2649
    %v2663 = vpack.c.b16 %v2652, %v2651
    %v2664 = vpack.c.b16 %v2654, %v2653
    %v2665 = vpack.c.b16 %v2656, %v2655
    %v2666 = vpack.c.b16 %v2658, %v2657
    %2675 = vmatprep.subr.bf16.mxu0 0
    %2676 = vmatpush1.bf16.msra.mxu0 %v2659
    %2677 = vmatprep.subr.bf16.mxu0 0
    %2678 = vmatpush1.bf16.msra.mxu0 %v2660
    %2679 = vmatprep.subr.bf16.mxu0 0
    %2680 = vmatpush1.bf16.msra.mxu0 %v2661
    %2681 = vmatprep.subr.bf16.mxu0 0
    %2682 = vmatpush1.bf16.msra.mxu0 %v2662
    %2683 = vmatprep.subr.bf16.mxu0 0
    %2684 = vmatpush1.bf16.msra.mxu0 %v2663
    %2685 = vmatprep.subr.bf16.mxu0 0
    %2686 = vmatpush1.bf16.msra.mxu0 %v2664
    %2687 = vmatprep.subr.bf16.mxu0 0
    %2688 = vmatpush1.bf16.msra.mxu0 %v2665
    %2689 = vmatprep.subr.bf16.mxu0 0
    %2690 = vmatpush1.bf16.msra.mxu0 %v2666
    %2691 = vmatprep.subr.bf16.mxu0 0
    %2692 = vmatpush1.bf16.msra.mxu0 0
    %2693 = vmatprep.subr.bf16.mxu0 0
    %2694 = vmatpush1.bf16.msra.mxu0 0
    %2695 = vmatprep.subr.bf16.mxu0 0
    %2696 = vmatpush1.bf16.msra.mxu0 0
    %2697 = vmatprep.subr.bf16.mxu0 0
    %2698 = vmatpush1.bf16.msra.mxu0 0
    %2699 = vmatprep.subr.bf16.mxu0 0
    %2700 = vmatpush1.bf16.msra.mxu0 0
    %2701 = vmatprep.subr.bf16.mxu0 0
    %2702 = vmatpush1.bf16.msra.mxu0 0
    %2703 = vmatprep.subr.bf16.mxu0 0
    %2704 = vmatpush1.bf16.msra.mxu0 0
    %2705 = vmatprep.subr.bf16.mxu0 0
    %2706 = vmatpush1.bf16.msra.mxu0 0
    %2707 = vmatprep.mubr.bf16.mxu0 0
    %2708 = vmatmul.mubr.bf16.gmra.mrb[0].mxu0 %v2250
    %v2709 = vpop.f32.mrb[0].mxu0
    %v2710 = vadd.f32 %v2621, %v2709
    %v2711 = vpop.f32.mrb[0].mxu0
    %v2712 = vpop.f32.mrb[0].mxu0
    %v2713 = vadd.f32 %v2624, %v2712
    %v2714 = vpop.f32.mrb[0].mxu0
    %2715 = vdwg.mxu0
    %v2716 = vadd.f32 %v2710, %v1200
    %v2717 = vadd.f32 %v2713, %v1203
    %s2718 = scalar_lea.vmem %s5, 48
    %2719 = vst [vmem:[%s2718] sm:$0xff] %v2716
    %2720 = vst [vmem:[%s2718 + $0x8] sm:$0xff] %v2717
    %s2721 = sld [smem:[#allocation3 + $0x3]]
    %p2722 = scmp.eq.s32.totalorder %s2721, 1
    // Predicated region
    $region46: #{seq2seq_forward.1} parent=1 // pred_check
      %p2723 = pneg %p2722
    $region47: #{seq2seq_forward.1} parent=1 // pred_check_branch
      %2725 = sbr.rel (%p2723) target = $region49
    $region48: #{seq2seq_forward.1} parent=1 // pred_region
      %s2726 = scalar_lea.vmem %s2, 24
      %v2727 = vld [vmem:[%s2726] sm:$0xf]
      %v2728 = vld [vmem:[%s2726 + $0x4] sm:$0xf]
      %v2731 = vunpack.c.l.b16 %v2727
      %v2732 = vunpack.c.l.b16 %v2728
      %v2733 = vpack.c.b16 %v2732, %v2731
      %2735 = vst [vmem:[#allocation2] sm:$0xff] %v2733
    $region49: #{seq2seq_forward.1} parent=1 // pred_fallthru
      _
    %p2736 = scmp.eq.s32.totalorder %s2721, 0
    // Predicated region
    $region50: #{seq2seq_forward.1} parent=1 // pred_check
      %p2737 = pneg %p2736
    $region51: #{seq2seq_forward.1} parent=1 // pred_check_branch
      %2739 = sbr.rel (%p2737) target = $region53
    $region52: #{seq2seq_forward.1} parent=1 // pred_region
      %v2740 = vcvt.s32.f32 %v313
      %vm2741 = vcmp.lt.f32.partialorder %v2740, 32.0
      %v2742 = vsel %vm2741, %v2716, -1e+30
      %v2743 = vsel %vm2741, %v2717, -1e+30
      %2744 = vmax.xlane.f32.xlu0 %v2742
      %v2745 = vpop.xlane.xlu0 %2744
      %2746 = vmax.xlane.f32.xlu0 %v2743
      %v2747 = vpop.xlane.xlu0 %2746
      %vm2748 = vcmp.eq.f32.partialorder %v2742, %v2745
      %vm2749 = vcmp.eq.f32.partialorder %v2743, %v2747
      %v2750 = vsel %vm2748, %v2740, 128.0
      %v2751 = vsel %vm2749, %v2740, 128.0
      %2752 = vmin.xlane.f32.xlu0 %v2750
      %v2753 = vpop.xlane.xlu0 %2752
      %2754 = vmin.xlane.f32.xlu0 %v2751
      %v2755 = vpop.xlane.xlu0 %2754
      %vm2756 = vcmp.eq.f32.partialorder %v2740, %v2753
      %vm2757 = vcmp.eq.f32.partialorder %v2740, %v2755
      %v2758 = vsel %vm2756, 1, 0
      %v2759 = vsel %vm2757, 1, 0
      %v2760 = vcvt.s32.f32 %v2758
      %v2761 = vcvt.s32.f32 %v2759
      %v2762 = vpack.c.bf16 %v2761, %v2760
      %2763 = vst [vmem:[#allocation2] sm:$0xff] %v2762
    $region53: #{seq2seq_forward.1} parent=1 // pred_fallthru
      _
    %v2764 = vld [vmem:[#allocation2] sm:$0xff]
    %v2765 = vld [vmem:[%s1218] sm:$0xf]
    %v2766 = vld [vmem:[%s1218 + $0x4] sm:$0xf]
    %v2767 = vld [vmem:[%s1218 + $0x8] sm:$0xf]
    %v2768 = vld [vmem:[%s1218 + $0xc] sm:$0xf]
    %v2769 = vld [vmem:[%s1218 + $0x10] sm:$0xf]
    %v2770 = vld [vmem:[%s1218 + $0x14] sm:$0xf]
    %v2771 = vld [vmem:[%s1218 + $0x18] sm:$0xf]
    %v2772 = vld [vmem:[%s1218 + $0x1c] sm:$0xf]
    %v2773 = vld [vmem:[%s1218 + $0x20] sm:$0xf]
    %v2774 = vld [vmem:[%s1218 + $0x24] sm:$0xf]
    %v2775 = vld [vmem:[%s1218 + $0x28] sm:$0xf]
    %v2776 = vld [vmem:[%s1218 + $0x2c] sm:$0xf]
    %v2777 = vld [vmem:[%s1218 + $0x30] sm:$0xf]
    %v2778 = vld [vmem:[%s1218 + $0x34] sm:$0xf]
    %v2779 = vld [vmem:[%s1218 + $0x38] sm:$0xf]
    %v2780 = vld [vmem:[%s1218 + $0x3c] sm:$0xf]
    %v2797 = vunpack.c.l.b16 %v2765
    %v2798 = vunpack.c.l.b16 %v2766
    %v2799 = vunpack.c.l.b16 %v2767
    %v2800 = vunpack.c.l.b16 %v2768
    %v2801 = vunpack.c.l.b16 %v2769
    %v2802 = vunpack.c.l.b16 %v2770
    %v2803 = vunpack.c.l.b16 %v2771
    %v2804 = vunpack.c.l.b16 %v2772
    %v2805 = vunpack.c.l.b16 %v2773
    %v2806 = vunpack.c.l.b16 %v2774
    %v2807 = vunpack.c.l.b16 %v2775
    %v2808 = vunpack.c.l.b16 %v2776
    %v2809 = vunpack.c.l.b16 %v2777
    %v2810 = vunpack.c.l.b16 %v2778
    %v2811 = vunpack.c.l.b16 %v2779
    %v2812 = vunpack.c.l.b16 %v2780
    %v2813 = vpack.c.b16 %v2798, %v2797
    %v2814 = vpack.c.b16 %v2800, %v2799
    %v2815 = vpack.c.b16 %v2802, %v2801
    %v2816 = vpack.c.b16 %v2804, %v2803
    %v2817 = vpack.c.b16 %v2806, %v2805
    %v2818 = vpack.c.b16 %v2808, %v2807
    %v2819 = vpack.c.b16 %v2810, %v2809
    %v2820 = vpack.c.b16 %v2812, %v2811
    %2829 = vmatprep.subr.bf16.mxu0 0
    %2830 = vmatpush1.bf16.msra.mxu0 %v2813
    %2831 = vmatprep.subr.bf16.mxu0 0
    %2832 = vmatpush1.bf16.msra.mxu0 %v2814
    %2833 = vmatprep.subr.bf16.mxu0 0
    %2834 = vmatpush1.bf16.msra.mxu0 %v2815
    %2835 = vmatprep.subr.bf16.mxu0 0
    %2836 = vmatpush1.bf16.msra.mxu0 %v2816
    %2837 = vmatprep.subr.bf16.mxu0 0
    %2838 = vmatpush1.bf16.msra.mxu0 %v2817
    %2839 = vmatprep.subr.bf16.mxu0 0
    %2840 = vmatpush1.bf16.msra.mxu0 %v2818
    %2841 = vmatprep.subr.bf16.mxu0 0
    %2842 = vmatpush1.bf16.msra.mxu0 %v2819
    %2843 = vmatprep.subr.bf16.mxu0 0
    %2844 = vmatpush1.bf16.msra.mxu0 %v2820
    %2845 = vmatprep.subr.bf16.mxu0 0
    %2846 = vmatpush1.bf16.msra.mxu0 0
    %2847 = vmatprep.subr.bf16.mxu0 0
    %2848 = vmatpush1.bf16.msra.mxu0 0
    %2849 = vmatprep.subr.bf16.mxu0 0
    %2850 = vmatpush1.bf16.msra.mxu0 0
    %2851 = vmatprep.subr.bf16.mxu0 0
    %2852 = vmatpush1.bf16.msra.mxu0 0
    %2853 = vmatprep.subr.bf16.mxu0 0
    %2854 = vmatpush1.bf16.msra.mxu0 0
    %2855 = vmatprep.subr.bf16.mxu0 0
    %2856 = vmatpush1.bf16.msra.mxu0 0
    %2857 = vmatprep.subr.bf16.mxu0 0
    %2858 = vmatpush1.bf16.msra.mxu0 0
    %2859 = vmatprep.subr.bf16.mxu0 0
    %2860 = vmatpush1.bf16.msra.mxu0 0
    %2861 = vmatprep.mubr.bf16.mxu0 0
    %2862 = vmatmul.mubr.bf16.gmra.mrb[0].mxu0 %v2764
    %v2863 = vpop.f32.mrb[0].mxu0
    %v2864 = vadd.f32 %v1091, %v2863
    %v2865 = vpop.f32.mrb[0].mxu0
    %v2866 = vpop.f32.mrb[0].mxu0
    %v2867 = vadd.f32 %v1094, %v2866
    %v2868 = vpop.f32.mrb[0].mxu0
    %2869 = vdwg.mxu0
    %v2870 = vld [vmem:[%s1324] sm:$0xf]
    %v2871 = vld [vmem:[%s1324 + $0x4] sm:$0xf]
    %v2872 = vld [vmem:[%s1324 + $0x8] sm:$0xf]
    %v2873 = vld [vmem:[%s1324 + $0xc] sm:$0xf]
    %v2874 = vld [vmem:[%s1324 + $0x10] sm:$0xf]
    %v2875 = vld [vmem:[%s1324 + $0x14] sm:$0xf]
    %v2876 = vld [vmem:[%s1324 + $0x18] sm:$0xf]
    %v2877 = vld [vmem:[%s1324 + $0x1c] sm:$0xf]
    %v2878 = vld [vmem:[%s1324 + $0x20] sm:$0xf]
    %v2879 = vld [vmem:[%s1324 + $0x24] sm:$0xf]
    %v2880 = vld [vmem:[%s1324 + $0x28] sm:$0xf]
    %v2881 = vld [vmem:[%s1324 + $0x2c] sm:$0xf]
    %v2882 = vld [vmem:[%s1324 + $0x30] sm:$0xf]
    %v2883 = vld [vmem:[%s1324 + $0x34] sm:$0xf]
    %v2884 = vld [vmem:[%s1324 + $0x38] sm:$0xf]
    %v2885 = vld [vmem:[%s1324 + $0x3c] sm:$0xf]
    %v2886 = vld [vmem:[%s1341] sm:$0xff]
    %v2887 = vld [vmem:[%s1341 + $0x8] sm:$0xff]
    %v2904 = vunpack.c.l.b16 %v2870
    %v2905 = vunpack.c.l.b16 %v2871
    %v2906 = vunpack.c.l.b16 %v2872
    %v2907 = vunpack.c.l.b16 %v2873
    %v2908 = vunpack.c.l.b16 %v2874
    %v2909 = vunpack.c.l.b16 %v2875
    %v2910 = vunpack.c.l.b16 %v2876
    %v2911 = vunpack.c.l.b16 %v2877
    %v2912 = vunpack.c.l.b16 %v2878
    %v2913 = vunpack.c.l.b16 %v2879
    %v2914 = vunpack.c.l.b16 %v2880
    %v2915 = vunpack.c.l.b16 %v2881
    %v2916 = vunpack.c.l.b16 %v2882
    %v2917 = vunpack.c.l.b16 %v2883
    %v2918 = vunpack.c.l.b16 %v2884
    %v2919 = vunpack.c.l.b16 %v2885
    %v2920 = vpack.c.b16 %v2905, %v2904
    %v2921 = vpack.c.b16 %v2907, %v2906
    %v2922 = vpack.c.b16 %v2909, %v2908
    %v2923 = vpack.c.b16 %v2911, %v2910
    %v2924 = vpack.c.b16 %v2913, %v2912
    %v2925 = vpack.c.b16 %v2915, %v2914
    %v2926 = vpack.c.b16 %v2917, %v2916
    %v2927 = vpack.c.b16 %v2919, %v2918
    %2936 = vmatprep.subr.bf16.mxu0 0
    %2937 = vmatpush1.bf16.msra.mxu0 %v2920
    %2938 = vmatprep.subr.bf16.mxu0 0
    %2939 = vmatpush1.bf16.msra.mxu0 %v2921
    %2940 = vmatprep.subr.bf16.mxu0 0
    %2941 = vmatpush1.bf16.msra.mxu0 %v2922
    %2942 = vmatprep.subr.bf16.mxu0 0
    %2943 = vmatpush1.bf16.msra.mxu0 %v2923
    %2944 = vmatprep.subr.bf16.mxu0 0
    %2945 = vmatpush1.bf16.msra.mxu0 %v2924
    %2946 = vmatprep.subr.bf16.mxu0 0
    %2947 = vmatpush1.bf16.msra.mxu0 %v2925
    %2948 = vmatprep.subr.bf16.mxu0 0
    %2949 = vmatpush1.bf16.msra.mxu0 %v2926
    %2950 = vmatprep.subr.bf16.mxu0 0
    %2951 = vmatpush1.bf16.msra.mxu0 %v2927
    %2952 = vmatprep.subr.bf16.mxu0 0
    %2953 = vmatpush1.bf16.msra.mxu0 0
    %2954 = vmatprep.subr.bf16.mxu0 0
    %2955 = vmatpush1.bf16.msra.mxu0 0
    %2956 = vmatprep.subr.bf16.mxu0 0
    %2957 = vmatpush1.bf16.msra.mxu0 0
    %2958 = vmatprep.subr.bf16.mxu0 0
    %2959 = vmatpush1.bf16.msra.mxu0 0
    %2960 = vmatprep.subr.bf16.mxu0 0
    %2961 = vmatpush1.bf16.msra.mxu0 0
    %2962 = vmatprep.subr.bf16.mxu0 0
    %2963 = vmatpush1.bf16.msra.mxu0 0
    %2964 = vmatprep.subr.bf16.mxu0 0
    %2965 = vmatpush1.bf16.msra.mxu0 0
    %2966 = vmatprep.subr.bf16.mxu0 0
    %2967 = vmatpush1.bf16.msra.mxu0 0
    %2968 = vmatprep.mubr.bf16.mxu0 0
    %2969 = vmatmul.mubr.bf16.gmra.mrb[0].mxu0 %v2521
    %v2970 = vpop.f32.mrb[0].mxu0
    %v2971 = vadd.f32 %v2886, %v2970
    %v2972 = vpop.f32.mrb[0].mxu0
    %v2973 = vpop.f32.mrb[0].mxu0
    %v2974 = vadd.f32 %v2887, %v2973
    %v2975 = vpop.f32.mrb[0].mxu0
    %2976 = vdwg.mxu0
    %v2977 = vadd.f32 %v2864, %v2971
    %v2978 = vadd.f32 %v2867, %v2974
    %v2979 = vxor.u32 %v2977, 2147483648
    %v2980 = vxor.u32 %v2978, 2147483648
    %v2981 = vmul.f32 %v2979, 1.442695
    %v2982 = vpow.pop %v2981
    %v2983 = vmul.f32 %v2980, 1.442695
    %v2984 = vpow.pop %v2983
    %v2985 = vadd.f32 %v2982, 1.0
    %v2986 = vadd.f32 %v2984, 1.0
    %v2987 = vrcp.pop %v2985
    %v2988 = vmul.f32 1.0, %v2987
    %v2989 = vrcp.pop %v2986
    %v2990 = vmul.f32 1.0, %v2989
    %2991 = vrot.lane.b32.xlu0 %v2988, 64
    %v2992 = vpop.permute.xlu0 %2991
    %2993 = vrot.lane.b32.xlu0 %v2990, 64
    %v2994 = vpop.permute.xlu0 %2993
    %v2995 = vmul.f32 %v2992, %v2971
    %v2996 = vmul.f32 %v2994, %v2974
    %v2997 = vadd.f32 %v2864, %v2995
    %v2998 = vadd.f32 %v2867, %v2996
    %v2999 = vtanh.pop %v2997
    %v3000 = vtanh.pop %v2998
    %3001 = vrot.lane.b32.xlu0 %v2999, 64
    %v3002 = vpop.permute.xlu0 %3001
    %3003 = vrot.lane.b32.xlu0 %v3000, 64
    %v3004 = vpop.permute.xlu0 %3003
    %3005 = vrot.lane.b32.xlu0 %v2988, 96
    %v3006 = vpop.permute.xlu0 %3005
    %3007 = vrot.lane.b32.xlu0 %v2990, 96
    %v3008 = vpop.permute.xlu0 %3007
    %v3009 = vsub.f32 1.0, %v3006
    %v3010 = vsub.f32 1.0, %v3008
    %v3011 = vmul.f32 %v3009, %v3002
    %v3012 = vmul.f32 %v3010, %v3004
    %v3013 = vmul.f32 %v3006, %v2503
    %v3014 = vmul.f32 %v3008, %v2504
    %v3015 = vadd.f32 %v3011, %v3013
    %v3016 = vadd.f32 %v3012, %v3014
    %v3017 = vsel %vm314, %v3015, 0.0
    %v3018 = vsel %vm314, %v3016, 0.0
    %v3019 = vld [vmem:[%s1475] sm:$0xf]
    %v3020 = vld [vmem:[%s1475 + $0x4] sm:$0xf]
    %v3021 = vld [vmem:[%s1475 + $0x8] sm:$0xf]
    %v3022 = vld [vmem:[%s1475 + $0xc] sm:$0xf]
    %v3023 = vld [vmem:[%s1475 + $0x10] sm:$0xf]
    %v3024 = vld [vmem:[%s1475 + $0x14] sm:$0xf]
    %v3025 = vld [vmem:[%s1475 + $0x18] sm:$0xf]
    %v3026 = vld [vmem:[%s1475 + $0x1c] sm:$0xf]
    %v3027 = vld [vmem:[%s1475 + $0x20] sm:$0xf]
    %v3028 = vld [vmem:[%s1475 + $0x24] sm:$0xf]
    %v3029 = vld [vmem:[%s1475 + $0x28] sm:$0xf]
    %v3030 = vld [vmem:[%s1475 + $0x2c] sm:$0xf]
    %v3031 = vld [vmem:[%s1475 + $0x30] sm:$0xf]
    %v3032 = vld [vmem:[%s1475 + $0x34] sm:$0xf]
    %v3033 = vld [vmem:[%s1475 + $0x38] sm:$0xf]
    %v3034 = vld [vmem:[%s1475 + $0x3c] sm:$0xf]
    %v3035 = vpack.c.bf16 %v3018, %v3017
    %v3036 = vld [vmem:[%s1493] sm:$0xf]
    %v3037 = vld [vmem:[%s1493 + $0x4] sm:$0xf]
    %v3038 = vld [vmem:[%s1493 + $0x8] sm:$0xf]
    %v3039 = vld [vmem:[%s1493 + $0xc] sm:$0xf]
    %v3040 = vld [vmem:[%s1493 + $0x10] sm:$0xf]
    %v3041 = vld [vmem:[%s1493 + $0x14] sm:$0xf]
    %v3042 = vld [vmem:[%s1493 + $0x18] sm:$0xf]
    %v3043 = vld [vmem:[%s1493 + $0x1c] sm:$0xf]
    %v3044 = vld [vmem:[%s1493 + $0x20] sm:$0xf]
    %v3045 = vld [vmem:[%s1493 + $0x24] sm:$0xf]
    %v3046 = vld [vmem:[%s1493 + $0x28] sm:$0xf]
    %v3047 = vld [vmem:[%s1493 + $0x2c] sm:$0xf]
    %v3048 = vld [vmem:[%s1493 + $0x30] sm:$0xf]
    %v3049 = vld [vmem:[%s1493 + $0x34] sm:$0xf]
    %v3050 = vld [vmem:[%s1493 + $0x38] sm:$0xf]
    %v3051 = vld [vmem:[%s1493 + $0x3c] sm:$0xf]
    %v3068 = vunpack.c.l.b16 %v3036
    %v3069 = vunpack.c.l.b16 %v3037
    %v3070 = vunpack.c.l.b16 %v3038
    %v3071 = vunpack.c.l.b16 %v3039
    %v3072 = vunpack.c.l.b16 %v3040
    %v3073 = vunpack.c.l.b16 %v3041
    %v3074 = vunpack.c.l.b16 %v3042
    %v3075 = vunpack.c.l.b16 %v3043
    %v3076 = vunpack.c.l.b16 %v3044
    %v3077 = vunpack.c.l.b16 %v3045
    %v3078 = vunpack.c.l.b16 %v3046
    %v3079 = vunpack.c.l.b16 %v3047
    %v3080 = vunpack.c.l.b16 %v3048
    %v3081 = vunpack.c.l.b16 %v3049
    %v3082 = vunpack.c.l.b16 %v3050
    %v3083 = vunpack.c.l.b16 %v3051
    %v3084 = vpack.c.b16 %v3069, %v3068
    %v3085 = vpack.c.b16 %v3071, %v3070
    %v3086 = vpack.c.b16 %v3073, %v3072
    %v3087 = vpack.c.b16 %v3075, %v3074
    %v3088 = vpack.c.b16 %v3077, %v3076
    %v3089 = vpack.c.b16 %v3079, %v3078
    %v3090 = vpack.c.b16 %v3081, %v3080
    %v3091 = vpack.c.b16 %v3083, %v3082
    %3100 = vmatprep.subr.bf16.mxu0 0
    %3101 = vmatpush1.bf16.msra.mxu0 %v3084
    %3102 = vmatprep.subr.bf16.mxu0 0
    %3103 = vmatpush1.bf16.msra.mxu0 %v3085
    %3104 = vmatprep.subr.bf16.mxu0 0
    %3105 = vmatpush1.bf16.msra.mxu0 %v3086
    %3106 = vmatprep.subr.bf16.mxu0 0
    %3107 = vmatpush1.bf16.msra.mxu0 %v3087
    %3108 = vmatprep.subr.bf16.mxu0 0
    %3109 = vmatpush1.bf16.msra.mxu0 %v3088
    %3110 = vmatprep.subr.bf16.mxu0 0
    %3111 = vmatpush1.bf16.msra.mxu0 %v3089
    %3112 = vmatprep.subr.bf16.mxu0 0
    %3113 = vmatpush1.bf16.msra.mxu0 %v3090
    %3114 = vmatprep.subr.bf16.mxu0 0
    %3115 = vmatpush1.bf16.msra.mxu0 %v3091
    %3116 = vmatprep.subr.bf16.mxu0 0
    %3117 = vmatpush1.bf16.msra.mxu0 0
    %3118 = vmatprep.subr.bf16.mxu0 0
    %3119 = vmatpush1.bf16.msra.mxu0 0
    %3120 = vmatprep.subr.bf16.mxu0 0
    %3121 = vmatpush1.bf16.msra.mxu0 0
    %3122 = vmatprep.subr.bf16.mxu0 0
    %3123 = vmatpush1.bf16.msra.mxu0 0
    %3124 = vmatprep.subr.bf16.mxu0 0
    %3125 = vmatpush1.bf16.msra.mxu0 0
    %3126 = vmatprep.subr.bf16.mxu0 0
    %3127 = vmatpush1.bf16.msra.mxu0 0
    %3128 = vmatprep.subr.bf16.mxu0 0
    %3129 = vmatpush1.bf16.msra.mxu0 0
    %3130 = vmatprep.subr.bf16.mxu0 0
    %3131 = vmatpush1.bf16.msra.mxu0 0
    %3132 = vmatprep.mubr.bf16.mxu0 0
    %3133 = vmatmul.mubr.bf16.gmra.mrb[0].mxu0 %v3035
    %v3134 = vpop.f32.mrb[0].mxu0
    %v3135 = vadd.f32 0.0, %v3134
    %v3136 = vpop.f32.mrb[0].mxu0
    %v3137 = vpop.f32.mrb[0].mxu0
    %v3138 = vadd.f32 0.0, %v3137
    %v3139 = vpop.f32.mrb[0].mxu0
    %3140 = vdwg.mxu0
    %v3157 = vunpack.c.l.b16 %v3019
    %v3158 = vunpack.c.l.b16 %v3020
    %v3159 = vunpack.c.l.b16 %v3021
    %v3160 = vunpack.c.l.b16 %v3022
    %v3161 = vunpack.c.l.b16 %v3023
    %v3162 = vunpack.c.l.b16 %v3024
    %v3163 = vunpack.c.l.b16 %v3025
    %v3164 = vunpack.c.l.b16 %v3026
    %v3165 = vunpack.c.l.b16 %v3027
    %v3166 = vunpack.c.l.b16 %v3028
    %v3167 = vunpack.c.l.b16 %v3029
    %v3168 = vunpack.c.l.b16 %v3030
    %v3169 = vunpack.c.l.b16 %v3031
    %v3170 = vunpack.c.l.b16 %v3032
    %v3171 = vunpack.c.l.b16 %v3033
    %v3172 = vunpack.c.l.b16 %v3034
    %v3173 = vpack.c.b16 %v3158, %v3157
    %v3174 = vpack.c.b16 %v3160, %v3159
    %v3175 = vpack.c.b16 %v3162, %v3161
    %v3176 = vpack.c.b16 %v3164, %v3163
    %v3177 = vpack.c.b16 %v3166, %v3165
    %v3178 = vpack.c.b16 %v3168, %v3167
    %v3179 = vpack.c.b16 %v3170, %v3169
    %v3180 = vpack.c.b16 %v3172, %v3171
    %3189 = vmatprep.subr.bf16.mxu0 0
    %3190 = vmatpush1.bf16.msra.mxu0 %v3173
    %3191 = vmatprep.subr.bf16.mxu0 0
    %3192 = vmatpush1.bf16.msra.mxu0 %v3174
    %3193 = vmatprep.subr.bf16.mxu0 0
    %3194 = vmatpush1.bf16.msra.mxu0 %v3175
    %3195 = vmatprep.subr.bf16.mxu0 0
    %3196 = vmatpush1.bf16.msra.mxu0 %v3176
    %3197 = vmatprep.subr.bf16.mxu0 0
    %3198 = vmatpush1.bf16.msra.mxu0 %v3177
    %3199 = vmatprep.subr.bf16.mxu0 0
    %3200 = vmatpush1.bf16.msra.mxu0 %v3178
    %3201 = vmatprep.subr.bf16.mxu0 0
    %3202 = vmatpush1.bf16.msra.mxu0 %v3179
    %3203 = vmatprep.subr.bf16.mxu0 0
    %3204 = vmatpush1.bf16.msra.mxu0 %v3180
    %3205 = vmatprep.subr.bf16.mxu0 0
    %3206 = vmatpush1.bf16.msra.mxu0 0
    %3207 = vmatprep.subr.bf16.mxu0 0
    %3208 = vmatpush1.bf16.msra.mxu0 0
    %3209 = vmatprep.subr.bf16.mxu0 0
    %3210 = vmatpush1.bf16.msra.mxu0 0
    %3211 = vmatprep.subr.bf16.mxu0 0
    %3212 = vmatpush1.bf16.msra.mxu0 0
    %3213 = vmatprep.subr.bf16.mxu0 0
    %3214 = vmatpush1.bf16.msra.mxu0 0
    %3215 = vmatprep.subr.bf16.mxu0 0
    %3216 = vmatpush1.bf16.msra.mxu0 0
    %3217 = vmatprep.subr.bf16.mxu0 0
    %3218 = vmatpush1.bf16.msra.mxu0 0
    %3219 = vmatprep.subr.bf16.mxu0 0
    %3220 = vmatpush1.bf16.msra.mxu0 0
    %3221 = vmatprep.mubr.bf16.mxu0 0
    %3222 = vmatmul.mubr.bf16.gmra.mrb[0].mxu0 %v2764
    %v3223 = vpop.f32.mrb[0].mxu0
    %v3224 = vadd.f32 %v3135, %v3223
    %v3225 = vpop.f32.mrb[0].mxu0
    %v3226 = vpop.f32.mrb[0].mxu0
    %v3227 = vadd.f32 %v3138, %v3226
    %v3228 = vpop.f32.mrb[0].mxu0
    %3229 = vdwg.mxu0
    %v3230 = vadd.f32 %v3224, %v1200
    %v3231 = vadd.f32 %v3227, %v1203
    %s3232 = scalar_lea.vmem %s5, 64
    %3233 = vst [vmem:[%s3232] sm:$0xff] %v3230
    %3234 = vst [vmem:[%s3232 + $0x8] sm:$0xff] %v3231
    %s3235 = sld [smem:[#allocation3 + $0x4]]
    %p3236 = scmp.eq.s32.totalorder %s3235, 1
    // Predicated region
    $region54: #{seq2seq_forward.1} parent=1 // pred_check
      %p3237 = pneg %p3236
    $region55: #{seq2seq_forward.1} parent=1 // pred_check_branch
      %3239 = sbr.rel (%p3237) target = $region57
    $region56: #{seq2seq_forward.1} parent=1 // pred_region
      %s3240 = scalar_lea.vmem %s2, 32
      %v3241 = vld [vmem:[%s3240] sm:$0xf]
      %v3242 = vld [vmem:[%s3240 + $0x4] sm:$0xf]
      %v3245 = vunpack.c.l.b16 %v3241
      %v3246 = vunpack.c.l.b16 %v3242
      %v3247 = vpack.c.b16 %v3246, %v3245
      %3249 = vst [vmem:[#allocation2] sm:$0xff] %v3247
    $region57: #{seq2seq_forward.1} parent=1 // pred_fallthru
      _
    %p3250 = scmp.eq.s32.totalorder %s3235, 0
    // Predicated region
    $region58: #{seq2seq_forward.1} parent=1 // pred_check
      %p3251 = pneg %p3250
    $region59: #{seq2seq_forward.1} parent=1 // pred_check_branch
      %3253 = sbr.rel (%p3251) target = $region61
    $region60: #{seq2seq_forward.1} parent=1 // pred_region
      %v3254 = vcvt.s32.f32 %v313
      %vm3255 = vcmp.lt.f32.partialorder %v3254, 32.0
      %v3256 = vsel %vm3255, %v3230, -1e+30
      %v3257 = vsel %vm3255, %v3231, -1e+30
      %3258 = vmax.xlane.f32.xlu0 %v3256
      %v3259 = vpop.xlane.xlu0 %3258
      %3260 = vmax.xlane.f32.xlu0 %v3257
      %v3261 = vpop.xlane.xlu0 %3260
      %vm3262 = vcmp.eq.f32.partialorder %v3256, %v3259
      %vm3263 = vcmp.eq.f32.partialorder %v3257, %v3261
      %v3264 = vsel %vm3262, %v3254, 128.0
      %v3265 = vsel %vm3263, %v3254, 128.0
      %3266 = vmin.xlane.f32.xlu0 %v3264
      %v3267 = vpop.xlane.xlu0 %3266
      %3268 = vmin.xlane.f32.xlu0 %v3265
      %v3269 = vpop.xlane.xlu0 %3268
      %vm3270 = vcmp.eq.f32.partialorder %v3254, %v3267
      %vm3271 = vcmp.eq.f32.partialorder %v3254, %v3269
      %v3272 = vsel %vm3270, 1, 0
      %v3273 = vsel %vm3271, 1, 0
      %v3274 = vcvt.s32.f32 %v3272
      %v3275 = vcvt.s32.f32 %v3273
      %v3276 = vpack.c.bf16 %v3275, %v3274
      %3277 = vst [vmem:[#allocation2] sm:$0xff] %v3276
    $region61: #{seq2seq_forward.1} parent=1 // pred_fallthru
      _
    %v3278 = vld [vmem:[#allocation2] sm:$0xff]
    %v3279 = vld [vmem:[%s1218] sm:$0xf]
    %v3280 = vld [vmem:[%s1218 + $0x4] sm:$0xf]
    %v3281 = vld [vmem:[%s1218 + $0x8] sm:$0xf]
    %v3282 = vld [vmem:[%s1218 + $0xc] sm:$0xf]
    %v3283 = vld [vmem:[%s1218 + $0x10] sm:$0xf]
    %v3284 = vld [vmem:[%s1218 + $0x14] sm:$0xf]
    %v3285 = vld [vmem:[%s1218 + $0x18] sm:$0xf]
    %v3286 = vld [vmem:[%s1218 + $0x1c] sm:$0xf]
    %v3287 = vld [vmem:[%s1218 + $0x20] sm:$0xf]
    %v3288 = vld [vmem:[%s1218 + $0x24] sm:$0xf]
    %v3289 = vld [vmem:[%s1218 + $0x28] sm:$0xf]
    %v3290 = vld [vmem:[%s1218 + $0x2c] sm:$0xf]
    %v3291 = vld [vmem:[%s1218 + $0x30] sm:$0xf]
    %v3292 = vld [vmem:[%s1218 + $0x34] sm:$0xf]
    %v3293 = vld [vmem:[%s1218 + $0x38] sm:$0xf]
    %v3294 = vld [vmem:[%s1218 + $0x3c] sm:$0xf]
    %v3311 = vunpack.c.l.b16 %v3279
    %v3312 = vunpack.c.l.b16 %v3280
    %v3313 = vunpack.c.l.b16 %v3281
    %v3314 = vunpack.c.l.b16 %v3282
    %v3315 = vunpack.c.l.b16 %v3283
    %v3316 = vunpack.c.l.b16 %v3284
    %v3317 = vunpack.c.l.b16 %v3285
    %v3318 = vunpack.c.l.b16 %v3286
    %v3319 = vunpack.c.l.b16 %v3287
    %v3320 = vunpack.c.l.b16 %v3288
    %v3321 = vunpack.c.l.b16 %v3289
    %v3322 = vunpack.c.l.b16 %v3290
    %v3323 = vunpack.c.l.b16 %v3291
    %v3324 = vunpack.c.l.b16 %v3292
    %v3325 = vunpack.c.l.b16 %v3293
    %v3326 = vunpack.c.l.b16 %v3294
    %v3327 = vpack.c.b16 %v3312, %v3311
    %v3328 = vpack.c.b16 %v3314, %v3313
    %v3329 = vpack.c.b16 %v3316, %v3315
    %v3330 = vpack.c.b16 %v3318, %v3317
    %v3331 = vpack.c.b16 %v3320, %v3319
    %v3332 = vpack.c.b16 %v3322, %v3321
    %v3333 = vpack.c.b16 %v3324, %v3323
    %v3334 = vpack.c.b16 %v3326, %v3325
    %3343 = vmatprep.subr.bf16.mxu0 0
    %3344 = vmatpush1.bf16.msra.mxu0 %v3327
    %3345 = vmatprep.subr.bf16.mxu0 0
    %3346 = vmatpush1.bf16.msra.mxu0 %v3328
    %3347 = vmatprep.subr.bf16.mxu0 0
    %3348 = vmatpush1.bf16.msra.mxu0 %v3329
    %3349 = vmatprep.subr.bf16.mxu0 0
    %3350 = vmatpush1.bf16.msra.mxu0 %v3330
    %3351 = vmatprep.subr.bf16.mxu0 0
    %3352 = vmatpush1.bf16.msra.mxu0 %v3331
    %3353 = vmatprep.subr.bf16.mxu0 0
    %3354 = vmatpush1.bf16.msra.mxu0 %v3332
    %3355 = vmatprep.subr.bf16.mxu0 0
    %3356 = vmatpush1.bf16.msra.mxu0 %v3333
    %3357 = vmatprep.subr.bf16.mxu0 0
    %3358 = vmatpush1.bf16.msra.mxu0 %v3334
    %3359 = vmatprep.subr.bf16.mxu0 0
    %3360 = vmatpush1.bf16.msra.mxu0 0
    %3361 = vmatprep.subr.bf16.mxu0 0
    %3362 = vmatpush1.bf16.msra.mxu0 0
    %3363 = vmatprep.subr.bf16.mxu0 0
    %3364 = vmatpush1.bf16.msra.mxu0 0
    %3365 = vmatprep.subr.bf16.mxu0 0
    %3366 = vmatpush1.bf16.msra.mxu0 0
    %3367 = vmatprep.subr.bf16.mxu0 0
    %3368 = vmatpush1.bf16.msra.mxu0 0
    %3369 = vmatprep.subr.bf16.mxu0 0
    %3370 = vmatpush1.bf16.msra.mxu0 0
    %3371 = vmatprep.subr.bf16.mxu0 0
    %3372 = vmatpush1.bf16.msra.mxu0 0
    %3373 = vmatprep.subr.bf16.mxu0 0
    %3374 = vmatpush1.bf16.msra.mxu0 0
    %3375 = vmatprep.mubr.bf16.mxu0 0
    %3376 = vmatmul.mubr.bf16.gmra.mrb[0].mxu0 %v3278
    %v3377 = vpop.f32.mrb[0].mxu0
    %v3378 = vadd.f32 %v1091, %v3377
    %v3379 = vpop.f32.mrb[0].mxu0
    %v3380 = vpop.f32.mrb[0].mxu0
    %v3381 = vadd.f32 %v1094, %v3380
    %v3382 = vpop.f32.mrb[0].mxu0
    %3383 = vdwg.mxu0
    %v3384 = vld [vmem:[%s1324] sm:$0xf]
    %v3385 = vld [vmem:[%s1324 + $0x4] sm:$0xf]
    %v3386 = vld [vmem:[%s1324 + $0x8] sm:$0xf]
    %v3387 = vld [vmem:[%s1324 + $0xc] sm:$0xf]
    %v3388 = vld [vmem:[%s1324 + $0x10] sm:$0xf]
    %v3389 = vld [vmem:[%s1324 + $0x14] sm:$0xf]
    %v3390 = vld [vmem:[%s1324 + $0x18] sm:$0xf]
    %v3391 = vld [vmem:[%s1324 + $0x1c] sm:$0xf]
    %v3392 = vld [vmem:[%s1324 + $0x20] sm:$0xf]
    %v3393 = vld [vmem:[%s1324 + $0x24] sm:$0xf]
    %v3394 = vld [vmem:[%s1324 + $0x28] sm:$0xf]
    %v3395 = vld [vmem:[%s1324 + $0x2c] sm:$0xf]
    %v3396 = vld [vmem:[%s1324 + $0x30] sm:$0xf]
    %v3397 = vld [vmem:[%s1324 + $0x34] sm:$0xf]
    %v3398 = vld [vmem:[%s1324 + $0x38] sm:$0xf]
    %v3399 = vld [vmem:[%s1324 + $0x3c] sm:$0xf]
    %v3400 = vld [vmem:[%s1341] sm:$0xff]
    %v3401 = vld [vmem:[%s1341 + $0x8] sm:$0xff]
    %v3418 = vunpack.c.l.b16 %v3384
    %v3419 = vunpack.c.l.b16 %v3385
    %v3420 = vunpack.c.l.b16 %v3386
    %v3421 = vunpack.c.l.b16 %v3387
    %v3422 = vunpack.c.l.b16 %v3388
    %v3423 = vunpack.c.l.b16 %v3389
    %v3424 = vunpack.c.l.b16 %v3390
    %v3425 = vunpack.c.l.b16 %v3391
    %v3426 = vunpack.c.l.b16 %v3392
    %v3427 = vunpack.c.l.b16 %v3393
    %v3428 = vunpack.c.l.b16 %v3394
    %v3429 = vunpack.c.l.b16 %v3395
    %v3430 = vunpack.c.l.b16 %v3396
    %v3431 = vunpack.c.l.b16 %v3397
    %v3432 = vunpack.c.l.b16 %v3398
    %v3433 = vunpack.c.l.b16 %v3399
    %v3434 = vpack.c.b16 %v3419, %v3418
    %v3435 = vpack.c.b16 %v3421, %v3420
    %v3436 = vpack.c.b16 %v3423, %v3422
    %v3437 = vpack.c.b16 %v3425, %v3424
    %v3438 = vpack.c.b16 %v3427, %v3426
    %v3439 = vpack.c.b16 %v3429, %v3428
    %v3440 = vpack.c.b16 %v3431, %v3430
    %v3441 = vpack.c.b16 %v3433, %v3432
    %3450 = vmatprep.subr.bf16.mxu0 0
    %3451 = vmatpush1.bf16.msra.mxu0 %v3434
    %3452 = vmatprep.subr.bf16.mxu0 0
    %3453 = vmatpush1.bf16.msra.mxu0 %v3435
    %3454 = vmatprep.subr.bf16.mxu0 0
    %3455 = vmatpush1.bf16.msra.mxu0 %v3436
    %3456 = vmatprep.subr.bf16.mxu0 0
    %3457 = vmatpush1.bf16.msra.mxu0 %v3437
    %3458 = vmatprep.subr.bf16.mxu0 0
    %3459 = vmatpush1.bf16.msra.mxu0 %v3438
    %3460 = vmatprep.subr.bf16.mxu0 0
    %3461 = vmatpush1.bf16.msra.mxu0 %v3439
    %3462 = vmatprep.subr.bf16.mxu0 0
    %3463 = vmatpush1.bf16.msra.mxu0 %v3440
    %3464 = vmatprep.subr.bf16.mxu0 0
    %3465 = vmatpush1.bf16.msra.mxu0 %v3441
    %3466 = vmatprep.subr.bf16.mxu0 0
    %3467 = vmatpush1.bf16.msra.mxu0 0
    %3468 = vmatprep.subr.bf16.mxu0 0
    %3469 = vmatpush1.bf16.msra.mxu0 0
    %3470 = vmatprep.subr.bf16.mxu0 0
    %3471 = vmatpush1.bf16.msra.mxu0 0
    %3472 = vmatprep.subr.bf16.mxu0 0
    %3473 = vmatpush1.bf16.msra.mxu0 0
    %3474 = vmatprep.subr.bf16.mxu0 0
    %3475 = vmatpush1.bf16.msra.mxu0 0
    %3476 = vmatprep.subr.bf16.mxu0 0
    %3477 = vmatpush1.bf16.msra.mxu0 0
    %3478 = vmatprep.subr.bf16.mxu0 0
    %3479 = vmatpush1.bf16.msra.mxu0 0
    %3480 = vmatprep.subr.bf16.mxu0 0
    %3481 = vmatpush1.bf16.msra.mxu0 0
    %3482 = vmatprep.mubr.bf16.mxu0 0
    %3483 = vmatmul.mubr.bf16.gmra.mrb[0].mxu0 %v3035
    %v3484 = vpop.f32.mrb[0].mxu0
    %v3485 = vadd.f32 %v3400, %v3484
    %v3486 = vpop.f32.mrb[0].mxu0
    %v3487 = vpop.f32.mrb[0].mxu0
    %v3488 = vadd.f32 %v3401, %v3487
    %v3489 = vpop.f32.mrb[0].mxu0
    %3490 = vdwg.mxu0
    %v3491 = vadd.f32 %v3378, %v3485
    %v3492 = vadd.f32 %v3381, %v3488
    %v3493 = vxor.u32 %v3491, 2147483648
    %v3494 = vxor.u32 %v3492, 2147483648
    %v3495 = vmul.f32 %v3493, 1.442695
    %v3496 = vpow.pop %v3495
    %v3497 = vmul.f32 %v3494, 1.442695
    %v3498 = vpow.pop %v3497
    %v3499 = vadd.f32 %v3496, 1.0
    %v3500 = vadd.f32 %v3498, 1.0
    %v3501 = vrcp.pop %v3499
    %v3502 = vmul.f32 1.0, %v3501
    %v3503 = vrcp.pop %v3500
    %v3504 = vmul.f32 1.0, %v3503
    %3505 = vrot.lane.b32.xlu0 %v3502, 64
    %v3506 = vpop.permute.xlu0 %3505
    %3507 = vrot.lane.b32.xlu0 %v3504, 64
    %v3508 = vpop.permute.xlu0 %3507
    %v3509 = vmul.f32 %v3506, %v3485
    %v3510 = vmul.f32 %v3508, %v3488
    %v3511 = vadd.f32 %v3378, %v3509
    %v3512 = vadd.f32 %v3381, %v3510
    %v3513 = vtanh.pop %v3511
    %v3514 = vtanh.pop %v3512
    %3515 = vrot.lane.b32.xlu0 %v3513, 64
    %v3516 = vpop.permute.xlu0 %3515
    %3517 = vrot.lane.b32.xlu0 %v3514, 64
    %v3518 = vpop.permute.xlu0 %3517
    %3519 = vrot.lane.b32.xlu0 %v3502, 96
    %v3520 = vpop.permute.xlu0 %3519
    %3521 = vrot.lane.b32.xlu0 %v3504, 96
    %v3522 = vpop.permute.xlu0 %3521
    %v3523 = vsub.f32 1.0, %v3520
    %v3524 = vsub.f32 1.0, %v3522
    %v3525 = vmul.f32 %v3523, %v3516
    %v3526 = vmul.f32 %v3524, %v3518
    %v3527 = vmul.f32 %v3520, %v3017
    %v3528 = vmul.f32 %v3522, %v3018
    %v3529 = vadd.f32 %v3525, %v3527
    %v3530 = vadd.f32 %v3526, %v3528
    %v3531 = vsel %vm314, %v3529, 0.0
    %v3532 = vsel %vm314, %v3530, 0.0
    %v3533 = vld [vmem:[%s1475] sm:$0xf]
    %v3534 = vld [vmem:[%s1475 + $0x4] sm:$0xf]
    %v3535 = vld [vmem:[%s1475 + $0x8] sm:$0xf]
    %v3536 = vld [vmem:[%s1475 + $0xc] sm:$0xf]
    %v3537 = vld [vmem:[%s1475 + $0x10] sm:$0xf]
    %v3538 = vld [vmem:[%s1475 + $0x14] sm:$0xf]
    %v3539 = vld [vmem:[%s1475 + $0x18] sm:$0xf]
    %v3540 = vld [vmem:[%s1475 + $0x1c] sm:$0xf]
    %v3541 = vld [vmem:[%s1475 + $0x20] sm:$0xf]
    %v3542 = vld [vmem:[%s1475 + $0x24] sm:$0xf]
    %v3543 = vld [vmem:[%s1475 + $0x28] sm:$0xf]
    %v3544 = vld [vmem:[%s1475 + $0x2c] sm:$0xf]
    %v3545 = vld [vmem:[%s1475 + $0x30] sm:$0xf]
    %v3546 = vld [vmem:[%s1475 + $0x34] sm:$0xf]
    %v3547 = vld [vmem:[%s1475 + $0x38] sm:$0xf]
    %v3548 = vld [vmem:[%s1475 + $0x3c] sm:$0xf]
    %v3549 = vpack.c.bf16 %v3532, %v3531
    %v3550 = vld [vmem:[%s1493] sm:$0xf]
    %v3551 = vld [vmem:[%s1493 + $0x4] sm:$0xf]
    %v3552 = vld [vmem:[%s1493 + $0x8] sm:$0xf]
    %v3553 = vld [vmem:[%s1493 + $0xc] sm:$0xf]
    %v3554 = vld [vmem:[%s1493 + $0x10] sm:$0xf]
    %v3555 = vld [vmem:[%s1493 + $0x14] sm:$0xf]
    %v3556 = vld [vmem:[%s1493 + $0x18] sm:$0xf]
    %v3557 = vld [vmem:[%s1493 + $0x1c] sm:$0xf]
    %v3558 = vld [vmem:[%s1493 + $0x20] sm:$0xf]
    %v3559 = vld [vmem:[%s1493 + $0x24] sm:$0xf]
    %v3560 = vld [vmem:[%s1493 + $0x28] sm:$0xf]
    %v3561 = vld [vmem:[%s1493 + $0x2c] sm:$0xf]
    %v3562 = vld [vmem:[%s1493 + $0x30] sm:$0xf]
    %v3563 = vld [vmem:[%s1493 + $0x34] sm:$0xf]
    %v3564 = vld [vmem:[%s1493 + $0x38] sm:$0xf]
    %v3565 = vld [vmem:[%s1493 + $0x3c] sm:$0xf]
    %v3582 = vunpack.c.l.b16 %v3550
    %v3583 = vunpack.c.l.b16 %v3551
    %v3584 = vunpack.c.l.b16 %v3552
    %v3585 = vunpack.c.l.b16 %v3553
    %v3586 = vunpack.c.l.b16 %v3554
    %v3587 = vunpack.c.l.b16 %v3555
    %v3588 = vunpack.c.l.b16 %v3556
    %v3589 = vunpack.c.l.b16 %v3557
    %v3590 = vunpack.c.l.b16 %v3558
    %v3591 = vunpack.c.l.b16 %v3559
    %v3592 = vunpack.c.l.b16 %v3560
    %v3593 = vunpack.c.l.b16 %v3561
    %v3594 = vunpack.c.l.b16 %v3562
    %v3595 = vunpack.c.l.b16 %v3563
    %v3596 = vunpack.c.l.b16 %v3564
    %v3597 = vunpack.c.l.b16 %v3565
    %v3598 = vpack.c.b16 %v3583, %v3582
    %v3599 = vpack.c.b16 %v3585, %v3584
    %v3600 = vpack.c.b16 %v3587, %v3586
    %v3601 = vpack.c.b16 %v3589, %v3588
    %v3602 = vpack.c.b16 %v3591, %v3590
    %v3603 = vpack.c.b16 %v3593, %v3592
    %v3604 = vpack.c.b16 %v3595, %v3594
    %v3605 = vpack.c.b16 %v3597, %v3596
    %3614 = vmatprep.subr.bf16.mxu0 0
    %3615 = vmatpush1.bf16.msra.mxu0 %v3598
    %3616 = vmatprep.subr.bf16.mxu0 0
    %3617 = vmatpush1.bf16.msra.mxu0 %v3599
    %3618 = vmatprep.subr.bf16.mxu0 0
    %3619 = vmatpush1.bf16.msra.mxu0 %v3600
    %3620 = vmatprep.subr.bf16.mxu0 0
    %3621 = vmatpush1.bf16.msra.mxu0 %v3601
    %3622 = vmatprep.subr.bf16.mxu0 0
    %3623 = vmatpush1.bf16.msra.mxu0 %v3602
    %3624 = vmatprep.subr.bf16.mxu0 0
    %3625 = vmatpush1.bf16.msra.mxu0 %v3603
    %3626 = vmatprep.subr.bf16.mxu0 0
    %3627 = vmatpush1.bf16.msra.mxu0 %v3604
    %3628 = vmatprep.subr.bf16.mxu0 0
    %3629 = vmatpush1.bf16.msra.mxu0 %v3605
    %3630 = vmatprep.subr.bf16.mxu0 0
    %3631 = vmatpush1.bf16.msra.mxu0 0
    %3632 = vmatprep.subr.bf16.mxu0 0
    %3633 = vmatpush1.bf16.msra.mxu0 0
    %3634 = vmatprep.subr.bf16.mxu0 0
    %3635 = vmatpush1.bf16.msra.mxu0 0
    %3636 = vmatprep.subr.bf16.mxu0 0
    %3637 = vmatpush1.bf16.msra.mxu0 0
    %3638 = vmatprep.subr.bf16.mxu0 0
    %3639 = vmatpush1.bf16.msra.mxu0 0
    %3640 = vmatprep.subr.bf16.mxu0 0
    %3641 = vmatpush1.bf16.msra.mxu0 0
    %3642 = vmatprep.subr.bf16.mxu0 0
    %3643 = vmatpush1.bf16.msra.mxu0 0
    %3644 = vmatprep.subr.bf16.mxu0 0
    %3645 = vmatpush1.bf16.msra.mxu0 0
    %3646 = vmatprep.mubr.bf16.mxu0 0
    %3647 = vmatmul.mubr.bf16.gmra.mrb[0].mxu0 %v3549
    %v3648 = vpop.f32.mrb[0].mxu0
    %v3649 = vadd.f32 0.0, %v3648
    %v3650 = vpop.f32.mrb[0].mxu0
    %v3651 = vpop.f32.mrb[0].mxu0
    %v3652 = vadd.f32 0.0, %v3651
    %v3653 = vpop.f32.mrb[0].mxu0
    %3654 = vdwg.mxu0
    %v3671 = vunpack.c.l.b16 %v3533
    %v3672 = vunpack.c.l.b16 %v3534
    %v3673 = vunpack.c.l.b16 %v3535
    %v3674 = vunpack.c.l.b16 %v3536
    %v3675 = vunpack.c.l.b16 %v3537
    %v3676 = vunpack.c.l.b16 %v3538
    %v3677 = vunpack.c.l.b16 %v3539
    %v3678 = vunpack.c.l.b16 %v3540
    %v3679 = vunpack.c.l.b16 %v3541
    %v3680 = vunpack.c.l.b16 %v3542
    %v3681 = vunpack.c.l.b16 %v3543
    %v3682 = vunpack.c.l.b16 %v3544
    %v3683 = vunpack.c.l.b16 %v3545
    %v3684 = vunpack.c.l.b16 %v3546
    %v3685 = vunpack.c.l.b16 %v3547
    %v3686 = vunpack.c.l.b16 %v3548
    %v3687 = vpack.c.b16 %v3672, %v3671
    %v3688 = vpack.c.b16 %v3674, %v3673
    %v3689 = vpack.c.b16 %v3676, %v3675
    %v3690 = vpack.c.b16 %v3678, %v3677
    %v3691 = vpack.c.b16 %v3680, %v3679
    %v3692 = vpack.c.b16 %v3682, %v3681
    %v3693 = vpack.c.b16 %v3684, %v3683
    %v3694 = vpack.c.b16 %v3686, %v3685
    %3703 = vmatprep.subr.bf16.mxu0 0
    %3704 = vmatpush1.bf16.msra.mxu0 %v3687
    %3705 = vmatprep.subr.bf16.mxu0 0
    %3706 = vmatpush1.bf16.msra.mxu0 %v3688
    %3707 = vmatprep.subr.bf16.mxu0 0
    %3708 = vmatpush1.bf16.msra.mxu0 %v3689
    %3709 = vmatprep.subr.bf16.mxu0 0
    %3710 = vmatpush1.bf16.msra.mxu0 %v3690
    %3711 = vmatprep.subr.bf16.mxu0 0
    %3712 = vmatpush1.bf16.msra.mxu0 %v3691
    %3713 = vmatprep.subr.bf16.mxu0 0
    %3714 = vmatpush1.bf16.msra.mxu0 %v3692
    %3715 = vmatprep.subr.bf16.mxu0 0
    %3716 = vmatpush1.bf16.msra.mxu0 %v3693
    %3717 = vmatprep.subr.bf16.mxu0 0
    %3718 = vmatpush1.bf16.msra.mxu0 %v3694
    %3719 = vmatprep.subr.bf16.mxu0 0
    %3720 = vmatpush1.bf16.msra.mxu0 0
    %3721 = vmatprep.subr.bf16.mxu0 0
    %3722 = vmatpush1.bf16.msra.mxu0 0
    %3723 = vmatprep.subr.bf16.mxu0 0
    %3724 = vmatpush1.bf16.msra.mxu0 0
    %3725 = vmatprep.subr.bf16.mxu0 0
    %3726 = vmatpush1.bf16.msra.mxu0 0
    %3727 = vmatprep.subr.bf16.mxu0 0
    %3728 = vmatpush1.bf16.msra.mxu0 0
    %3729 = vmatprep.subr.bf16.mxu0 0
    %3730 = vmatpush1.bf16.msra.mxu0 0
    %3731 = vmatprep.subr.bf16.mxu0 0
    %3732 = vmatpush1.bf16.msra.mxu0 0
    %3733 = vmatprep.subr.bf16.mxu0 0
    %3734 = vmatpush1.bf16.msra.mxu0 0
    %3735 = vmatprep.mubr.bf16.mxu0 0
    %3736 = vmatmul.mubr.bf16.gmra.mrb[0].mxu0 %v3278
    %v3737 = vpop.f32.mrb[0].mxu0
    %v3738 = vadd.f32 %v3649, %v3737
    %v3739 = vpop.f32.mrb[0].mxu0
    %v3740 = vpop.f32.mrb[0].mxu0
    %v3741 = vadd.f32 %v3652, %v3740
    %v3742 = vpop.f32.mrb[0].mxu0
    %3743 = vdwg.mxu0
    %v3744 = vadd.f32 %v3738, %v1200
    %v3745 = vadd.f32 %v3741, %v1203
    %s3746 = scalar_lea.vmem %s5, 80
    %3747 = vst [vmem:[%s3746] sm:$0xff] %v3744
    %3748 = vst [vmem:[%s3746 + $0x8] sm:$0xff] %v3745
    %s3749 = sld [smem:[#allocation3 + $0x5]]
    %p3750 = scmp.eq.s32.totalorder %s3749, 1
    // Predicated region
    $region62: #{seq2seq_forward.1} parent=1 // pred_check
      %p3751 = pneg %p3750
    $region63: #{seq2seq_forward.1} parent=1 // pred_check_branch
      %3753 = sbr.rel (%p3751) target = $region65
    $region64: #{seq2seq_forward.1} parent=1 // pred_region
      %s3754 = scalar_lea.vmem %s2, 40
      %v3755 = vld [vmem:[%s3754] sm:$0xf]
      %v3756 = vld [vmem:[%s3754 + $0x4] sm:$0xf]
      %v3759 = vunpack.c.l.b16 %v3755
      %v3760 = vunpack.c.l.b16 %v3756
      %v3761 = vpack.c.b16 %v3760, %v3759
      %3763 = vst [vmem:[#allocation2] sm:$0xff] %v3761
    $region65: #{seq2seq_forward.1} parent=1 // pred_fallthru
      _
    %p3764 = scmp.eq.s32.totalorder %s3749, 0
    // Predicated region
    $region66: #{seq2seq_forward.1} parent=1 // pred_check
      %p3765 = pneg %p3764
    $region67: #{seq2seq_forward.1} parent=1 // pred_check_branch
      %3767 = sbr.rel (%p3765) target = $region69
    $region68: #{seq2seq_forward.1} parent=1 // pred_region
      %v3768 = vcvt.s32.f32 %v313
      %vm3769 = vcmp.lt.f32.partialorder %v3768, 32.0
      %v3770 = vsel %vm3769, %v3744, -1e+30
      %v3771 = vsel %vm3769, %v3745, -1e+30
      %3772 = vmax.xlane.f32.xlu0 %v3770
      %v3773 = vpop.xlane.xlu0 %3772
      %3774 = vmax.xlane.f32.xlu0 %v3771
      %v3775 = vpop.xlane.xlu0 %3774
      %vm3776 = vcmp.eq.f32.partialorder %v3770, %v3773
      %vm3777 = vcmp.eq.f32.partialorder %v3771, %v3775
      %v3778 = vsel %vm3776, %v3768, 128.0
      %v3779 = vsel %vm3777, %v3768, 128.0
      %3780 = vmin.xlane.f32.xlu0 %v3778
      %v3781 = vpop.xlane.xlu0 %3780
      %3782 = vmin.xlane.f32.xlu0 %v3779
      %v3783 = vpop.xlane.xlu0 %3782
      %vm3784 = vcmp.eq.f32.partialorder %v3768, %v3781
      %vm3785 = vcmp.eq.f32.partialorder %v3768, %v3783
      %v3786 = vsel %vm3784, 1, 0
      %v3787 = vsel %vm3785, 1, 0
      %v3788 = vcvt.s32.f32 %v3786
      %v3789 = vcvt.s32.f32 %v3787
      %v3790 = vpack.c.bf16 %v3789, %v3788
      %3791 = vst [vmem:[#allocation2] sm:$0xff] %v3790
    $region69: #{seq2seq_forward.1} parent=1 // pred_fallthru
      _
    %v3792 = vld [vmem:[#allocation2] sm:$0xff]
    %v3793 = vld [vmem:[%s1218] sm:$0xf]
    %v3794 = vld [vmem:[%s1218 + $0x4] sm:$0xf]
    %v3795 = vld [vmem:[%s1218 + $0x8] sm:$0xf]
    %v3796 = vld [vmem:[%s1218 + $0xc] sm:$0xf]
    %v3797 = vld [vmem:[%s1218 + $0x10] sm:$0xf]
    %v3798 = vld [vmem:[%s1218 + $0x14] sm:$0xf]
    %v3799 = vld [vmem:[%s1218 + $0x18] sm:$0xf]
    %v3800 = vld [vmem:[%s1218 + $0x1c] sm:$0xf]
    %v3801 = vld [vmem:[%s1218 + $0x20] sm:$0xf]
    %v3802 = vld [vmem:[%s1218 + $0x24] sm:$0xf]
    %v3803 = vld [vmem:[%s1218 + $0x28] sm:$0xf]
    %v3804 = vld [vmem:[%s1218 + $0x2c] sm:$0xf]
    %v3805 = vld [vmem:[%s1218 + $0x30] sm:$0xf]
    %v3806 = vld [vmem:[%s1218 + $0x34] sm:$0xf]
    %v3807 = vld [vmem:[%s1218 + $0x38] sm:$0xf]
    %v3808 = vld [vmem:[%s1218 + $0x3c] sm:$0xf]
    %v3825 = vunpack.c.l.b16 %v3793
    %v3826 = vunpack.c.l.b16 %v3794
    %v3827 = vunpack.c.l.b16 %v3795
    %v3828 = vunpack.c.l.b16 %v3796
    %v3829 = vunpack.c.l.b16 %v3797
    %v3830 = vunpack.c.l.b16 %v3798
    %v3831 = vunpack.c.l.b16 %v3799
    %v3832 = vunpack.c.l.b16 %v3800
    %v3833 = vunpack.c.l.b16 %v3801
    %v3834 = vunpack.c.l.b16 %v3802
    %v3835 = vunpack.c.l.b16 %v3803
    %v3836 = vunpack.c.l.b16 %v3804
    %v3837 = vunpack.c.l.b16 %v3805
    %v3838 = vunpack.c.l.b16 %v3806
    %v3839 = vunpack.c.l.b16 %v3807
    %v3840 = vunpack.c.l.b16 %v3808
    %v3841 = vpack.c.b16 %v3826, %v3825
    %v3842 = vpack.c.b16 %v3828, %v3827
    %v3843 = vpack.c.b16 %v3830, %v3829
    %v3844 = vpack.c.b16 %v3832, %v3831
    %v3845 = vpack.c.b16 %v3834, %v3833
    %v3846 = vpack.c.b16 %v3836, %v3835
    %v3847 = vpack.c.b16 %v3838, %v3837
    %v3848 = vpack.c.b16 %v3840, %v3839
    %3857 = vmatprep.subr.bf16.mxu0 0
    %3858 = vmatpush1.bf16.msra.mxu0 %v3841
    %3859 = vmatprep.subr.bf16.mxu0 0
    %3860 = vmatpush1.bf16.msra.mxu0 %v3842
    %3861 = vmatprep.subr.bf16.mxu0 0
    %3862 = vmatpush1.bf16.msra.mxu0 %v3843
    %3863 = vmatprep.subr.bf16.mxu0 0
    %3864 = vmatpush1.bf16.msra.mxu0 %v3844
    %3865 = vmatprep.subr.bf16.mxu0 0
    %3866 = vmatpush1.bf16.msra.mxu0 %v3845
    %3867 = vmatprep.subr.bf16.mxu0 0
    %3868 = vmatpush1.bf16.msra.mxu0 %v3846
    %3869 = vmatprep.subr.bf16.mxu0 0
    %3870 = vmatpush1.bf16.msra.mxu0 %v3847
    %3871 = vmatprep.subr.bf16.mxu0 0
    %3872 = vmatpush1.bf16.msra.mxu0 %v3848
    %3873 = vmatprep.subr.bf16.mxu0 0
    %3874 = vmatpush1.bf16.msra.mxu0 0
    %3875 = vmatprep.subr.bf16.mxu0 0
    %3876 = vmatpush1.bf16.msra.mxu0 0
    %3877 = vmatprep.subr.bf16.mxu0 0
    %3878 = vmatpush1.bf16.msra.mxu0 0
    %3879 = vmatprep.subr.bf16.mxu0 0
    %3880 = vmatpush1.bf16.msra.mxu0 0
    %3881 = vmatprep.subr.bf16.mxu0 0
    %3882 = vmatpush1.bf16.msra.mxu0 0
    %3883 = vmatprep.subr.bf16.mxu0 0
    %3884 = vmatpush1.bf16.msra.mxu0 0
    %3885 = vmatprep.subr.bf16.mxu0 0
    %3886 = vmatpush1.bf16.msra.mxu0 0
    %3887 = vmatprep.subr.bf16.mxu0 0
    %3888 = vmatpush1.bf16.msra.mxu0 0
    %3889 = vmatprep.mubr.bf16.mxu0 0
    %3890 = vmatmul.mubr.bf16.gmra.mrb[0].mxu0 %v3792
    %v3891 = vpop.f32.mrb[0].mxu0
    %v3892 = vadd.f32 %v1091, %v3891
    %v3893 = vpop.f32.mrb[0].mxu0
    %v3894 = vpop.f32.mrb[0].mxu0
    %v3895 = vadd.f32 %v1094, %v3894
    %v3896 = vpop.f32.mrb[0].mxu0
    %3897 = vdwg.mxu0
    %v3898 = vld [vmem:[%s1324] sm:$0xf]
    %v3899 = vld [vmem:[%s1324 + $0x4] sm:$0xf]
    %v3900 = vld [vmem:[%s1324 + $0x8] sm:$0xf]
    %v3901 = vld [vmem:[%s1324 + $0xc] sm:$0xf]
    %v3902 = vld [vmem:[%s1324 + $0x10] sm:$0xf]
    %v3903 = vld [vmem:[%s1324 + $0x14] sm:$0xf]
    %v3904 = vld [vmem:[%s1324 + $0x18] sm:$0xf]
    %v3905 = vld [vmem:[%s1324 + $0x1c] sm:$0xf]
    %v3906 = vld [vmem:[%s1324 + $0x20] sm:$0xf]
    %v3907 = vld [vmem:[%s1324 + $0x24] sm:$0xf]
    %v3908 = vld [vmem:[%s1324 + $0x28] sm:$0xf]
    %v3909 = vld [vmem:[%s1324 + $0x2c] sm:$0xf]
    %v3910 = vld [vmem:[%s1324 + $0x30] sm:$0xf]
    %v3911 = vld [vmem:[%s1324 + $0x34] sm:$0xf]
    %v3912 = vld [vmem:[%s1324 + $0x38] sm:$0xf]
    %v3913 = vld [vmem:[%s1324 + $0x3c] sm:$0xf]
    %v3914 = vld [vmem:[%s1341] sm:$0xff]
    %v3915 = vld [vmem:[%s1341 + $0x8] sm:$0xff]
    %v3932 = vunpack.c.l.b16 %v3898
    %v3933 = vunpack.c.l.b16 %v3899
    %v3934 = vunpack.c.l.b16 %v3900
    %v3935 = vunpack.c.l.b16 %v3901
    %v3936 = vunpack.c.l.b16 %v3902
    %v3937 = vunpack.c.l.b16 %v3903
    %v3938 = vunpack.c.l.b16 %v3904
    %v3939 = vunpack.c.l.b16 %v3905
    %v3940 = vunpack.c.l.b16 %v3906
    %v3941 = vunpack.c.l.b16 %v3907
    %v3942 = vunpack.c.l.b16 %v3908
    %v3943 = vunpack.c.l.b16 %v3909
    %v3944 = vunpack.c.l.b16 %v3910
    %v3945 = vunpack.c.l.b16 %v3911
    %v3946 = vunpack.c.l.b16 %v3912
    %v3947 = vunpack.c.l.b16 %v3913
    %v3948 = vpack.c.b16 %v3933, %v3932
    %v3949 = vpack.c.b16 %v3935, %v3934
    %v3950 = vpack.c.b16 %v3937, %v3936
    %v3951 = vpack.c.b16 %v3939, %v3938
    %v3952 = vpack.c.b16 %v3941, %v3940
    %v3953 = vpack.c.b16 %v3943, %v3942
    %v3954 = vpack.c.b16 %v3945, %v3944
    %v3955 = vpack.c.b16 %v3947, %v3946
    %3964 = vmatprep.subr.bf16.mxu0 0
    %3965 = vmatpush1.bf16.msra.mxu0 %v3948
    %3966 = vmatprep.subr.bf16.mxu0 0
    %3967 = vmatpush1.bf16.msra.mxu0 %v3949
    %3968 = vmatprep.subr.bf16.mxu0 0
    %3969 = vmatpush1.bf16.msra.mxu0 %v3950
    %3970 = vmatprep.subr.bf16.mxu0 0
    %3971 = vmatpush1.bf16.msra.mxu0 %v3951
    %3972 = vmatprep.subr.bf16.mxu0 0
    %3973 = vmatpush1.bf16.msra.mxu0 %v3952
    %3974 = vmatprep.subr.bf16.mxu0 0
    %3975 = vmatpush1.bf16.msra.mxu0 %v3953
    %3976 = vmatprep.subr.bf16.mxu0 0
    %3977 = vmatpush1.bf16.msra.mxu0 %v3954
    %3978 = vmatprep.subr.bf16.mxu0 0
    %3979 = vmatpush1.bf16.msra.mxu0 %v3955
    %3980 = vmatprep.subr.bf16.mxu0 0
    %3981 = vmatpush1.bf16.msra.mxu0 0
    %3982 = vmatprep.subr.bf16.mxu0 0
    %3983 = vmatpush1.bf16.msra.mxu0 0
    %3984 = vmatprep.subr.bf16.mxu0 0
    %3985 = vmatpush1.bf16.msra.mxu0 0
    %3986 = vmatprep.subr.bf16.mxu0 0
    %3987 = vmatpush1.bf16.msra.mxu0 0
    %3988 = vmatprep.subr.bf16.mxu0 0
    %3989 = vmatpush1.bf16.msra.mxu0 0
    %3990 = vmatprep.subr.bf16.mxu0 0
    %3991 = vmatpush1.bf16.msra.mxu0 0
    %3992 = vmatprep.subr.bf16.mxu0 0
    %3993 = vmatpush1.bf16.msra.mxu0 0
    %3994 = vmatprep.subr.bf16.mxu0 0
    %3995 = vmatpush1.bf16.msra.mxu0 0
    %3996 = vmatprep.mubr.bf16.mxu0 0
    %3997 = vmatmul.mubr.bf16.gmra.mrb[0].mxu0 %v3549
    %v3998 = vpop.f32.mrb[0].mxu0
    %v3999 = vadd.f32 %v3914, %v3998
    %v4000 = vpop.f32.mrb[0].mxu0
    %v4001 = vpop.f32.mrb[0].mxu0
    %v4002 = vadd.f32 %v3915, %v4001
    %v4003 = vpop.f32.mrb[0].mxu0
    %4004 = vdwg.mxu0
    %v4005 = vadd.f32 %v3892, %v3999
    %v4006 = vadd.f32 %v3895, %v4002
    %v4007 = vxor.u32 %v4005, 2147483648
    %v4008 = vxor.u32 %v4006, 2147483648
    %v4009 = vmul.f32 %v4007, 1.442695
    %v4010 = vpow.pop %v4009
    %v4011 = vmul.f32 %v4008, 1.442695
    %v4012 = vpow.pop %v4011
    %v4013 = vadd.f32 %v4010, 1.0
    %v4014 = vadd.f32 %v4012, 1.0
    %v4015 = vrcp.pop %v4013
    %v4016 = vmul.f32 1.0, %v4015
    %v4017 = vrcp.pop %v4014
    %v4018 = vmul.f32 1.0, %v4017
    %4019 = vrot.lane.b32.xlu0 %v4016, 64
    %v4020 = vpop.permute.xlu0 %4019
    %4021 = vrot.lane.b32.xlu0 %v4018, 64
    %v4022 = vpop.permute.xlu0 %4021
    %v4023 = vmul.f32 %v4020, %v3999
    %v4024 = vmul.f32 %v4022, %v4002
    %v4025 = vadd.f32 %v3892, %v4023
    %v4026 = vadd.f32 %v3895, %v4024
    %v4027 = vtanh.pop %v4025
    %v4028 = vtanh.pop %v4026
    %4029 = vrot.lane.b32.xlu0 %v4027, 64
    %v4030 = vpop.permute.xlu0 %4029
    %4031 = vrot.lane.b32.xlu0 %v4028, 64
    %v4032 = vpop.permute.xlu0 %4031
    %4033 = vrot.lane.b32.xlu0 %v4016, 96
    %v4034 = vpop.permute.xlu0 %4033
    %4035 = vrot.lane.b32.xlu0 %v4018, 96
    %v4036 = vpop.permute.xlu0 %4035
    %v4037 = vsub.f32 1.0, %v4034
    %v4038 = vsub.f32 1.0, %v4036
    %v4039 = vmul.f32 %v4037, %v4030
    %v4040 = vmul.f32 %v4038, %v4032
    %v4041 = vmul.f32 %v4034, %v3531
    %v4042 = vmul.f32 %v4036, %v3532
    %v4043 = vadd.f32 %v4039, %v4041
    %v4044 = vadd.f32 %v4040, %v4042
    %v4045 = vsel %vm314, %v4043, 0.0
    %v4046 = vsel %vm314, %v4044, 0.0
    %v4047 = vld [vmem:[%s1475] sm:$0xf]
    %v4048 = vld [vmem:[%s1475 + $0x4] sm:$0xf]
    %v4049 = vld [vmem:[%s1475 + $0x8] sm:$0xf]
    %v4050 = vld [vmem:[%s1475 + $0xc] sm:$0xf]
    %v4051 = vld [vmem:[%s1475 + $0x10] sm:$0xf]
    %v4052 = vld [vmem:[%s1475 + $0x14] sm:$0xf]
    %v4053 = vld [vmem:[%s1475 + $0x18] sm:$0xf]
    %v4054 = vld [vmem:[%s1475 + $0x1c] sm:$0xf]
    %v4055 = vld [vmem:[%s1475 + $0x20] sm:$0xf]
    %v4056 = vld [vmem:[%s1475 + $0x24] sm:$0xf]
    %v4057 = vld [vmem:[%s1475 + $0x28] sm:$0xf]
    %v4058 = vld [vmem:[%s1475 + $0x2c] sm:$0xf]
    %v4059 = vld [vmem:[%s1475 + $0x30] sm:$0xf]
    %v4060 = vld [vmem:[%s1475 + $0x34] sm:$0xf]
    %v4061 = vld [vmem:[%s1475 + $0x38] sm:$0xf]
    %v4062 = vld [vmem:[%s1475 + $0x3c] sm:$0xf]
    %v4063 = vpack.c.bf16 %v4046, %v4045
    %v4064 = vld [vmem:[%s1493] sm:$0xf]
    %v4065 = vld [vmem:[%s1493 + $0x4] sm:$0xf]
    %v4066 = vld [vmem:[%s1493 + $0x8] sm:$0xf]
    %v4067 = vld [vmem:[%s1493 + $0xc] sm:$0xf]
    %v4068 = vld [vmem:[%s1493 + $0x10] sm:$0xf]
    %v4069 = vld [vmem:[%s1493 + $0x14] sm:$0xf]
    %v4070 = vld [vmem:[%s1493 + $0x18] sm:$0xf]
    %v4071 = vld [vmem:[%s1493 + $0x1c] sm:$0xf]
    %v4072 = vld [vmem:[%s1493 + $0x20] sm:$0xf]
    %v4073 = vld [vmem:[%s1493 + $0x24] sm:$0xf]
    %v4074 = vld [vmem:[%s1493 + $0x28] sm:$0xf]
    %v4075 = vld [vmem:[%s1493 + $0x2c] sm:$0xf]
    %v4076 = vld [vmem:[%s1493 + $0x30] sm:$0xf]
    %v4077 = vld [vmem:[%s1493 + $0x34] sm:$0xf]
    %v4078 = vld [vmem:[%s1493 + $0x38] sm:$0xf]
    %v4079 = vld [vmem:[%s1493 + $0x3c] sm:$0xf]
    %v4096 = vunpack.c.l.b16 %v4064
    %v4097 = vunpack.c.l.b16 %v4065
    %v4098 = vunpack.c.l.b16 %v4066
    %v4099 = vunpack.c.l.b16 %v4067
    %v4100 = vunpack.c.l.b16 %v4068
    %v4101 = vunpack.c.l.b16 %v4069
    %v4102 = vunpack.c.l.b16 %v4070
    %v4103 = vunpack.c.l.b16 %v4071
    %v4104 = vunpack.c.l.b16 %v4072
    %v4105 = vunpack.c.l.b16 %v4073
    %v4106 = vunpack.c.l.b16 %v4074
    %v4107 = vunpack.c.l.b16 %v4075
    %v4108 = vunpack.c.l.b16 %v4076
    %v4109 = vunpack.c.l.b16 %v4077
    %v4110 = vunpack.c.l.b16 %v4078
    %v4111 = vunpack.c.l.b16 %v4079
    %v4112 = vpack.c.b16 %v4097, %v4096
    %v4113 = vpack.c.b16 %v4099, %v4098
    %v4114 = vpack.c.b16 %v4101, %v4100
    %v4115 = vpack.c.b16 %v4103, %v4102
    %v4116 = vpack.c.b16 %v4105, %v4104
    %v4117 = vpack.c.b16 %v4107, %v4106
    %v4118 = vpack.c.b16 %v4109, %v4108
    %v4119 = vpack.c.b16 %v4111, %v4110
    %4128 = vmatprep.subr.bf16.mxu0 0
    %4129 = vmatpush1.bf16.msra.mxu0 %v4112
    %4130 = vmatprep.subr.bf16.mxu0 0
    %4131 = vmatpush1.bf16.msra.mxu0 %v4113
    %4132 = vmatprep.subr.bf16.mxu0 0
    %4133 = vmatpush1.bf16.msra.mxu0 %v4114
    %4134 = vmatprep.subr.bf16.mxu0 0
    %4135 = vmatpush1.bf16.msra.mxu0 %v4115
    %4136 = vmatprep.subr.bf16.mxu0 0
    %4137 = vmatpush1.bf16.msra.mxu0 %v4116
    %4138 = vmatprep.subr.bf16.mxu0 0
    %4139 = vmatpush1.bf16.msra.mxu0 %v4117
    %4140 = vmatprep.subr.bf16.mxu0 0
    %4141 = vmatpush1.bf16.msra.mxu0 %v4118
    %4142 = vmatprep.subr.bf16.mxu0 0
    %4143 = vmatpush1.bf16.msra.mxu0 %v4119
    %4144 = vmatprep.subr.bf16.mxu0 0
    %4145 = vmatpush1.bf16.msra.mxu0 0
    %4146 = vmatprep.subr.bf16.mxu0 0
    %4147 = vmatpush1.bf16.msra.mxu0 0
    %4148 = vmatprep.subr.bf16.mxu0 0
    %4149 = vmatpush1.bf16.msra.mxu0 0
    %4150 = vmatprep.subr.bf16.mxu0 0
    %4151 = vmatpush1.bf16.msra.mxu0 0
    %4152 = vmatprep.subr.bf16.mxu0 0
    %4153 = vmatpush1.bf16.msra.mxu0 0
    %4154 = vmatprep.subr.bf16.mxu0 0
    %4155 = vmatpush1.bf16.msra.mxu0 0
    %4156 = vmatprep.subr.bf16.mxu0 0
    %4157 = vmatpush1.bf16.msra.mxu0 0
    %4158 = vmatprep.subr.bf16.mxu0 0
    %4159 = vmatpush1.bf16.msra.mxu0 0
    %4160 = vmatprep.mubr.bf16.mxu0 0
    %4161 = vmatmul.mubr.bf16.gmra.mrb[0].mxu0 %v4063
    %v4162 = vpop.f32.mrb[0].mxu0
    %v4163 = vadd.f32 0.0, %v4162
    %v4164 = vpop.f32.mrb[0].mxu0
    %v4165 = vpop.f32.mrb[0].mxu0
    %v4166 = vadd.f32 0.0, %v4165
    %v4167 = vpop.f32.mrb[0].mxu0
    %4168 = vdwg.mxu0
    %v4185 = vunpack.c.l.b16 %v4047
    %v4186 = vunpack.c.l.b16 %v4048
    %v4187 = vunpack.c.l.b16 %v4049
    %v4188 = vunpack.c.l.b16 %v4050
    %v4189 = vunpack.c.l.b16 %v4051
    %v4190 = vunpack.c.l.b16 %v4052
    %v4191 = vunpack.c.l.b16 %v4053
    %v4192 = vunpack.c.l.b16 %v4054
    %v4193 = vunpack.c.l.b16 %v4055
    %v4194 = vunpack.c.l.b16 %v4056
    %v4195 = vunpack.c.l.b16 %v4057
    %v4196 = vunpack.c.l.b16 %v4058
    %v4197 = vunpack.c.l.b16 %v4059
    %v4198 = vunpack.c.l.b16 %v4060
    %v4199 = vunpack.c.l.b16 %v4061
    %v4200 = vunpack.c.l.b16 %v4062
    %v4201 = vpack.c.b16 %v4186, %v4185
    %v4202 = vpack.c.b16 %v4188, %v4187
    %v4203 = vpack.c.b16 %v4190, %v4189
    %v4204 = vpack.c.b16 %v4192, %v4191
    %v4205 = vpack.c.b16 %v4194, %v4193
    %v4206 = vpack.c.b16 %v4196, %v4195
    %v4207 = vpack.c.b16 %v4198, %v4197
    %v4208 = vpack.c.b16 %v4200, %v4199
    %4217 = vmatprep.subr.bf16.mxu0 0
    %4218 = vmatpush1.bf16.msra.mxu0 %v4201
    %4219 = vmatprep.subr.bf16.mxu0 0
    %4220 = vmatpush1.bf16.msra.mxu0 %v4202
    %4221 = vmatprep.subr.bf16.mxu0 0
    %4222 = vmatpush1.bf16.msra.mxu0 %v4203
    %4223 = vmatprep.subr.bf16.mxu0 0
    %4224 = vmatpush1.bf16.msra.mxu0 %v4204
    %4225 = vmatprep.subr.bf16.mxu0 0
    %4226 = vmatpush1.bf16.msra.mxu0 %v4205
    %4227 = vmatprep.subr.bf16.mxu0 0
    %4228 = vmatpush1.bf16.msra.mxu0 %v4206
    %4229 = vmatprep.subr.bf16.mxu0 0
    %4230 = vmatpush1.bf16.msra.mxu0 %v4207
    %4231 = vmatprep.subr.bf16.mxu0 0
    %4232 = vmatpush1.bf16.msra.mxu0 %v4208
    %4233 = vmatprep.subr.bf16.mxu0 0
    %4234 = vmatpush1.bf16.msra.mxu0 0
    %4235 = vmatprep.subr.bf16.mxu0 0
    %4236 = vmatpush1.bf16.msra.mxu0 0
    %4237 = vmatprep.subr.bf16.mxu0 0
    %4238 = vmatpush1.bf16.msra.mxu0 0
    %4239 = vmatprep.subr.bf16.mxu0 0
    %4240 = vmatpush1.bf16.msra.mxu0 0
    %4241 = vmatprep.subr.bf16.mxu0 0
    %4242 = vmatpush1.bf16.msra.mxu0 0
    %4243 = vmatprep.subr.bf16.mxu0 0
    %4244 = vmatpush1.bf16.msra.mxu0 0
    %4245 = vmatprep.subr.bf16.mxu0 0
    %4246 = vmatpush1.bf16.msra.mxu0 0
    %4247 = vmatprep.subr.bf16.mxu0 0
    %4248 = vmatpush1.bf16.msra.mxu0 0
    %4249 = vmatprep.mubr.bf16.mxu0 0
    %4250 = vmatmul.mubr.bf16.gmra.mrb[0].mxu0 %v3792
    %v4251 = vpop.f32.mrb[0].mxu0
    %v4252 = vadd.f32 %v4163, %v4251
    %v4253 = vpop.f32.mrb[0].mxu0
    %v4254 = vpop.f32.mrb[0].mxu0
    %v4255 = vadd.f32 %v4166, %v4254
    %v4256 = vpop.f32.mrb[0].mxu0
    %4257 = vdwg.mxu0
    %v4258 = vadd.f32 %v4252, %v1200
    %v4259 = vadd.f32 %v4255, %v1203
    %s4260 = scalar_lea.vmem %s5, 96
    %4261 = vst [vmem:[%s4260] sm:$0xff] %v4258
    %4262 = vst [vmem:[%s4260 + $0x8] sm:$0xff] %v4259
    %s4263 = sld [smem:[#allocation3 + $0x6]]
    %p4264 = scmp.eq.s32.totalorder %s4263, 1
    // Predicated region
    $region70: #{seq2seq_forward.1} parent=1 // pred_check
      %p4265 = pneg %p4264
    $region71: #{seq2seq_forward.1} parent=1 // pred_check_branch
      %4267 = sbr.rel (%p4265) target = $region73
    $region72: #{seq2seq_forward.1} parent=1 // pred_region
      %s4268 = scalar_lea.vmem %s2, 48
      %v4269 = vld [vmem:[%s4268] sm:$0xf]
      %v4270 = vld [vmem:[%s4268 + $0x4] sm:$0xf]
      %v4273 = vunpack.c.l.b16 %v4269
      %v4274 = vunpack.c.l.b16 %v4270
      %v4275 = vpack.c.b16 %v4274, %v4273
      %4277 = vst [vmem:[#allocation2] sm:$0xff] %v4275
    $region73: #{seq2seq_forward.1} parent=1 // pred_fallthru
      _
    %p4278 = scmp.eq.s32.totalorder %s4263, 0
    // Predicated region
    $region74: #{seq2seq_forward.1} parent=1 // pred_check
      %p4279 = pneg %p4278
    $region75: #{seq2seq_forward.1} parent=1 // pred_check_branch
      %4281 = sbr.rel (%p4279) target = $region77
    $region76: #{seq2seq_forward.1} parent=1 // pred_region
      %v4282 = vcvt.s32.f32 %v313
      %vm4283 = vcmp.lt.f32.partialorder %v4282, 32.0
      %v4284 = vsel %vm4283, %v4258, -1e+30
      %v4285 = vsel %vm4283, %v4259, -1e+30
      %4286 = vmax.xlane.f32.xlu0 %v4284
      %v4287 = vpop.xlane.xlu0 %4286
      %4288 = vmax.xlane.f32.xlu0 %v4285
      %v4289 = vpop.xlane.xlu0 %4288
      %vm4290 = vcmp.eq.f32.partialorder %v4284, %v4287
      %vm4291 = vcmp.eq.f32.partialorder %v4285, %v4289
      %v4292 = vsel %vm4290, %v4282, 128.0
      %v4293 = vsel %vm4291, %v4282, 128.0
      %4294 = vmin.xlane.f32.xlu0 %v4292
      %v4295 = vpop.xlane.xlu0 %4294
      %4296 = vmin.xlane.f32.xlu0 %v4293
      %v4297 = vpop.xlane.xlu0 %4296
      %vm4298 = vcmp.eq.f32.partialorder %v4282, %v4295
      %vm4299 = vcmp.eq.f32.partialorder %v4282, %v4297
      %v4300 = vsel %vm4298, 1, 0
      %v4301 = vsel %vm4299, 1, 0
      %v4302 = vcvt.s32.f32 %v4300
      %v4303 = vcvt.s32.f32 %v4301
      %v4304 = vpack.c.bf16 %v4303, %v4302
      %4305 = vst [vmem:[#allocation2] sm:$0xff] %v4304
    $region77: #{seq2seq_forward.1} parent=1 // pred_fallthru
      _
    %v4306 = vld [vmem:[#allocation2] sm:$0xff]
    %v4307 = vld [vmem:[%s1218] sm:$0xf]
    %v4308 = vld [vmem:[%s1218 + $0x4] sm:$0xf]
    %v4309 = vld [vmem:[%s1218 + $0x8] sm:$0xf]
    %v4310 = vld [vmem:[%s1218 + $0xc] sm:$0xf]
    %v4311 = vld [vmem:[%s1218 + $0x10] sm:$0xf]
    %v4312 = vld [vmem:[%s1218 + $0x14] sm:$0xf]
    %v4313 = vld [vmem:[%s1218 + $0x18] sm:$0xf]
    %v4314 = vld [vmem:[%s1218 + $0x1c] sm:$0xf]
    %v4315 = vld [vmem:[%s1218 + $0x20] sm:$0xf]
    %v4316 = vld [vmem:[%s1218 + $0x24] sm:$0xf]
    %v4317 = vld [vmem:[%s1218 + $0x28] sm:$0xf]
    %v4318 = vld [vmem:[%s1218 + $0x2c] sm:$0xf]
    %v4319 = vld [vmem:[%s1218 + $0x30] sm:$0xf]
    %v4320 = vld [vmem:[%s1218 + $0x34] sm:$0xf]
    %v4321 = vld [vmem:[%s1218 + $0x38] sm:$0xf]
    %v4322 = vld [vmem:[%s1218 + $0x3c] sm:$0xf]
    %v4339 = vunpack.c.l.b16 %v4307
    %v4340 = vunpack.c.l.b16 %v4308
    %v4341 = vunpack.c.l.b16 %v4309
    %v4342 = vunpack.c.l.b16 %v4310
    %v4343 = vunpack.c.l.b16 %v4311
    %v4344 = vunpack.c.l.b16 %v4312
    %v4345 = vunpack.c.l.b16 %v4313
    %v4346 = vunpack.c.l.b16 %v4314
    %v4347 = vunpack.c.l.b16 %v4315
    %v4348 = vunpack.c.l.b16 %v4316
    %v4349 = vunpack.c.l.b16 %v4317
    %v4350 = vunpack.c.l.b16 %v4318
    %v4351 = vunpack.c.l.b16 %v4319
    %v4352 = vunpack.c.l.b16 %v4320
    %v4353 = vunpack.c.l.b16 %v4321
    %v4354 = vunpack.c.l.b16 %v4322
    %v4355 = vpack.c.b16 %v4340, %v4339
    %v4356 = vpack.c.b16 %v4342, %v4341
    %v4357 = vpack.c.b16 %v4344, %v4343
    %v4358 = vpack.c.b16 %v4346, %v4345
    %v4359 = vpack.c.b16 %v4348, %v4347
    %v4360 = vpack.c.b16 %v4350, %v4349
    %v4361 = vpack.c.b16 %v4352, %v4351
    %v4362 = vpack.c.b16 %v4354, %v4353
    %4371 = vmatprep.subr.bf16.mxu0 0
    %4372 = vmatpush1.bf16.msra.mxu0 %v4355
    %4373 = vmatprep.subr.bf16.mxu0 0
    %4374 = vmatpush1.bf16.msra.mxu0 %v4356
    %4375 = vmatprep.subr.bf16.mxu0 0
    %4376 = vmatpush1.bf16.msra.mxu0 %v4357
    %4377 = vmatprep.subr.bf16.mxu0 0
    %4378 = vmatpush1.bf16.msra.mxu0 %v4358
    %4379 = vmatprep.subr.bf16.mxu0 0
    %4380 = vmatpush1.bf16.msra.mxu0 %v4359
    %4381 = vmatprep.subr.bf16.mxu0 0
    %4382 = vmatpush1.bf16.msra.mxu0 %v4360
    %4383 = vmatprep.subr.bf16.mxu0 0
    %4384 = vmatpush1.bf16.msra.mxu0 %v4361
    %4385 = vmatprep.subr.bf16.mxu0 0
    %4386 = vmatpush1.bf16.msra.mxu0 %v4362
    %4387 = vmatprep.subr.bf16.mxu0 0
    %4388 = vmatpush1.bf16.msra.mxu0 0
    %4389 = vmatprep.subr.bf16.mxu0 0
    %4390 = vmatpush1.bf16.msra.mxu0 0
    %4391 = vmatprep.subr.bf16.mxu0 0
    %4392 = vmatpush1.bf16.msra.mxu0 0
    %4393 = vmatprep.subr.bf16.mxu0 0
    %4394 = vmatpush1.bf16.msra.mxu0 0
    %4395 = vmatprep.subr.bf16.mxu0 0
    %4396 = vmatpush1.bf16.msra.mxu0 0
    %4397 = vmatprep.subr.bf16.mxu0 0
    %4398 = vmatpush1.bf16.msra.mxu0 0
    %4399 = vmatprep.subr.bf16.mxu0 0
    %4400 = vmatpush1.bf16.msra.mxu0 0
    %4401 = vmatprep.subr.bf16.mxu0 0
    %4402 = vmatpush1.bf16.msra.mxu0 0
    %4403 = vmatprep.mubr.bf16.mxu0 0
    %4404 = vmatmul.mubr.bf16.gmra.mrb[0].mxu0 %v4306
    %v4405 = vpop.f32.mrb[0].mxu0
    %v4406 = vadd.f32 %v1091, %v4405
    %v4407 = vpop.f32.mrb[0].mxu0
    %v4408 = vpop.f32.mrb[0].mxu0
    %v4409 = vadd.f32 %v1094, %v4408
    %v4410 = vpop.f32.mrb[0].mxu0
    %4411 = vdwg.mxu0
    %v4412 = vld [vmem:[%s1324] sm:$0xf]
    %v4413 = vld [vmem:[%s1324 + $0x4] sm:$0xf]
    %v4414 = vld [vmem:[%s1324 + $0x8] sm:$0xf]
    %v4415 = vld [vmem:[%s1324 + $0xc] sm:$0xf]
    %v4416 = vld [vmem:[%s1324 + $0x10] sm:$0xf]
    %v4417 = vld [vmem:[%s1324 + $0x14] sm:$0xf]
    %v4418 = vld [vmem:[%s1324 + $0x18] sm:$0xf]
    %v4419 = vld [vmem:[%s1324 + $0x1c] sm:$0xf]
    %v4420 = vld [vmem:[%s1324 + $0x20] sm:$0xf]
    %v4421 = vld [vmem:[%s1324 + $0x24] sm:$0xf]
    %v4422 = vld [vmem:[%s1324 + $0x28] sm:$0xf]
    %v4423 = vld [vmem:[%s1324 + $0x2c] sm:$0xf]
    %v4424 = vld [vmem:[%s1324 + $0x30] sm:$0xf]
    %v4425 = vld [vmem:[%s1324 + $0x34] sm:$0xf]
    %v4426 = vld [vmem:[%s1324 + $0x38] sm:$0xf]
    %v4427 = vld [vmem:[%s1324 + $0x3c] sm:$0xf]
    %v4428 = vld [vmem:[%s1341] sm:$0xff]
    %v4429 = vld [vmem:[%s1341 + $0x8] sm:$0xff]
    %v4446 = vunpack.c.l.b16 %v4412
    %v4447 = vunpack.c.l.b16 %v4413
    %v4448 = vunpack.c.l.b16 %v4414
    %v4449 = vunpack.c.l.b16 %v4415
    %v4450 = vunpack.c.l.b16 %v4416
    %v4451 = vunpack.c.l.b16 %v4417
    %v4452 = vunpack.c.l.b16 %v4418
    %v4453 = vunpack.c.l.b16 %v4419
    %v4454 = vunpack.c.l.b16 %v4420
    %v4455 = vunpack.c.l.b16 %v4421
    %v4456 = vunpack.c.l.b16 %v4422
    %v4457 = vunpack.c.l.b16 %v4423
    %v4458 = vunpack.c.l.b16 %v4424
    %v4459 = vunpack.c.l.b16 %v4425
    %v4460 = vunpack.c.l.b16 %v4426
    %v4461 = vunpack.c.l.b16 %v4427
    %v4462 = vpack.c.b16 %v4447, %v4446
    %v4463 = vpack.c.b16 %v4449, %v4448
    %v4464 = vpack.c.b16 %v4451, %v4450
    %v4465 = vpack.c.b16 %v4453, %v4452
    %v4466 = vpack.c.b16 %v4455, %v4454
    %v4467 = vpack.c.b16 %v4457, %v4456
    %v4468 = vpack.c.b16 %v4459, %v4458
    %v4469 = vpack.c.b16 %v4461, %v4460
    %4478 = vmatprep.subr.bf16.mxu0 0
    %4479 = vmatpush1.bf16.msra.mxu0 %v4462
    %4480 = vmatprep.subr.bf16.mxu0 0
    %4481 = vmatpush1.bf16.msra.mxu0 %v4463
    %4482 = vmatprep.subr.bf16.mxu0 0
    %4483 = vmatpush1.bf16.msra.mxu0 %v4464
    %4484 = vmatprep.subr.bf16.mxu0 0
    %4485 = vmatpush1.bf16.msra.mxu0 %v4465
    %4486 = vmatprep.subr.bf16.mxu0 0
    %4487 = vmatpush1.bf16.msra.mxu0 %v4466
    %4488 = vmatprep.subr.bf16.mxu0 0
    %4489 = vmatpush1.bf16.msra.mxu0 %v4467
    %4490 = vmatprep.subr.bf16.mxu0 0
    %4491 = vmatpush1.bf16.msra.mxu0 %v4468
    %4492 = vmatprep.subr.bf16.mxu0 0
    %4493 = vmatpush1.bf16.msra.mxu0 %v4469
    %4494 = vmatprep.subr.bf16.mxu0 0
    %4495 = vmatpush1.bf16.msra.mxu0 0
    %4496 = vmatprep.subr.bf16.mxu0 0
    %4497 = vmatpush1.bf16.msra.mxu0 0
    %4498 = vmatprep.subr.bf16.mxu0 0
    %4499 = vmatpush1.bf16.msra.mxu0 0
    %4500 = vmatprep.subr.bf16.mxu0 0
    %4501 = vmatpush1.bf16.msra.mxu0 0
    %4502 = vmatprep.subr.bf16.mxu0 0
    %4503 = vmatpush1.bf16.msra.mxu0 0
    %4504 = vmatprep.subr.bf16.mxu0 0
    %4505 = vmatpush1.bf16.msra.mxu0 0
    %4506 = vmatprep.subr.bf16.mxu0 0
    %4507 = vmatpush1.bf16.msra.mxu0 0
    %4508 = vmatprep.subr.bf16.mxu0 0
    %4509 = vmatpush1.bf16.msra.mxu0 0
    %4510 = vmatprep.mubr.bf16.mxu0 0
    %4511 = vmatmul.mubr.bf16.gmra.mrb[0].mxu0 %v4063
    %v4512 = vpop.f32.mrb[0].mxu0
    %v4513 = vadd.f32 %v4428, %v4512
    %v4514 = vpop.f32.mrb[0].mxu0
    %v4515 = vpop.f32.mrb[0].mxu0
    %v4516 = vadd.f32 %v4429, %v4515
    %v4517 = vpop.f32.mrb[0].mxu0
    %4518 = vdwg.mxu0
    %v4519 = vadd.f32 %v4406, %v4513
    %v4520 = vadd.f32 %v4409, %v4516
    %v4521 = vxor.u32 %v4519, 2147483648
    %v4522 = vxor.u32 %v4520, 2147483648
    %v4523 = vmul.f32 %v4521, 1.442695
    %v4524 = vpow.pop %v4523
    %v4525 = vmul.f32 %v4522, 1.442695
    %v4526 = vpow.pop %v4525
    %v4527 = vadd.f32 %v4524, 1.0
    %v4528 = vadd.f32 %v4526, 1.0
    %v4529 = vrcp.pop %v4527
    %v4530 = vmul.f32 1.0, %v4529
    %v4531 = vrcp.pop %v4528
    %v4532 = vmul.f32 1.0, %v4531
    %4533 = vrot.lane.b32.xlu0 %v4530, 64
    %v4534 = vpop.permute.xlu0 %4533
    %4535 = vrot.lane.b32.xlu0 %v4532, 64
    %v4536 = vpop.permute.xlu0 %4535
    %v4537 = vmul.f32 %v4534, %v4513
    %v4538 = vmul.f32 %v4536, %v4516
    %v4539 = vadd.f32 %v4406, %v4537
    %v4540 = vadd.f32 %v4409, %v4538
    %v4541 = vtanh.pop %v4539
    %v4542 = vtanh.pop %v4540
    %4543 = vrot.lane.b32.xlu0 %v4541, 64
    %v4544 = vpop.permute.xlu0 %4543
    %4545 = vrot.lane.b32.xlu0 %v4542, 64
    %v4546 = vpop.permute.xlu0 %4545
    %4547 = vrot.lane.b32.xlu0 %v4530, 96
    %v4548 = vpop.permute.xlu0 %4547
    %4549 = vrot.lane.b32.xlu0 %v4532, 96
    %v4550 = vpop.permute.xlu0 %4549
    %v4551 = vsub.f32 1.0, %v4548
    %v4552 = vsub.f32 1.0, %v4550
    %v4553 = vmul.f32 %v4551, %v4544
    %v4554 = vmul.f32 %v4552, %v4546
    %v4555 = vmul.f32 %v4548, %v4045
    %v4556 = vmul.f32 %v4550, %v4046
    %v4557 = vadd.f32 %v4553, %v4555
    %v4558 = vadd.f32 %v4554, %v4556
    %v4559 = vsel %vm314, %v4557, 0.0
    %v4560 = vsel %vm314, %v4558, 0.0
    %v4561 = vld [vmem:[%s1475] sm:$0xf]
    %v4562 = vld [vmem:[%s1475 + $0x4] sm:$0xf]
    %v4563 = vld [vmem:[%s1475 + $0x8] sm:$0xf]
    %v4564 = vld [vmem:[%s1475 + $0xc] sm:$0xf]
    %v4565 = vld [vmem:[%s1475 + $0x10] sm:$0xf]
    %v4566 = vld [vmem:[%s1475 + $0x14] sm:$0xf]
    %v4567 = vld [vmem:[%s1475 + $0x18] sm:$0xf]
    %v4568 = vld [vmem:[%s1475 + $0x1c] sm:$0xf]
    %v4569 = vld [vmem:[%s1475 + $0x20] sm:$0xf]
    %v4570 = vld [vmem:[%s1475 + $0x24] sm:$0xf]
    %v4571 = vld [vmem:[%s1475 + $0x28] sm:$0xf]
    %v4572 = vld [vmem:[%s1475 + $0x2c] sm:$0xf]
    %v4573 = vld [vmem:[%s1475 + $0x30] sm:$0xf]
    %v4574 = vld [vmem:[%s1475 + $0x34] sm:$0xf]
    %v4575 = vld [vmem:[%s1475 + $0x38] sm:$0xf]
    %v4576 = vld [vmem:[%s1475 + $0x3c] sm:$0xf]
    %v4577 = vpack.c.bf16 %v4560, %v4559
    %v4578 = vld [vmem:[%s1493] sm:$0xf]
    %v4579 = vld [vmem:[%s1493 + $0x4] sm:$0xf]
    %v4580 = vld [vmem:[%s1493 + $0x8] sm:$0xf]
    %v4581 = vld [vmem:[%s1493 + $0xc] sm:$0xf]
    %v4582 = vld [vmem:[%s1493 + $0x10] sm:$0xf]
    %v4583 = vld [vmem:[%s1493 + $0x14] sm:$0xf]
    %v4584 = vld [vmem:[%s1493 + $0x18] sm:$0xf]
    %v4585 = vld [vmem:[%s1493 + $0x1c] sm:$0xf]
    %v4586 = vld [vmem:[%s1493 + $0x20] sm:$0xf]
    %v4587 = vld [vmem:[%s1493 + $0x24] sm:$0xf]
    %v4588 = vld [vmem:[%s1493 + $0x28] sm:$0xf]
    %v4589 = vld [vmem:[%s1493 + $0x2c] sm:$0xf]
    %v4590 = vld [vmem:[%s1493 + $0x30] sm:$0xf]
    %v4591 = vld [vmem:[%s1493 + $0x34] sm:$0xf]
    %v4592 = vld [vmem:[%s1493 + $0x38] sm:$0xf]
    %v4593 = vld [vmem:[%s1493 + $0x3c] sm:$0xf]
    %v4610 = vunpack.c.l.b16 %v4578
    %v4611 = vunpack.c.l.b16 %v4579
    %v4612 = vunpack.c.l.b16 %v4580
    %v4613 = vunpack.c.l.b16 %v4581
    %v4614 = vunpack.c.l.b16 %v4582
    %v4615 = vunpack.c.l.b16 %v4583
    %v4616 = vunpack.c.l.b16 %v4584
    %v4617 = vunpack.c.l.b16 %v4585
    %v4618 = vunpack.c.l.b16 %v4586
    %v4619 = vunpack.c.l.b16 %v4587
    %v4620 = vunpack.c.l.b16 %v4588
    %v4621 = vunpack.c.l.b16 %v4589
    %v4622 = vunpack.c.l.b16 %v4590
    %v4623 = vunpack.c.l.b16 %v4591
    %v4624 = vunpack.c.l.b16 %v4592
    %v4625 = vunpack.c.l.b16 %v4593
    %v4626 = vpack.c.b16 %v4611, %v4610
    %v4627 = vpack.c.b16 %v4613, %v4612
    %v4628 = vpack.c.b16 %v4615, %v4614
    %v4629 = vpack.c.b16 %v4617, %v4616
    %v4630 = vpack.c.b16 %v4619, %v4618
    %v4631 = vpack.c.b16 %v4621, %v4620
    %v4632 = vpack.c.b16 %v4623, %v4622
    %v4633 = vpack.c.b16 %v4625, %v4624
    %4642 = vmatprep.subr.bf16.mxu0 0
    %4643 = vmatpush1.bf16.msra.mxu0 %v4626
    %4644 = vmatprep.subr.bf16.mxu0 0
    %4645 = vmatpush1.bf16.msra.mxu0 %v4627
    %4646 = vmatprep.subr.bf16.mxu0 0
    %4647 = vmatpush1.bf16.msra.mxu0 %v4628
    %4648 = vmatprep.subr.bf16.mxu0 0
    %4649 = vmatpush1.bf16.msra.mxu0 %v4629
    %4650 = vmatprep.subr.bf16.mxu0 0
    %4651 = vmatpush1.bf16.msra.mxu0 %v4630
    %4652 = vmatprep.subr.bf16.mxu0 0
    %4653 = vmatpush1.bf16.msra.mxu0 %v4631
    %4654 = vmatprep.subr.bf16.mxu0 0
    %4655 = vmatpush1.bf16.msra.mxu0 %v4632
    %4656 = vmatprep.subr.bf16.mxu0 0
    %4657 = vmatpush1.bf16.msra.mxu0 %v4633
    %4658 = vmatprep.subr.bf16.mxu0 0
    %4659 = vmatpush1.bf16.msra.mxu0 0
    %4660 = vmatprep.subr.bf16.mxu0 0
    %4661 = vmatpush1.bf16.msra.mxu0 0
    %4662 = vmatprep.subr.bf16.mxu0 0
    %4663 = vmatpush1.bf16.msra.mxu0 0
    %4664 = vmatprep.subr.bf16.mxu0 0
    %4665 = vmatpush1.bf16.msra.mxu0 0
    %4666 = vmatprep.subr.bf16.mxu0 0
    %4667 = vmatpush1.bf16.msra.mxu0 0
    %4668 = vmatprep.subr.bf16.mxu0 0
    %4669 = vmatpush1.bf16.msra.mxu0 0
    %4670 = vmatprep.subr.bf16.mxu0 0
    %4671 = vmatpush1.bf16.msra.mxu0 0
    %4672 = vmatprep.subr.bf16.mxu0 0
    %4673 = vmatpush1.bf16.msra.mxu0 0
    %4674 = vmatprep.mubr.bf16.mxu0 0
    %4675 = vmatmul.mubr.bf16.gmra.mrb[0].mxu0 %v4577
    %v4676 = vpop.f32.mrb[0].mxu0
    %v4677 = vadd.f32 0.0, %v4676
    %v4678 = vpop.f32.mrb[0].mxu0
    %v4679 = vpop.f32.mrb[0].mxu0
    %v4680 = vadd.f32 0.0, %v4679
    %v4681 = vpop.f32.mrb[0].mxu0
    %4682 = vdwg.mxu0
    %v4699 = vunpack.c.l.b16 %v4561
    %v4700 = vunpack.c.l.b16 %v4562
    %v4701 = vunpack.c.l.b16 %v4563
    %v4702 = vunpack.c.l.b16 %v4564
    %v4703 = vunpack.c.l.b16 %v4565
    %v4704 = vunpack.c.l.b16 %v4566
    %v4705 = vunpack.c.l.b16 %v4567
    %v4706 = vunpack.c.l.b16 %v4568
    %v4707 = vunpack.c.l.b16 %v4569
    %v4708 = vunpack.c.l.b16 %v4570
    %v4709 = vunpack.c.l.b16 %v4571
    %v4710 = vunpack.c.l.b16 %v4572
    %v4711 = vunpack.c.l.b16 %v4573
    %v4712 = vunpack.c.l.b16 %v4574
    %v4713 = vunpack.c.l.b16 %v4575
    %v4714 = vunpack.c.l.b16 %v4576
    %v4715 = vpack.c.b16 %v4700, %v4699
    %v4716 = vpack.c.b16 %v4702, %v4701
    %v4717 = vpack.c.b16 %v4704, %v4703
    %v4718 = vpack.c.b16 %v4706, %v4705
    %v4719 = vpack.c.b16 %v4708, %v4707
    %v4720 = vpack.c.b16 %v4710, %v4709
    %v4721 = vpack.c.b16 %v4712, %v4711
    %v4722 = vpack.c.b16 %v4714, %v4713
    %4731 = vmatprep.subr.bf16.mxu0 0
    %4732 = vmatpush1.bf16.msra.mxu0 %v4715
    %4733 = vmatprep.subr.bf16.mxu0 0
    %4734 = vmatpush1.bf16.msra.mxu0 %v4716
    %4735 = vmatprep.subr.bf16.mxu0 0
    %4736 = vmatpush1.bf16.msra.mxu0 %v4717
    %4737 = vmatprep.subr.bf16.mxu0 0
    %4738 = vmatpush1.bf16.msra.mxu0 %v4718
    %4739 = vmatprep.subr.bf16.mxu0 0
    %4740 = vmatpush1.bf16.msra.mxu0 %v4719
    %4741 = vmatprep.subr.bf16.mxu0 0
    %4742 = vmatpush1.bf16.msra.mxu0 %v4720
    %4743 = vmatprep.subr.bf16.mxu0 0
    %4744 = vmatpush1.bf16.msra.mxu0 %v4721
    %4745 = vmatprep.subr.bf16.mxu0 0
    %4746 = vmatpush1.bf16.msra.mxu0 %v4722
    %4747 = vmatprep.subr.bf16.mxu0 0
    %4748 = vmatpush1.bf16.msra.mxu0 0
    %4749 = vmatprep.subr.bf16.mxu0 0
    %4750 = vmatpush1.bf16.msra.mxu0 0
    %4751 = vmatprep.subr.bf16.mxu0 0
    %4752 = vmatpush1.bf16.msra.mxu0 0
    %4753 = vmatprep.subr.bf16.mxu0 0
    %4754 = vmatpush1.bf16.msra.mxu0 0
    %4755 = vmatprep.subr.bf16.mxu0 0
    %4756 = vmatpush1.bf16.msra.mxu0 0
    %4757 = vmatprep.subr.bf16.mxu0 0
    %4758 = vmatpush1.bf16.msra.mxu0 0
    %4759 = vmatprep.subr.bf16.mxu0 0
    %4760 = vmatpush1.bf16.msra.mxu0 0
    %4761 = vmatprep.subr.bf16.mxu0 0
    %4762 = vmatpush1.bf16.msra.mxu0 0
    %4763 = vmatprep.mubr.bf16.mxu0 0
    %4764 = vmatmul.mubr.bf16.gmra.mrb[0].mxu0 %v4306
    %v4765 = vpop.f32.mrb[0].mxu0
    %v4766 = vadd.f32 %v4677, %v4765
    %v4767 = vpop.f32.mrb[0].mxu0
    %v4768 = vpop.f32.mrb[0].mxu0
    %v4769 = vadd.f32 %v4680, %v4768
    %v4770 = vpop.f32.mrb[0].mxu0
    %4771 = vdwg.mxu0
    %v4772 = vadd.f32 %v4766, %v1200
    %v4773 = vadd.f32 %v4769, %v1203
    %s4774 = scalar_lea.vmem %s5, 112
    %4775 = vst [vmem:[%s4774] sm:$0xff] %v4772
    %4776 = vst [vmem:[%s4774 + $0x8] sm:$0xff] %v4773
    %s4777 = sld [smem:[#allocation3 + $0x7]]
    %p4778 = scmp.eq.s32.totalorder %s4777, 1
    // Predicated region
    $region78: #{seq2seq_forward.1} parent=1 // pred_check
      %p4779 = pneg %p4778
    $region79: #{seq2seq_forward.1} parent=1 // pred_check_branch
      %4781 = sbr.rel (%p4779) target = $region81
    $region80: #{seq2seq_forward.1} parent=1 // pred_region
      %s4782 = scalar_lea.vmem %s2, 56
      %v4783 = vld [vmem:[%s4782] sm:$0xf]
      %v4784 = vld [vmem:[%s4782 + $0x4] sm:$0xf]
      %v4787 = vunpack.c.l.b16 %v4783
      %v4788 = vunpack.c.l.b16 %v4784
      %v4789 = vpack.c.b16 %v4788, %v4787
      %4791 = vst [vmem:[#allocation2] sm:$0xff] %v4789
    $region81: #{seq2seq_forward.1} parent=1 // pred_fallthru
      _
    %p4792 = scmp.eq.s32.totalorder %s4777, 0
    // Predicated region
    $region82: #{seq2seq_forward.1} parent=1 // pred_check
      %p4793 = pneg %p4792
    $region83: #{seq2seq_forward.1} parent=1 // pred_check_branch
      %4795 = sbr.rel (%p4793) target = $region85
    $region84: #{seq2seq_forward.1} parent=1 // pred_region
      %v4796 = vcvt.s32.f32 %v313
      %vm4797 = vcmp.lt.f32.partialorder %v4796, 32.0
      %v4798 = vsel %vm4797, %v4772, -1e+30
      %v4799 = vsel %vm4797, %v4773, -1e+30
      %4800 = vmax.xlane.f32.xlu0 %v4798
      %v4801 = vpop.xlane.xlu0 %4800
      %4802 = vmax.xlane.f32.xlu0 %v4799
      %v4803 = vpop.xlane.xlu0 %4802
      %vm4804 = vcmp.eq.f32.partialorder %v4798, %v4801
      %vm4805 = vcmp.eq.f32.partialorder %v4799, %v4803
      %v4806 = vsel %vm4804, %v4796, 128.0
      %v4807 = vsel %vm4805, %v4796, 128.0
      %4808 = vmin.xlane.f32.xlu0 %v4806
      %v4809 = vpop.xlane.xlu0 %4808
      %4810 = vmin.xlane.f32.xlu0 %v4807
      %v4811 = vpop.xlane.xlu0 %4810
      %vm4812 = vcmp.eq.f32.partialorder %v4796, %v4809
      %vm4813 = vcmp.eq.f32.partialorder %v4796, %v4811
      %v4814 = vsel %vm4812, 1, 0
      %v4815 = vsel %vm4813, 1, 0
      %v4816 = vcvt.s32.f32 %v4814
      %v4817 = vcvt.s32.f32 %v4815
      %v4818 = vpack.c.bf16 %v4817, %v4816
      %4819 = vst [vmem:[#allocation2] sm:$0xff] %v4818
    $region85: #{seq2seq_forward.1} parent=1 // pred_fallthru
      _
    // Predicated region
    $region86: #{seq2seq_forward.1} parent=1 // pred_check
      _
    $region87: #{seq2seq_forward.1} parent=1 // pred_check_branch
      %4821 = sbr.rel (0) target = $region89
    $region88: #{seq2seq_forward.1} parent=1 // pred_region
      _
    $region89: #{seq2seq_forward.1} parent=1 // pred_fallthru
      _
    // Predicated region
    $region90: #{seq2seq_forward.1} parent=1 // pred_check
      _
    $region91: #{seq2seq_forward.1} parent=1 // pred_check_branch
      %4823 = sbr.rel (0) target = $region93
    $region92: #{seq2seq_forward.1} parent=1 // pred_region
      _
    $region93: #{seq2seq_forward.1} parent=1 // pred_fallthru
      _
    %4824 = vsyncpa [#allocation4], 1
    %4825 = vsyncpa [#allocation5], 1

</llo_original>
